<compile_context>
chip_gen: v6e
topology: v6e:2x2x1
jax: 0.10.0
libtpu: 0.0.40
codegen_flags: <defaults>
</compile_context>

<pallas_src>
import functools
import math

import jax
import jax.numpy as jnp
from jax import lax
from jax.experimental import pallas as pl

# ----------------------------- configuration --------------------------------
HIDDEN = 32      # config.hidden_size
HEADS = 4        # config.num_attention_heads
EVENT = 4        # config.event_size (must equal HEADS for the gmm-mask broadcast)
MAP = 8          # config.map_size == sequence length L
BATCH = 2        # config.batch_size
HEAD_DIM = HIDDEN // HEADS
EPS = 1e-5       # nn.LayerNorm default
GAUSS_C = 0.3989422804014327
NEG = -1e30      # additive bias that zeroes cross-batch / cross-head attention

SLAB_COLS = 128  # lane-dense width of the packed weight / output slabs

# packed weight-slab row layout (shared by pack_weights() and the kernel);
# every entry sits at lane offset 0 of its row block.
ROW_C2VW = 0                        # (D, D)   clip2video fc_out1 weight
ROW_C2VV = ROW_C2VW + HIDDEN        # rows +0 ln_gamma, +1 ln_beta, +2 fc bias
ROW_GW = ROW_C2VV + 8               # (D, 2E)  fc_gauss weight [centers | widths]
ROW_GB = ROW_GW + HIDDEN            # row: fc_gauss bias (2E,)
ROW_L0 = ROW_GB + 8                 # first BertAttention layer block
LAYER_ROWS = 2 * HIDDEN + 8         # Wqkv (D rows) + Wo (D rows) + 8 vector rows
N_W_ROWS = ROW_L0 + 2 * LAYER_ROWS  # = 224
# inside a layer block at `base`:
#   base        .. base+D   : Wqkv (D, 3D) = [Wq | Wk | Wv]
#   base+D      .. base+2D  : Wo   (D, D)
#   base+2D + 0 : b_qkv (3D,)   +1 : b_o (D,)   +2 : ln_gamma   +3 : ln_beta


def _layernorm(x, gamma, beta):
    mu = jnp.mean(x, axis=-1, keepdims=True)
    var = jnp.mean((x - mu) ** 2, axis=-1, keepdims=True)
    return (x - mu) * lax.rsqrt(var + EPS) * gamma + beta


# ---------------- the single fused kernel ----------------
def gmm_block_kernel(x_ref, w_ref, out_ref, *, B, L, D, H, E):
    BL, BE, dh = B * L, B * E, D // H
    HBL = H * BL
    inv_scale = 1.0 / math.sqrt(dh)

    x = x_ref[...]                                                       # (BL, D)

    # ============ clip2video (avgpooling): mean over L -> LayerNorm -> Linear
    rp = lax.broadcasted_iota(jnp.int32, (B, BL), 0)
    cp = lax.broadcasted_iota(jnp.int32, (B, BL), 1)
    pool = jnp.where((cp >= rp * L) & (cp < (rp + 1) * L), 1.0 / L, 0.0)  # (B, BL)
    pooled = jnp.dot(pool, x, preferred_element_type=jnp.float32)        # (B, D)
    normed = _layernorm(pooled,
                        w_ref[ROW_C2VV + 0:ROW_C2VV + 1, 0:D],
                        w_ref[ROW_C2VV + 1:ROW_C2VV + 2, 0:D])
    video = (jnp.dot(normed, w_ref[ROW_C2VW:ROW_C2VW + D, 0:D],
                     preferred_element_type=jnp.float32)
             + w_ref[ROW_C2VV + 2:ROW_C2VV + 3, 0:D])                    # (B, D)

    # ============ fc_gauss -> sigmoid -> [centers | widths]  (B, 2E) =========
    cw = jax.nn.sigmoid(
        jnp.dot(video, w_ref[ROW_GW:ROW_GW + D, 0:2 * E],
                preferred_element_type=jnp.float32)
        + w_ref[ROW_GB:ROW_GB + 1, 0:2 * E])                             # (B, 2E)

    # ============ gaussian masks, layout A: rows = (b, e)  ===================
    # (GAUSS_C / width prefactor dropped: it cancels exactly in the
    #  max-normalisation below.)
    r_be = lax.broadcasted_iota(jnp.int32, (BE, 1), 0)
    c_be = jnp.zeros((BE, 1), jnp.float32)
    w_be = jnp.zeros((BE, 1), jnp.float32)
    for b in range(B):                                                   # static unroll
        for e in range(E):
            sel = r_be == (b * E + e)
            c_be = jnp.where(sel, cw[b:b + 1, e:e + 1], c_be)
            w_be = jnp.where(sel, cw[b:b + 1, E + e:E + e + 1], w_be)
    w_be = jnp.maximum(w_be, 0.01) / 9.0

    rg = lax.broadcasted_iota(jnp.int32, (BE, BL), 0)
    cg = lax.broadcasted_iota(jnp.int32, (BE, BL), 1)
    l_idx = cg
    for b in range(1, B):
        l_idx = jnp.where(cg >= b * L, cg - b * L, l_idx)
    t_bd = l_idx.astype(jnp.float32) / float(L - 1)                      # l/(L-1), tiled per batch
    wgt_bd = jnp.exp(-(t_bd - c_be) ** 2 / (2.0 * w_be * w_be))          # (BE, BL)
    mx_be = jnp.max(wgt_bd, axis=1, keepdims=True)                       # == max over L (pattern tiles)
    masks_nrm = wgt_bd / mx_be
    masks_out = masks_nrm[:, 0:L]                                        # (BE, L) == v_gmm_masks
    blk_be = None
    for b in range(B):
        cond = ((rg >= b * E) & (rg < (b + 1) * E)
                & (cg >= b * L) & (cg < (b + 1) * L))
        blk_be = cond if blk_be is None else (blk_be | cond)
    m_bd = jnp.where(blk_be, masks_nrm, 0.0)                             # block-diagonal (BE, BL)

    # proposal_fea: ONE block-diagonal matmul over the folded batch
    proposal = jnp.dot(m_bd, x, preferred_element_type=jnp.float32)      # (BE, D)

    # ============ gaussian masks, layout B: rows = key position ==============
    # (re-derived in the key layout with cheap selects; feeds the attn1 key scale)
    i_col = lax.broadcasted_iota(jnp.int32, (BL, 1), 0)
    cw_c = cw[:, 0:E]
    cw_w = cw[:, E:2 * E]
    c_rows = jnp.zeros((BL, E), jnp.float32)
    w_rows = jnp.zeros((BL, E), jnp.float32)
    t_row = i_col
    for b in range(B):
        in_b = (i_col >= b * L) & (i_col < (b + 1) * L)
        c_rows = jnp.where(in_b, cw_c[b:b + 1, :], c_rows)
        w_rows = jnp.where(in_b, cw_w[b:b + 1, :], w_rows)
        if b > 0:
            t_row = jnp.where(in_b, i_col - b * L, t_row)
    w_rows = jnp.maximum(w_rows, 0.01) / 9.0
    t_col = t_row.astype(jnp.float32) / float(L - 1)
    wgt_col = jnp.exp(-(t_col - c_rows) ** 2 / (2.0 * w_rows * w_rows))  # (BL, E)
    norm_col = jnp.ones((BL, E), jnp.float32)
    for b in range(B):
        in_b = (i_col >= b * L) & (i_col < (b + 1) * L)
        m_b = jnp.max(wgt_col[b * L:(b + 1) * L, :], axis=0, keepdims=True)
        norm_col = jnp.where(in_b, m_b, norm_col)
    masks_col = wgt_col / norm_col                                       # masks[b, e, l] at row b*L+l
    # expand event columns into head column blocks: kscale[i, h*dh+d] = masks[b_i, h, l_i]
    rx = lax.broadcasted_iota(jnp.int32, (E, D), 0)
    cx = lax.broadcasted_iota(jnp.int32, (E, D), 1)
    expand = jnp.where((cx >= rx * dh) & (cx < (rx + 1) * dh), 1.0, 0.0)  # (E, D)
    kscale = jnp.dot(masks_col, expand, preferred_element_type=jnp.float32)   # (BL, D)

    # ============ head-stacked attention constants (built once, reused) ======
    rh = lax.broadcasted_iota(jnp.int32, (HBL, D), 0)
    ch = lax.broadcasted_iota(jnp.int32, (HBL, D), 1)
    headmask = None
    for h in range(H):
        cond = ((rh >= h * BL) & (rh < (h + 1) * BL)
                & (ch >= h * dh) & (ch < (h + 1) * dh))
        headmask = cond if headmask is None else (headmask | cond)
    headmask = jnp.where(headmask, 1.0, 0.0)                             # (H*BL, D)

    rs = lax.broadcasted_iota(jnp.int32, (HBL, HBL), 0)
    cs = lax.broadcasted_iota(jnp.int32, (HBL, HBL), 1)
    same = None
    for h in range(H):
        for b in range(B):
            s0 = h * BL + b * L
            cond = (rs >= s0) & (rs < s0 + L) & (cs >= s0) & (cs < s0 + L)
            same = cond if same is None else (same | cond)
    bias = jnp.where(same, 0.0, NEG)                                     # (H*BL, H*BL) float score bias

    ru = lax.broadcasted_iota(jnp.int32, (BL, HBL), 0)
    cu = lax.broadcasted_iota(jnp.int32, (BL, HBL), 1)
    unstk = None
    for h in range(H):
        cond = cu == (ru + h * BL)
        unstk = cond if unstk is None else (unstk | cond)
    unstk = jnp.where(unstk, 1.0, 0.0)                                   # (BL, H*BL) re-stack matrix

    # ============ BertAttention (self-attention + BertSelfOutput) ============
    def bert_attention(x_in, base, key_scale):
        w_qkv = w_ref[base:base + D, 0:3 * D]                            # [Wq | Wk | Wv]
        w_o = w_ref[base + D:base + 2 * D, 0:D]
        b_qkv = w_ref[base + 2 * D + 0:base + 2 * D + 1, 0:3 * D]
        b_o = w_ref[base + 2 * D + 1:base + 2 * D + 2, 0:D]
        ln_g = w_ref[base + 2 * D + 2:base + 2 * D + 3, 0:D]
        ln_b = w_ref[base + 2 * D + 3:base + 2 * D + 4, 0:D]

        qkv = jnp.dot(x_in, w_qkv, preferred_element_type=jnp.float32) + b_qkv   # (BL, 3D)
        q = qkv[:, 0:D]
        k = qkv[:, D:2 * D]
        v = qkv[:, 2 * D:3 * D]
        if key_scale is not None:
            # reference multiplies the pre-softmax scores along the key axis by
            # the gmm mask; scaling the keys is exactly equivalent.
            k = k * key_scale

        # stack all heads along rows -> ONE score matmul / softmax / ctx matmul.
        q_s = jnp.concatenate([q] * H, axis=0) * headmask                # (H*BL, D)
        k_s = jnp.concatenate([k] * H, axis=0)                           # (H*BL, D)
        v_s = jnp.concatenate([v] * H, axis=0) * headmask                # (H*BL, D)

        s = lax.dot_general(q_s, k_s, (((1,), (1,)), ((), ())),
                            preferred_element_type=jnp.float32) * inv_scale + bias
        s = s - jnp.max(s, axis=-1, keepdims=True)
        p = jnp.exp(s)
        p = p / jnp.sum(p, axis=-1, keepdims=True)                       # exact softmax
        ctx_s = jnp.dot(p, v_s, preferred_element_type=jnp.float32)      # (H*BL, D), head-masked cols
        ctx = jnp.dot(unstk, ctx_s, preferred_element_type=jnp.float32)  # (BL, D) re-stacked
        out = jnp.dot(ctx, w_o, preferred_element_type=jnp.float32) + b_o
        return _layernorm(out + x_in, ln_g, ln_b)

    o0 = bert_attention(x, ROW_L0, None)
    o1 = bert_attention(o0, ROW_L0 + LAYER_ROWS, kscale)
    out16 = 0.5 * (o0 + o1)                                              # == mean(cat([o0, o1], -1), -1)

    # ============ pack the four outputs into ONE lane-dense (BL, 128) slab ===
    aux1 = jnp.concatenate(
        [proposal, video, jnp.zeros((BL - BE - B, D), jnp.float32)], axis=0)        # (BL, D)
    aux2 = jnp.concatenate(
        [jnp.concatenate([masks_out, jnp.zeros((BE, D - L), jnp.float32)], axis=1),
         jnp.zeros((BL - BE, D), jnp.float32)], axis=0)                              # (BL, D)
    pad = jnp.zeros((BL, SLAB_COLS - 3 * D), jnp.float32)
    out_ref[...] = jnp.concatenate([out16, aux1, aux2, pad], axis=1)                 # (BL, 128)


# ---------------- wrapper ----------------
def gmm_block_forward(w_slab, input_tensor, attention_mask=None):
    # TODO(synk): additive attention_mask path not implemented (module is used with None here).
    assert attention_mask is None
    B, L, D = input_tensor.shape
    assert D == HIDDEN and L == MAP
    assert EVENT == HEADS, "gmm-mask broadcast in attn1 requires event_size == num_heads"
    # TODO(synk): reference calls self.generate_gauss_weight(...) with undefined
    # attrs/method; its result is unused, so it is skipped here.
    kernel = functools.partial(gmm_block_kernel, B=B, L=L, D=D, H=HEADS, E=EVENT)
    slab = pl.pallas_call(
        kernel,
        out_shape=jax.ShapeDtypeStruct((B * L, SLAB_COLS), jnp.float32),
    )(input_tensor.reshape(B * L, D), w_slab)
    BE = B * EVENT
    out = slab[:, 0:D].reshape(B, L, D)
    proposal_fea = slab[0:BE, D:2 * D].reshape(B, EVENT, D)
    video = slab[BE:BE + B, D:2 * D]
    v_gmm_masks = slab[0:BE, 2 * D:2 * D + L].reshape(B, EVENT, L)
    return out, v_gmm_masks, proposal_fea, video


# ---------------- parameter init (deterministic, synthetic) + packing ----------------
def init_params(key):
    D, E = HIDDEN, EVENT
    keys = jax.random.split(key, 8)

    def lin(k, i, o):
        return 0.02 * jax.random.normal(k, (i, o), jnp.float32)

    def vec(k, n):
        return 0.02 * jax.random.normal(k, (n,), jnp.float32)

    # fc_gauss: torch layout interleaves (center, width) per event -> de-interleave
    wg = lin(keys[2], D, 2 * E)
    bg = vec(keys[3], 2 * E)
    gauss_w = jnp.concatenate([wg[:, 0::2], wg[:, 1::2]], axis=1)   # (D, 2E) [centers | widths]
    gauss_b = jnp.concatenate([bg[0::2], bg[1::2]])                 # (2E,)

    def attn_layer(k):
        ks = jax.random.split(k, 8)
        return dict(
            w_qkv=jnp.concatenate([lin(ks[0], D, D), lin(ks[1], D, D), lin(ks[2], D, D)], axis=1),
            b_qkv=jnp.concatenate([vec(ks[3], D), vec(ks[4], D), vec(ks[5], D)]),
            w_o=lin(ks[6], D, D), b_o=vec(ks[7], D),
            ln_g=jnp.ones((D,), jnp.float32), ln_b=jnp.zeros((D,), jnp.float32))

    return {
        "c2v_w": lin(keys[0], D, D),
        "c2v_b": vec(keys[1], D),
        "c2v_ln_g": jnp.ones((D,), jnp.float32),
        "c2v_ln_b": jnp.zeros((D,), jnp.float32),
        "gauss_w": gauss_w,
        "gauss_b": gauss_b,
        "layers": [attn_layer(keys[4]), attn_layer(keys[5])],
    }


def pack_weights(p):
    """Pack all module weights into ONE lane-dense (N_W_ROWS, 128) slab (free XLA)."""
    D, E = HIDDEN, EVENT
    slab = jnp.zeros((N_W_ROWS, SLAB_COLS), jnp.float32)
    slab = slab.at[ROW_C2VW:ROW_C2VW + D, 0:D].set(p["c2v_w"])
    slab = slab.at[ROW_C2VV + 0, 0:D].set(p["c2v_ln_g"])
    slab = slab.at[ROW_C2VV + 1, 0:D].set(p["c2v_ln_b"])
    slab = slab.at[ROW_C2VV + 2, 0:D].set(p["c2v_b"])
    slab = slab.at[ROW_GW:ROW_GW + D, 0:2 * E].set(p["gauss_w"])
    slab = slab.at[ROW_GB, 0:2 * E].set(p["gauss_b"])
    for layer, lp in enumerate(p["layers"]):
        base = ROW_L0 + layer * LAYER_ROWS
        slab = slab.at[base:base + D, 0:3 * D].set(lp["w_qkv"])
        slab = slab.at[base + D:base + 2 * D, 0:D].set(lp["w_o"])
        slab = slab.at[base + 2 * D + 0, 0:3 * D].set(lp["b_qkv"])
        slab = slab.at[base + 2 * D + 1, 0:D].set(lp["b_o"])
        slab = slab.at[base + 2 * D + 2, 0:D].set(lp["ln_g"])
        slab = slab.at[base + 2 * D + 3, 0:D].set(lp["ln_b"])
    return slab


# ---------------- pure-JAX reference (mirrors the PyTorch forward) ----------------
def gmm_block_reference(p, x):
    B, L, D = x.shape
    H, E, dh = HEADS, EVENT, HEAD_DIM

    def layernorm(v, g, b):
        mu = jnp.mean(v, axis=-1, keepdims=True)
        var = jnp.mean((v - mu) ** 2, axis=-1, keepdims=True)
        return (v - mu) * lax.rsqrt(var + EPS) * g + b

    pooled = jnp.mean(x, axis=1)
    video = layernorm(pooled, p["c2v_ln_g"], p["c2v_ln_b"]) @ p["c2v_w"] + p["c2v_b"]

    cw = jax.nn.sigmoid(video @ p["gauss_w"] + p["gauss_b"])
    center = cw[:, :E]
    width = jnp.maximum(cw[:, E:], 0.01) / 9.0
    t = jnp.arange(L, dtype=jnp.float32) / (L - 1)
    wgt = (GAUSS_C / width[..., None]) * jnp.exp(
        -(t[None, None, :] - center[..., None]) ** 2 / (2.0 * width[..., None] ** 2))
    v_gmm_masks = wgt / jnp.max(wgt, axis=-1, keepdims=True)             # (B, E, L)
    proposal_fea = jnp.einsum('bel,bld->bed', v_gmm_masks, x)

    def attention(xin, lp, gmm):
        qkv = jnp.einsum('bld,de->ble', xin, lp["w_qkv"]) + lp["b_qkv"]
        q = qkv[..., 0:D].reshape(B, L, H, dh).transpose(0, 2, 1, 3)
        k = qkv[..., D:2 * D].reshape(B, L, H, dh).transpose(0, 2, 1, 3)
        v = qkv[..., 2 * D:3 * D].reshape(B, L, H, dh).transpose(0, 2, 1, 3)
        s = jnp.einsum('bhqd,bhkd->bhqk', q, k) / math.sqrt(dh)
        if gmm is not None:
            s = s * gmm[:, :, None, :]
        prob = jax.nn.softmax(s, axis=-1)
        ctx = jnp.einsum('bhqk,bhkd->bhqd', prob, v).transpose(0, 2, 1, 3).reshape(B, L, D)
        h_ = ctx @ lp["w_o"] + lp["b_o"] + xin
        return layernorm(h_, lp["ln_g"], lp["ln_b"])

    o0 = attention(x, p["layers"][0], None)
    o1 = attention(o0, p["layers"][1], v_gmm_masks)
    return 0.5 * (o0 + o1), v_gmm_masks, proposal_fea, video


# ---------------- main ----------------
if __name__ == "__main__":
    key = jax.random.PRNGKey(0)
    kx, kp = jax.random.split(key)
    x = jax.random.normal(kx, (BATCH, MAP, HIDDEN), jnp.float32)
    params = init_params(kp)
    w_slab = pack_weights(params)

    out, v_gmm_masks, proposal_fea, video = gmm_block_forward(w_slab, x)
    jax.block_until_ready((out, v_gmm_masks, proposal_fea, video))

    assert out.shape == (BATCH, MAP, HIDDEN)
    assert v_gmm_masks.shape == (BATCH, EVENT, MAP)
    assert proposal_fea.shape == (BATCH, EVENT, HIDDEN)
    assert video.shape == (BATCH, HIDDEN)

    # numerical check against a pure-JAX reference of the PyTorch forward
    ref = gmm_block_reference(params, x)
    for got, want in zip((out, v_gmm_masks, proposal_fea, video), ref):
        err = float(jnp.max(jnp.abs(got - want)))
        assert jnp.allclose(got, want, atol=1e-3, rtol=1e-3), err

    print("KERNEL_OK")
</pallas_src>

<mosaic_0001>
module attributes {stable_mosaic.version = 11 : i64} {
  func.func @gmm_block_kernel(%arg0: memref<16x32xf32, #tpu.memory_space<vmem>>, %arg1: memref<224x128xf32, #tpu.memory_space<vmem>>, %arg2: memref<16x128xf32, #tpu.memory_space<vmem>>) attributes {dimension_semantics = [], scalar_prefetch = 0 : i64, scratch_operands = 0 : i64, tpu.core_type = #tpu.core_type<tc>} {
    %c0 = arith.constant 0 : index
    %c0_0 = arith.constant 0 : index
    %0 = vector.load %arg0[%c0, %c0_0] : memref<16x32xf32, #tpu.memory_space<vmem>>, vector<16x32xf32>
    %1 = tpu.iota {dimensions = array<i32: 0>} : vector<2x16xi32>
    %2 = tpu.iota {dimensions = array<i32: 1>} : vector<2x16xi32>
    %c8_i32 = arith.constant 8 : i32
    %3 = vector.broadcast %c8_i32 : i32 to vector<2x16xi32>
    %4 = arith.muli %1, %3 : vector<2x16xi32>
    %5 = arith.cmpi sge, %2, %4 : vector<2x16xi32>
    %c1_i32 = arith.constant 1 : i32
    %6 = vector.broadcast %c1_i32 : i32 to vector<2x16xi32>
    %7 = arith.addi %1, %6 : vector<2x16xi32>
    %c8_i32_1 = arith.constant 8 : i32
    %8 = vector.broadcast %c8_i32_1 : i32 to vector<2x16xi32>
    %9 = arith.muli %7, %8 : vector<2x16xi32>
    %10 = arith.cmpi slt, %2, %9 : vector<2x16xi32>
    %11 = arith.andi %5, %10 : vector<2x16xi1>
    %cst = arith.constant 1.250000e-01 : f32
    %cst_2 = arith.constant 0.000000e+00 : f32
    %12 = vector.broadcast %cst : f32 to vector<2x16xf32>
    %13 = vector.broadcast %cst_2 : f32 to vector<2x16xf32>
    %14 = arith.select %11, %12, %13 : vector<2x16xi1>, vector<2x16xf32>
    %cst_3 = arith.constant dense<0.000000e+00> : vector<2x32xf32>
    %15 = tpu.matmul %14, %0, %cst_3 {dimension_numbers = #tpu.dot_dimension_numbers<[1], [0], [0], [1], [0, 0, 1, 1], [], []>} : vector<2x16xf32>, vector<16x32xf32>, vector<2x32xf32> -> vector<2x32xf32>
    %c32 = arith.constant 32 : index
    %c0_4 = arith.constant 0 : index
    %16 = vector.load %arg1[%c32, %c0_4] : memref<224x128xf32, #tpu.memory_space<vmem>>, vector<1x32xf32>
    %c33 = arith.constant 33 : index
    %c0_5 = arith.constant 0 : index
    %17 = vector.load %arg1[%c33, %c0_5] : memref<224x128xf32, #tpu.memory_space<vmem>>, vector<1x32xf32>
    %cst_6 = arith.constant dense<0.000000e+00> : vector<2xf32>
    %18 = vector.multi_reduction <add>, %15, %cst_6 [1] : vector<2x32xf32> to vector<2xf32>
    %19 = vector.shape_cast %18 : vector<2xf32> to vector<2x1xf32>
    %cst_7 = arith.constant 3.200000e+01 : f32
    %20 = vector.broadcast %cst_7 : f32 to vector<2x1xf32>
    %21 = arith.divf %19, %20 : vector<2x1xf32>
    %22 = vector.broadcast %21 : vector<2x1xf32> to vector<2x32xf32>
    %23 = arith.subf %15, %22 : vector<2x32xf32>
    %24 = arith.mulf %23, %23 : vector<2x32xf32>
    %cst_8 = arith.constant dense<0.000000e+00> : vector<2xf32>
    %25 = vector.multi_reduction <add>, %24, %cst_8 [1] : vector<2x32xf32> to vector<2xf32>
    %26 = vector.shape_cast %25 : vector<2xf32> to vector<2x1xf32>
    %cst_9 = arith.constant 3.200000e+01 : f32
    %27 = vector.broadcast %cst_9 : f32 to vector<2x1xf32>
    %28 = arith.divf %26, %27 : vector<2x1xf32>
    %29 = vector.broadcast %21 : vector<2x1xf32> to vector<2x32xf32>
    %30 = arith.subf %15, %29 : vector<2x32xf32>
    %cst_10 = arith.constant 9.99999974E-6 : f32
    %31 = vector.broadcast %cst_10 : f32 to vector<2x1xf32>
    %32 = arith.addf %28, %31 : vector<2x1xf32>
    %33 = math.rsqrt %32 : vector<2x1xf32>
    %34 = vector.broadcast %33 : vector<2x1xf32> to vector<2x32xf32>
    %35 = arith.mulf %30, %34 : vector<2x32xf32>
    %36 = vector.broadcast %16 : vector<1x32xf32> to vector<2x32xf32>
    %37 = arith.mulf %35, %36 : vector<2x32xf32>
    %38 = vector.broadcast %17 : vector<1x32xf32> to vector<2x32xf32>
    %39 = arith.addf %37, %38 : vector<2x32xf32>
    %c0_11 = arith.constant 0 : index
    %c0_12 = arith.constant 0 : index
    %40 = vector.load %arg1[%c0_11, %c0_12] : memref<224x128xf32, #tpu.memory_space<vmem>>, vector<32x32xf32>
    %cst_13 = arith.constant dense<0.000000e+00> : vector<2x32xf32>
    %41 = tpu.matmul %39, %40, %cst_13 {dimension_numbers = #tpu.dot_dimension_numbers<[1], [0], [0], [1], [0, 0, 1, 1], [], []>} : vector<2x32xf32>, vector<32x32xf32>, vector<2x32xf32> -> vector<2x32xf32>
    %c34 = arith.constant 34 : index
    %c0_14 = arith.constant 0 : index
    %42 = vector.load %arg1[%c34, %c0_14] : memref<224x128xf32, #tpu.memory_space<vmem>>, vector<1x32xf32>
    %43 = vector.broadcast %42 : vector<1x32xf32> to vector<2x32xf32>
    %44 = arith.addf %41, %43 : vector<2x32xf32>
    %c40 = arith.constant 40 : index
    %c0_15 = arith.constant 0 : index
    %45 = vector.load %arg1[%c40, %c0_15] : memref<224x128xf32, #tpu.memory_space<vmem>>, vector<32x8xf32>
    %cst_16 = arith.constant dense<0.000000e+00> : vector<2x8xf32>
    %46 = tpu.matmul %44, %45, %cst_16 {dimension_numbers = #tpu.dot_dimension_numbers<[1], [0], [0], [1], [0, 0, 1, 1], [], []>} : vector<2x32xf32>, vector<32x8xf32>, vector<2x8xf32> -> vector<2x8xf32>
    %c72 = arith.constant 72 : index
    %c0_17 = arith.constant 0 : index
    %47 = vector.load %arg1[%c72, %c0_17] : memref<224x128xf32, #tpu.memory_space<vmem>>, vector<1x8xf32>
    %48 = vector.broadcast %47 : vector<1x8xf32> to vector<2x8xf32>
    %49 = arith.addf %46, %48 : vector<2x8xf32>
    %50 = arith.negf %49 : vector<2x8xf32>
    %51 = math.exp %50 : vector<2x8xf32>
    %cst_18 = arith.constant 1.000000e+00 : f32
    %52 = vector.broadcast %cst_18 : f32 to vector<2x8xf32>
    %53 = arith.addf %52, %51 : vector<2x8xf32>
    %54 = arith.divf %52, %53 : vector<2x8xf32>
    %55 = tpu.iota {dimensions = array<i32: 0>} : vector<8x1xi32>
    %cst_19 = arith.constant 0.000000e+00 : f32
    %56 = vector.broadcast %cst_19 : f32 to vector<8x1xf32>
    %cst_20 = arith.constant 0.000000e+00 : f32
    %57 = vector.broadcast %cst_20 : f32 to vector<8x1xf32>
    %c0_i32 = arith.constant 0 : i32
    %58 = vector.broadcast %c0_i32 : i32 to vector<8x1xi32>
    %59 = arith.cmpi eq, %55, %58 : vector<8x1xi32>
    %60 = vector.extract_strided_slice %54 {offsets = [0, 0], sizes = [1, 1], strides = [1, 1]} : vector<2x8xf32> to vector<1x1xf32>
    %61 = vector.shape_cast %60 : vector<1x1xf32> to vector<1x1xf32>
    %62 = vector.broadcast %61 : vector<1x1xf32> to vector<8x1xf32>
    %63 = arith.select %59, %62, %56 : vector<8x1xi1>, vector<8x1xf32>
    %64 = vector.extract_strided_slice %54 {offsets = [0, 4], sizes = [1, 1], strides = [1, 1]} : vector<2x8xf32> to vector<1x1xf32>
    %65 = vector.shape_cast %64 : vector<1x1xf32> to vector<1x1xf32>
    %66 = vector.broadcast %65 : vector<1x1xf32> to vector<8x1xf32>
    %67 = arith.select %59, %66, %57 : vector<8x1xi1>, vector<8x1xf32>
    %c1_i32_21 = arith.constant 1 : i32
    %68 = vector.broadcast %c1_i32_21 : i32 to vector<8x1xi32>
    %69 = arith.cmpi eq, %55, %68 : vector<8x1xi32>
    %70 = vector.extract_strided_slice %54 {offsets = [0, 1], sizes = [1, 1], strides = [1, 1]} : vector<2x8xf32> to vector<1x1xf32>
    %71 = vector.shape_cast %70 : vector<1x1xf32> to vector<1x1xf32>
    %72 = vector.broadcast %71 : vector<1x1xf32> to vector<8x1xf32>
    %73 = arith.select %69, %72, %63 : vector<8x1xi1>, vector<8x1xf32>
    %74 = vector.extract_strided_slice %54 {offsets = [0, 5], sizes = [1, 1], strides = [1, 1]} : vector<2x8xf32> to vector<1x1xf32>
    %75 = vector.shape_cast %74 : vector<1x1xf32> to vector<1x1xf32>
    %76 = vector.broadcast %75 : vector<1x1xf32> to vector<8x1xf32>
    %77 = arith.select %69, %76, %67 : vector<8x1xi1>, vector<8x1xf32>
    %c2_i32 = arith.constant 2 : i32
    %78 = vector.broadcast %c2_i32 : i32 to vector<8x1xi32>
    %79 = arith.cmpi eq, %55, %78 : vector<8x1xi32>
    %80 = vector.extract_strided_slice %54 {offsets = [0, 2], sizes = [1, 1], strides = [1, 1]} : vector<2x8xf32> to vector<1x1xf32>
    %81 = vector.shape_cast %80 : vector<1x1xf32> to vector<1x1xf32>
    %82 = vector.broadcast %81 : vector<1x1xf32> to vector<8x1xf32>
    %83 = arith.select %79, %82, %73 : vector<8x1xi1>, vector<8x1xf32>
    %84 = vector.extract_strided_slice %54 {offsets = [0, 6], sizes = [1, 1], strides = [1, 1]} : vector<2x8xf32> to vector<1x1xf32>
    %85 = vector.shape_cast %84 : vector<1x1xf32> to vector<1x1xf32>
    %86 = vector.broadcast %85 : vector<1x1xf32> to vector<8x1xf32>
    %87 = arith.select %79, %86, %77 : vector<8x1xi1>, vector<8x1xf32>
    %c3_i32 = arith.constant 3 : i32
    %88 = vector.broadcast %c3_i32 : i32 to vector<8x1xi32>
    %89 = arith.cmpi eq, %55, %88 : vector<8x1xi32>
    %90 = vector.extract_strided_slice %54 {offsets = [0, 3], sizes = [1, 1], strides = [1, 1]} : vector<2x8xf32> to vector<1x1xf32>
    %91 = vector.shape_cast %90 : vector<1x1xf32> to vector<1x1xf32>
    %92 = vector.broadcast %91 : vector<1x1xf32> to vector<8x1xf32>
    %93 = arith.select %89, %92, %83 : vector<8x1xi1>, vector<8x1xf32>
    %94 = vector.extract_strided_slice %54 {offsets = [0, 7], sizes = [1, 1], strides = [1, 1]} : vector<2x8xf32> to vector<1x1xf32>
    %95 = vector.shape_cast %94 : vector<1x1xf32> to vector<1x1xf32>
    %96 = vector.broadcast %95 : vector<1x1xf32> to vector<8x1xf32>
    %97 = arith.select %89, %96, %87 : vector<8x1xi1>, vector<8x1xf32>
    %c4_i32 = arith.constant 4 : i32
    %98 = vector.broadcast %c4_i32 : i32 to vector<8x1xi32>
    %99 = arith.cmpi eq, %55, %98 : vector<8x1xi32>
    %100 = vector.extract_strided_slice %54 {offsets = [1, 0], sizes = [1, 1], strides = [1, 1]} : vector<2x8xf32> to vector<1x1xf32>
    %101 = vector.shape_cast %100 : vector<1x1xf32> to vector<1x1xf32>
    %102 = vector.broadcast %101 : vector<1x1xf32> to vector<8x1xf32>
    %103 = arith.select %99, %102, %93 : vector<8x1xi1>, vector<8x1xf32>
    %104 = vector.extract_strided_slice %54 {offsets = [1, 4], sizes = [1, 1], strides = [1, 1]} : vector<2x8xf32> to vector<1x1xf32>
    %105 = vector.shape_cast %104 : vector<1x1xf32> to vector<1x1xf32>
    %106 = vector.broadcast %105 : vector<1x1xf32> to vector<8x1xf32>
    %107 = arith.select %99, %106, %97 : vector<8x1xi1>, vector<8x1xf32>
    %c5_i32 = arith.constant 5 : i32
    %108 = vector.broadcast %c5_i32 : i32 to vector<8x1xi32>
    %109 = arith.cmpi eq, %55, %108 : vector<8x1xi32>
    %110 = vector.extract_strided_slice %54 {offsets = [1, 1], sizes = [1, 1], strides = [1, 1]} : vector<2x8xf32> to vector<1x1xf32>
    %111 = vector.shape_cast %110 : vector<1x1xf32> to vector<1x1xf32>
    %112 = vector.broadcast %111 : vector<1x1xf32> to vector<8x1xf32>
    %113 = arith.select %109, %112, %103 : vector<8x1xi1>, vector<8x1xf32>
    %114 = vector.extract_strided_slice %54 {offsets = [1, 5], sizes = [1, 1], strides = [1, 1]} : vector<2x8xf32> to vector<1x1xf32>
    %115 = vector.shape_cast %114 : vector<1x1xf32> to vector<1x1xf32>
    %116 = vector.broadcast %115 : vector<1x1xf32> to vector<8x1xf32>
    %117 = arith.select %109, %116, %107 : vector<8x1xi1>, vector<8x1xf32>
    %c6_i32 = arith.constant 6 : i32
    %118 = vector.broadcast %c6_i32 : i32 to vector<8x1xi32>
    %119 = arith.cmpi eq, %55, %118 : vector<8x1xi32>
    %120 = vector.extract_strided_slice %54 {offsets = [1, 2], sizes = [1, 1], strides = [1, 1]} : vector<2x8xf32> to vector<1x1xf32>
    %121 = vector.shape_cast %120 : vector<1x1xf32> to vector<1x1xf32>
    %122 = vector.broadcast %121 : vector<1x1xf32> to vector<8x1xf32>
    %123 = arith.select %119, %122, %113 : vector<8x1xi1>, vector<8x1xf32>
    %124 = vector.extract_strided_slice %54 {offsets = [1, 6], sizes = [1, 1], strides = [1, 1]} : vector<2x8xf32> to vector<1x1xf32>
    %125 = vector.shape_cast %124 : vector<1x1xf32> to vector<1x1xf32>
    %126 = vector.broadcast %125 : vector<1x1xf32> to vector<8x1xf32>
    %127 = arith.select %119, %126, %117 : vector<8x1xi1>, vector<8x1xf32>
    %c7_i32 = arith.constant 7 : i32
    %128 = vector.broadcast %c7_i32 : i32 to vector<8x1xi32>
    %129 = arith.cmpi eq, %55, %128 : vector<8x1xi32>
    %130 = vector.extract_strided_slice %54 {offsets = [1, 3], sizes = [1, 1], strides = [1, 1]} : vector<2x8xf32> to vector<1x1xf32>
    %131 = vector.shape_cast %130 : vector<1x1xf32> to vector<1x1xf32>
    %132 = vector.broadcast %131 : vector<1x1xf32> to vector<8x1xf32>
    %133 = arith.select %129, %132, %123 : vector<8x1xi1>, vector<8x1xf32>
    %134 = vector.extract_strided_slice %54 {offsets = [1, 7], sizes = [1, 1], strides = [1, 1]} : vector<2x8xf32> to vector<1x1xf32>
    %135 = vector.shape_cast %134 : vector<1x1xf32> to vector<1x1xf32>
    %136 = vector.broadcast %135 : vector<1x1xf32> to vector<8x1xf32>
    %137 = arith.select %129, %136, %127 : vector<8x1xi1>, vector<8x1xf32>
    %cst_22 = arith.constant 0.00999999977 : f32
    %138 = vector.broadcast %cst_22 : f32 to vector<8x1xf32>
    %139 = arith.maximumf %137, %138 : vector<8x1xf32>
    %cst_23 = arith.constant 9.000000e+00 : f32
    %140 = vector.broadcast %cst_23 : f32 to vector<8x1xf32>
    %141 = arith.divf %139, %140 : vector<8x1xf32>
    %142 = tpu.iota {dimensions = array<i32: 0>} : vector<8x16xi32>
    %143 = tpu.iota {dimensions = array<i32: 1>} : vector<8x16xi32>
    %c8_i32_24 = arith.constant 8 : i32
    %144 = vector.broadcast %c8_i32_24 : i32 to vector<8x16xi32>
    %145 = arith.cmpi sge, %143, %144 : vector<8x16xi32>
    %c8_i32_25 = arith.constant 8 : i32
    %146 = vector.broadcast %c8_i32_25 : i32 to vector<8x16xi32>
    %147 = arith.subi %143, %146 : vector<8x16xi32>
    %148 = arith.select %145, %147, %143 : vector<8x16xi1>, vector<8x16xi32>
    %149 = arith.sitofp %148 : vector<8x16xi32> to vector<8x16xf32>
    %cst_26 = arith.constant 7.000000e+00 : f32
    %150 = vector.broadcast %cst_26 : f32 to vector<8x16xf32>
    %151 = arith.divf %149, %150 : vector<8x16xf32>
    %152 = vector.broadcast %133 : vector<8x1xf32> to vector<8x16xf32>
    %153 = arith.subf %151, %152 : vector<8x16xf32>
    %154 = arith.mulf %153, %153 : vector<8x16xf32>
    %cst_27 = arith.constant 0.000000e+00 : f32
    %155 = vector.broadcast %cst_27 : f32 to vector<8x16xf32>
    %156 = arith.subf %155, %154 : vector<8x16xf32>
    %cst_28 = arith.constant 2.000000e+00 : f32
    %157 = vector.broadcast %cst_28 : f32 to vector<8x1xf32>
    %158 = arith.mulf %157, %141 : vector<8x1xf32>
    %159 = arith.mulf %158, %141 : vector<8x1xf32>
    %160 = vector.broadcast %159 : vector<8x1xf32> to vector<8x16xf32>
    %161 = arith.divf %156, %160 : vector<8x16xf32>
    %162 = math.exp %161 : vector<8x16xf32>
    %cst_29 = arith.constant dense<0xFF800000> : vector<8xf32>
    %163 = vector.multi_reduction <maximumf>, %162, %cst_29 [1] : vector<8x16xf32> to vector<8xf32>
    %164 = vector.shape_cast %163 : vector<8xf32> to vector<8x1xf32>
    %165 = vector.broadcast %164 : vector<8x1xf32> to vector<8x16xf32>
    %166 = arith.divf %162, %165 : vector<8x16xf32>
    %167 = vector.extract_strided_slice %166 {offsets = [0, 0], sizes = [8, 8], strides = [1, 1]} : vector<8x16xf32> to vector<8x8xf32>
    %c0_i32_30 = arith.constant 0 : i32
    %168 = vector.broadcast %c0_i32_30 : i32 to vector<8x16xi32>
    %169 = arith.cmpi sge, %142, %168 : vector<8x16xi32>
    %c4_i32_31 = arith.constant 4 : i32
    %170 = vector.broadcast %c4_i32_31 : i32 to vector<8x16xi32>
    %171 = arith.cmpi slt, %142, %170 : vector<8x16xi32>
    %172 = arith.andi %169, %171 : vector<8x16xi1>
    %c0_i32_32 = arith.constant 0 : i32
    %173 = vector.broadcast %c0_i32_32 : i32 to vector<8x16xi32>
    %174 = arith.cmpi sge, %143, %173 : vector<8x16xi32>
    %175 = arith.andi %172, %174 : vector<8x16xi1>
    %c8_i32_33 = arith.constant 8 : i32
    %176 = vector.broadcast %c8_i32_33 : i32 to vector<8x16xi32>
    %177 = arith.cmpi slt, %143, %176 : vector<8x16xi32>
    %178 = arith.andi %175, %177 : vector<8x16xi1>
    %c4_i32_34 = arith.constant 4 : i32
    %179 = vector.broadcast %c4_i32_34 : i32 to vector<8x16xi32>
    %180 = arith.cmpi sge, %142, %179 : vector<8x16xi32>
    %c8_i32_35 = arith.constant 8 : i32
    %181 = vector.broadcast %c8_i32_35 : i32 to vector<8x16xi32>
    %182 = arith.cmpi slt, %142, %181 : vector<8x16xi32>
    %183 = arith.andi %180, %182 : vector<8x16xi1>
    %c8_i32_36 = arith.constant 8 : i32
    %184 = vector.broadcast %c8_i32_36 : i32 to vector<8x16xi32>
    %185 = arith.cmpi sge, %143, %184 : vector<8x16xi32>
    %186 = arith.andi %183, %185 : vector<8x16xi1>
    %c16_i32 = arith.constant 16 : i32
    %187 = vector.broadcast %c16_i32 : i32 to vector<8x16xi32>
    %188 = arith.cmpi slt, %143, %187 : vector<8x16xi32>
    %189 = arith.andi %186, %188 : vector<8x16xi1>
    %190 = arith.ori %178, %189 : vector<8x16xi1>
    %cst_37 = arith.constant 0.000000e+00 : f32
    %191 = vector.broadcast %cst_37 : f32 to vector<8x16xf32>
    %192 = arith.select %190, %166, %191 : vector<8x16xi1>, vector<8x16xf32>
    %cst_38 = arith.constant dense<0.000000e+00> : vector<8x32xf32>
    %193 = tpu.matmul %192, %0, %cst_38 {dimension_numbers = #tpu.dot_dimension_numbers<[1], [0], [0], [1], [0, 0, 1, 1], [], []>} : vector<8x16xf32>, vector<16x32xf32>, vector<8x32xf32> -> vector<8x32xf32>
    %194 = tpu.iota {dimensions = array<i32: 0>} : vector<16x1xi32>
    %195 = vector.extract_strided_slice %54 {offsets = [0, 0], sizes = [2, 4], strides = [1, 1]} : vector<2x8xf32> to vector<2x4xf32>
    %196 = vector.extract_strided_slice %54 {offsets = [0, 4], sizes = [2, 4], strides = [1, 1]} : vector<2x8xf32> to vector<2x4xf32>
    %cst_39 = arith.constant 0.000000e+00 : f32
    %197 = vector.broadcast %cst_39 : f32 to vector<16x4xf32>
    %cst_40 = arith.constant 0.000000e+00 : f32
    %198 = vector.broadcast %cst_40 : f32 to vector<16x4xf32>
    %c0_i32_41 = arith.constant 0 : i32
    %199 = vector.broadcast %c0_i32_41 : i32 to vector<16x1xi32>
    %200 = arith.cmpi sge, %194, %199 : vector<16x1xi32>
    %c8_i32_42 = arith.constant 8 : i32
    %201 = vector.broadcast %c8_i32_42 : i32 to vector<16x1xi32>
    %202 = arith.cmpi slt, %194, %201 : vector<16x1xi32>
    %203 = arith.andi %200, %202 : vector<16x1xi1>
    %204 = vector.extract_strided_slice %195 {offsets = [0, 0], sizes = [1, 4], strides = [1, 1]} : vector<2x4xf32> to vector<1x4xf32>
    %205 = vector.shape_cast %203 : vector<16x1xi1> to vector<16x1xi1>
    %206 = vector.broadcast %205 : vector<16x1xi1> to vector<16x4xi1>
    %207 = vector.shape_cast %204 : vector<1x4xf32> to vector<1x4xf32>
    %208 = vector.broadcast %207 : vector<1x4xf32> to vector<16x4xf32>
    %209 = arith.select %206, %208, %197 : vector<16x4xi1>, vector<16x4xf32>
    %210 = vector.extract_strided_slice %196 {offsets = [0, 0], sizes = [1, 4], strides = [1, 1]} : vector<2x4xf32> to vector<1x4xf32>
    %211 = vector.shape_cast %203 : vector<16x1xi1> to vector<16x1xi1>
    %212 = vector.broadcast %211 : vector<16x1xi1> to vector<16x4xi1>
    %213 = vector.shape_cast %210 : vector<1x4xf32> to vector<1x4xf32>
    %214 = vector.broadcast %213 : vector<1x4xf32> to vector<16x4xf32>
    %215 = arith.select %212, %214, %198 : vector<16x4xi1>, vector<16x4xf32>
    %c8_i32_43 = arith.constant 8 : i32
    %216 = vector.broadcast %c8_i32_43 : i32 to vector<16x1xi32>
    %217 = arith.cmpi sge, %194, %216 : vector<16x1xi32>
    %c16_i32_44 = arith.constant 16 : i32
    %218 = vector.broadcast %c16_i32_44 : i32 to vector<16x1xi32>
    %219 = arith.cmpi slt, %194, %218 : vector<16x1xi32>
    %220 = arith.andi %217, %219 : vector<16x1xi1>
    %221 = vector.extract_strided_slice %195 {offsets = [1, 0], sizes = [1, 4], strides = [1, 1]} : vector<2x4xf32> to vector<1x4xf32>
    %222 = vector.shape_cast %220 : vector<16x1xi1> to vector<16x1xi1>
    %223 = vector.broadcast %222 : vector<16x1xi1> to vector<16x4xi1>
    %224 = vector.shape_cast %221 : vector<1x4xf32> to vector<1x4xf32>
    %225 = vector.broadcast %224 : vector<1x4xf32> to vector<16x4xf32>
    %226 = arith.select %223, %225, %209 : vector<16x4xi1>, vector<16x4xf32>
    %227 = vector.extract_strided_slice %196 {offsets = [1, 0], sizes = [1, 4], strides = [1, 1]} : vector<2x4xf32> to vector<1x4xf32>
    %228 = vector.shape_cast %220 : vector<16x1xi1> to vector<16x1xi1>
    %229 = vector.broadcast %228 : vector<16x1xi1> to vector<16x4xi1>
    %230 = vector.shape_cast %227 : vector<1x4xf32> to vector<1x4xf32>
    %231 = vector.broadcast %230 : vector<1x4xf32> to vector<16x4xf32>
    %232 = arith.select %229, %231, %215 : vector<16x4xi1>, vector<16x4xf32>
    %c8_i32_45 = arith.constant 8 : i32
    %233 = vector.broadcast %c8_i32_45 : i32 to vector<16x1xi32>
    %234 = arith.subi %194, %233 : vector<16x1xi32>
    %235 = arith.select %220, %234, %194 : vector<16x1xi1>, vector<16x1xi32>
    %cst_46 = arith.constant 0.00999999977 : f32
    %236 = vector.broadcast %cst_46 : f32 to vector<16x4xf32>
    %237 = arith.maximumf %232, %236 : vector<16x4xf32>
    %cst_47 = arith.constant 9.000000e+00 : f32
    %238 = vector.broadcast %cst_47 : f32 to vector<16x4xf32>
    %239 = arith.divf %237, %238 : vector<16x4xf32>
    %240 = arith.sitofp %235 : vector<16x1xi32> to vector<16x1xf32>
    %cst_48 = arith.constant 7.000000e+00 : f32
    %241 = vector.broadcast %cst_48 : f32 to vector<16x1xf32>
    %242 = arith.divf %240, %241 : vector<16x1xf32>
    %243 = vector.broadcast %242 : vector<16x1xf32> to vector<16x4xf32>
    %244 = arith.subf %243, %226 : vector<16x4xf32>
    %245 = arith.mulf %244, %244 : vector<16x4xf32>
    %cst_49 = arith.constant 0.000000e+00 : f32
    %246 = vector.broadcast %cst_49 : f32 to vector<16x4xf32>
    %247 = arith.subf %246, %245 : vector<16x4xf32>
    %cst_50 = arith.constant 2.000000e+00 : f32
    %248 = vector.broadcast %cst_50 : f32 to vector<16x4xf32>
    %249 = arith.mulf %248, %239 : vector<16x4xf32>
    %250 = arith.mulf %249, %239 : vector<16x4xf32>
    %251 = arith.divf %247, %250 : vector<16x4xf32>
    %252 = math.exp %251 : vector<16x4xf32>
    %cst_51 = arith.constant 1.000000e+00 : f32
    %253 = vector.broadcast %cst_51 : f32 to vector<16x4xf32>
    %c0_i32_52 = arith.constant 0 : i32
    %254 = vector.broadcast %c0_i32_52 : i32 to vector<16x1xi32>
    %255 = arith.cmpi sge, %194, %254 : vector<16x1xi32>
    %c8_i32_53 = arith.constant 8 : i32
    %256 = vector.broadcast %c8_i32_53 : i32 to vector<16x1xi32>
    %257 = arith.cmpi slt, %194, %256 : vector<16x1xi32>
    %258 = arith.andi %255, %257 : vector<16x1xi1>
    %259 = vector.extract_strided_slice %252 {offsets = [0, 0], sizes = [8, 4], strides = [1, 1]} : vector<16x4xf32> to vector<8x4xf32>
    %cst_54 = arith.constant dense<0xFF800000> : vector<4xf32>
    %260 = vector.multi_reduction <maximumf>, %259, %cst_54 [0] : vector<8x4xf32> to vector<4xf32>
    %261 = vector.shape_cast %260 : vector<4xf32> to vector<1x4xf32>
    %262 = vector.shape_cast %258 : vector<16x1xi1> to vector<16x1xi1>
    %263 = vector.broadcast %262 : vector<16x1xi1> to vector<16x4xi1>
    %264 = vector.shape_cast %261 : vector<1x4xf32> to vector<1x4xf32>
    %265 = vector.broadcast %264 : vector<1x4xf32> to vector<16x4xf32>
    %266 = arith.select %263, %265, %253 : vector<16x4xi1>, vector<16x4xf32>
    %c8_i32_55 = arith.constant 8 : i32
    %267 = vector.broadcast %c8_i32_55 : i32 to vector<16x1xi32>
    %268 = arith.cmpi sge, %194, %267 : vector<16x1xi32>
    %c16_i32_56 = arith.constant 16 : i32
    %269 = vector.broadcast %c16_i32_56 : i32 to vector<16x1xi32>
    %270 = arith.cmpi slt, %194, %269 : vector<16x1xi32>
    %271 = arith.andi %268, %270 : vector<16x1xi1>
    %272 = vector.extract_strided_slice %252 {offsets = [8, 0], sizes = [8, 4], strides = [1, 1]} : vector<16x4xf32> to vector<8x4xf32>
    %cst_57 = arith.constant dense<0xFF800000> : vector<4xf32>
    %273 = vector.multi_reduction <maximumf>, %272, %cst_57 [0] : vector<8x4xf32> to vector<4xf32>
    %274 = vector.shape_cast %273 : vector<4xf32> to vector<1x4xf32>
    %275 = vector.shape_cast %271 : vector<16x1xi1> to vector<16x1xi1>
    %276 = vector.broadcast %275 : vector<16x1xi1> to vector<16x4xi1>
    %277 = vector.shape_cast %274 : vector<1x4xf32> to vector<1x4xf32>
    %278 = vector.broadcast %277 : vector<1x4xf32> to vector<16x4xf32>
    %279 = arith.select %276, %278, %266 : vector<16x4xi1>, vector<16x4xf32>
    %280 = arith.divf %252, %279 : vector<16x4xf32>
    %281 = tpu.iota {dimensions = array<i32: 0>} : vector<4x32xi32>
    %282 = tpu.iota {dimensions = array<i32: 1>} : vector<4x32xi32>
    %c8_i32_58 = arith.constant 8 : i32
    %283 = vector.broadcast %c8_i32_58 : i32 to vector<4x32xi32>
    %284 = arith.muli %281, %283 : vector<4x32xi32>
    %285 = arith.cmpi sge, %282, %284 : vector<4x32xi32>
    %c1_i32_59 = arith.constant 1 : i32
    %286 = vector.broadcast %c1_i32_59 : i32 to vector<4x32xi32>
    %287 = arith.addi %281, %286 : vector<4x32xi32>
    %c8_i32_60 = arith.constant 8 : i32
    %288 = vector.broadcast %c8_i32_60 : i32 to vector<4x32xi32>
    %289 = arith.muli %287, %288 : vector<4x32xi32>
    %290 = arith.cmpi slt, %282, %289 : vector<4x32xi32>
    %291 = arith.andi %285, %290 : vector<4x32xi1>
    %cst_61 = arith.constant 1.000000e+00 : f32
    %cst_62 = arith.constant 0.000000e+00 : f32
    %292 = vector.broadcast %cst_61 : f32 to vector<4x32xf32>
    %293 = vector.broadcast %cst_62 : f32 to vector<4x32xf32>
    %294 = arith.select %291, %292, %293 : vector<4x32xi1>, vector<4x32xf32>
    %cst_63 = arith.constant dense<0.000000e+00> : vector<16x32xf32>
    %295 = tpu.matmul %280, %294, %cst_63 {dimension_numbers = #tpu.dot_dimension_numbers<[1], [0], [0], [1], [0, 0, 1, 1], [], []>} : vector<16x4xf32>, vector<4x32xf32>, vector<16x32xf32> -> vector<16x32xf32>
    %296 = tpu.iota {dimensions = array<i32: 0>} : vector<64x32xi32>
    %297 = tpu.iota {dimensions = array<i32: 1>} : vector<64x32xi32>
    %c0_i32_64 = arith.constant 0 : i32
    %298 = vector.broadcast %c0_i32_64 : i32 to vector<64x32xi32>
    %299 = arith.cmpi sge, %296, %298 : vector<64x32xi32>
    %c16_i32_65 = arith.constant 16 : i32
    %300 = vector.broadcast %c16_i32_65 : i32 to vector<64x32xi32>
    %301 = arith.cmpi slt, %296, %300 : vector<64x32xi32>
    %302 = arith.andi %299, %301 : vector<64x32xi1>
    %c0_i32_66 = arith.constant 0 : i32
    %303 = vector.broadcast %c0_i32_66 : i32 to vector<64x32xi32>
    %304 = arith.cmpi sge, %297, %303 : vector<64x32xi32>
    %305 = arith.andi %302, %304 : vector<64x32xi1>
    %c8_i32_67 = arith.constant 8 : i32
    %306 = vector.broadcast %c8_i32_67 : i32 to vector<64x32xi32>
    %307 = arith.cmpi slt, %297, %306 : vector<64x32xi32>
    %308 = arith.andi %305, %307 : vector<64x32xi1>
    %c16_i32_68 = arith.constant 16 : i32
    %309 = vector.broadcast %c16_i32_68 : i32 to vector<64x32xi32>
    %310 = arith.cmpi sge, %296, %309 : vector<64x32xi32>
    %c32_i32 = arith.constant 32 : i32
    %311 = vector.broadcast %c32_i32 : i32 to vector<64x32xi32>
    %312 = arith.cmpi slt, %296, %311 : vector<64x32xi32>
    %313 = arith.andi %310, %312 : vector<64x32xi1>
    %c8_i32_69 = arith.constant 8 : i32
    %314 = vector.broadcast %c8_i32_69 : i32 to vector<64x32xi32>
    %315 = arith.cmpi sge, %297, %314 : vector<64x32xi32>
    %316 = arith.andi %313, %315 : vector<64x32xi1>
    %c16_i32_70 = arith.constant 16 : i32
    %317 = vector.broadcast %c16_i32_70 : i32 to vector<64x32xi32>
    %318 = arith.cmpi slt, %297, %317 : vector<64x32xi32>
    %319 = arith.andi %316, %318 : vector<64x32xi1>
    %320 = arith.ori %308, %319 : vector<64x32xi1>
    %c32_i32_71 = arith.constant 32 : i32
    %321 = vector.broadcast %c32_i32_71 : i32 to vector<64x32xi32>
    %322 = arith.cmpi sge, %296, %321 : vector<64x32xi32>
    %c48_i32 = arith.constant 48 : i32
    %323 = vector.broadcast %c48_i32 : i32 to vector<64x32xi32>
    %324 = arith.cmpi slt, %296, %323 : vector<64x32xi32>
    %325 = arith.andi %322, %324 : vector<64x32xi1>
    %c16_i32_72 = arith.constant 16 : i32
    %326 = vector.broadcast %c16_i32_72 : i32 to vector<64x32xi32>
    %327 = arith.cmpi sge, %297, %326 : vector<64x32xi32>
    %328 = arith.andi %325, %327 : vector<64x32xi1>
    %c24_i32 = arith.constant 24 : i32
    %329 = vector.broadcast %c24_i32 : i32 to vector<64x32xi32>
    %330 = arith.cmpi slt, %297, %329 : vector<64x32xi32>
    %331 = arith.andi %328, %330 : vector<64x32xi1>
    %332 = arith.ori %320, %331 : vector<64x32xi1>
    %c48_i32_73 = arith.constant 48 : i32
    %333 = vector.broadcast %c48_i32_73 : i32 to vector<64x32xi32>
    %334 = arith.cmpi sge, %296, %333 : vector<64x32xi32>
    %c64_i32 = arith.constant 64 : i32
    %335 = vector.broadcast %c64_i32 : i32 to vector<64x32xi32>
    %336 = arith.cmpi slt, %296, %335 : vector<64x32xi32>
    %337 = arith.andi %334, %336 : vector<64x32xi1>
    %c24_i32_74 = arith.constant 24 : i32
    %338 = vector.broadcast %c24_i32_74 : i32 to vector<64x32xi32>
    %339 = arith.cmpi sge, %297, %338 : vector<64x32xi32>
    %340 = arith.andi %337, %339 : vector<64x32xi1>
    %c32_i32_75 = arith.constant 32 : i32
    %341 = vector.broadcast %c32_i32_75 : i32 to vector<64x32xi32>
    %342 = arith.cmpi slt, %297, %341 : vector<64x32xi32>
    %343 = arith.andi %340, %342 : vector<64x32xi1>
    %344 = arith.ori %332, %343 : vector<64x32xi1>
    %cst_76 = arith.constant 1.000000e+00 : f32
    %cst_77 = arith.constant 0.000000e+00 : f32
    %345 = vector.broadcast %cst_76 : f32 to vector<64x32xf32>
    %346 = vector.broadcast %cst_77 : f32 to vector<64x32xf32>
    %347 = arith.select %344, %345, %346 : vector<64x32xi1>, vector<64x32xf32>
    %348 = tpu.iota {dimensions = array<i32: 0>} : vector<64x64xi32>
    %349 = tpu.iota {dimensions = array<i32: 1>} : vector<64x64xi32>
    %c0_i32_78 = arith.constant 0 : i32
    %350 = vector.broadcast %c0_i32_78 : i32 to vector<64x64xi32>
    %351 = arith.cmpi sge, %348, %350 : vector<64x64xi32>
    %c8_i32_79 = arith.constant 8 : i32
    %352 = vector.broadcast %c8_i32_79 : i32 to vector<64x64xi32>
    %353 = arith.cmpi slt, %348, %352 : vector<64x64xi32>
    %354 = arith.andi %351, %353 : vector<64x64xi1>
    %c0_i32_80 = arith.constant 0 : i32
    %355 = vector.broadcast %c0_i32_80 : i32 to vector<64x64xi32>
    %356 = arith.cmpi sge, %349, %355 : vector<64x64xi32>
    %357 = arith.andi %354, %356 : vector<64x64xi1>
    %c8_i32_81 = arith.constant 8 : i32
    %358 = vector.broadcast %c8_i32_81 : i32 to vector<64x64xi32>
    %359 = arith.cmpi slt, %349, %358 : vector<64x64xi32>
    %360 = arith.andi %357, %359 : vector<64x64xi1>
    %c8_i32_82 = arith.constant 8 : i32
    %361 = vector.broadcast %c8_i32_82 : i32 to vector<64x64xi32>
    %362 = arith.cmpi sge, %348, %361 : vector<64x64xi32>
    %c16_i32_83 = arith.constant 16 : i32
    %363 = vector.broadcast %c16_i32_83 : i32 to vector<64x64xi32>
    %364 = arith.cmpi slt, %348, %363 : vector<64x64xi32>
    %365 = arith.andi %362, %364 : vector<64x64xi1>
    %c8_i32_84 = arith.constant 8 : i32
    %366 = vector.broadcast %c8_i32_84 : i32 to vector<64x64xi32>
    %367 = arith.cmpi sge, %349, %366 : vector<64x64xi32>
    %368 = arith.andi %365, %367 : vector<64x64xi1>
    %c16_i32_85 = arith.constant 16 : i32
    %369 = vector.broadcast %c16_i32_85 : i32 to vector<64x64xi32>
    %370 = arith.cmpi slt, %349, %369 : vector<64x64xi32>
    %371 = arith.andi %368, %370 : vector<64x64xi1>
    %372 = arith.ori %360, %371 : vector<64x64xi1>
    %c16_i32_86 = arith.constant 16 : i32
    %373 = vector.broadcast %c16_i32_86 : i32 to vector<64x64xi32>
    %374 = arith.cmpi sge, %348, %373 : vector<64x64xi32>
    %c24_i32_87 = arith.constant 24 : i32
    %375 = vector.broadcast %c24_i32_87 : i32 to vector<64x64xi32>
    %376 = arith.cmpi slt, %348, %375 : vector<64x64xi32>
    %377 = arith.andi %374, %376 : vector<64x64xi1>
    %c16_i32_88 = arith.constant 16 : i32
    %378 = vector.broadcast %c16_i32_88 : i32 to vector<64x64xi32>
    %379 = arith.cmpi sge, %349, %378 : vector<64x64xi32>
    %380 = arith.andi %377, %379 : vector<64x64xi1>
    %c24_i32_89 = arith.constant 24 : i32
    %381 = vector.broadcast %c24_i32_89 : i32 to vector<64x64xi32>
    %382 = arith.cmpi slt, %349, %381 : vector<64x64xi32>
    %383 = arith.andi %380, %382 : vector<64x64xi1>
    %384 = arith.ori %372, %383 : vector<64x64xi1>
    %c24_i32_90 = arith.constant 24 : i32
    %385 = vector.broadcast %c24_i32_90 : i32 to vector<64x64xi32>
    %386 = arith.cmpi sge, %348, %385 : vector<64x64xi32>
    %c32_i32_91 = arith.constant 32 : i32
    %387 = vector.broadcast %c32_i32_91 : i32 to vector<64x64xi32>
    %388 = arith.cmpi slt, %348, %387 : vector<64x64xi32>
    %389 = arith.andi %386, %388 : vector<64x64xi1>
    %c24_i32_92 = arith.constant 24 : i32
    %390 = vector.broadcast %c24_i32_92 : i32 to vector<64x64xi32>
    %391 = arith.cmpi sge, %349, %390 : vector<64x64xi32>
    %392 = arith.andi %389, %391 : vector<64x64xi1>
    %c32_i32_93 = arith.constant 32 : i32
    %393 = vector.broadcast %c32_i32_93 : i32 to vector<64x64xi32>
    %394 = arith.cmpi slt, %349, %393 : vector<64x64xi32>
    %395 = arith.andi %392, %394 : vector<64x64xi1>
    %396 = arith.ori %384, %395 : vector<64x64xi1>
    %c32_i32_94 = arith.constant 32 : i32
    %397 = vector.broadcast %c32_i32_94 : i32 to vector<64x64xi32>
    %398 = arith.cmpi sge, %348, %397 : vector<64x64xi32>
    %c40_i32 = arith.constant 40 : i32
    %399 = vector.broadcast %c40_i32 : i32 to vector<64x64xi32>
    %400 = arith.cmpi slt, %348, %399 : vector<64x64xi32>
    %401 = arith.andi %398, %400 : vector<64x64xi1>
    %c32_i32_95 = arith.constant 32 : i32
    %402 = vector.broadcast %c32_i32_95 : i32 to vector<64x64xi32>
    %403 = arith.cmpi sge, %349, %402 : vector<64x64xi32>
    %404 = arith.andi %401, %403 : vector<64x64xi1>
    %c40_i32_96 = arith.constant 40 : i32
    %405 = vector.broadcast %c40_i32_96 : i32 to vector<64x64xi32>
    %406 = arith.cmpi slt, %349, %405 : vector<64x64xi32>
    %407 = arith.andi %404, %406 : vector<64x64xi1>
    %408 = arith.ori %396, %407 : vector<64x64xi1>
    %c40_i32_97 = arith.constant 40 : i32
    %409 = vector.broadcast %c40_i32_97 : i32 to vector<64x64xi32>
    %410 = arith.cmpi sge, %348, %409 : vector<64x64xi32>
    %c48_i32_98 = arith.constant 48 : i32
    %411 = vector.broadcast %c48_i32_98 : i32 to vector<64x64xi32>
    %412 = arith.cmpi slt, %348, %411 : vector<64x64xi32>
    %413 = arith.andi %410, %412 : vector<64x64xi1>
    %c40_i32_99 = arith.constant 40 : i32
    %414 = vector.broadcast %c40_i32_99 : i32 to vector<64x64xi32>
    %415 = arith.cmpi sge, %349, %414 : vector<64x64xi32>
    %416 = arith.andi %413, %415 : vector<64x64xi1>
    %c48_i32_100 = arith.constant 48 : i32
    %417 = vector.broadcast %c48_i32_100 : i32 to vector<64x64xi32>
    %418 = arith.cmpi slt, %349, %417 : vector<64x64xi32>
    %419 = arith.andi %416, %418 : vector<64x64xi1>
    %420 = arith.ori %408, %419 : vector<64x64xi1>
    %c48_i32_101 = arith.constant 48 : i32
    %421 = vector.broadcast %c48_i32_101 : i32 to vector<64x64xi32>
    %422 = arith.cmpi sge, %348, %421 : vector<64x64xi32>
    %c56_i32 = arith.constant 56 : i32
    %423 = vector.broadcast %c56_i32 : i32 to vector<64x64xi32>
    %424 = arith.cmpi slt, %348, %423 : vector<64x64xi32>
    %425 = arith.andi %422, %424 : vector<64x64xi1>
    %c48_i32_102 = arith.constant 48 : i32
    %426 = vector.broadcast %c48_i32_102 : i32 to vector<64x64xi32>
    %427 = arith.cmpi sge, %349, %426 : vector<64x64xi32>
    %428 = arith.andi %425, %427 : vector<64x64xi1>
    %c56_i32_103 = arith.constant 56 : i32
    %429 = vector.broadcast %c56_i32_103 : i32 to vector<64x64xi32>
    %430 = arith.cmpi slt, %349, %429 : vector<64x64xi32>
    %431 = arith.andi %428, %430 : vector<64x64xi1>
    %432 = arith.ori %420, %431 : vector<64x64xi1>
    %c56_i32_104 = arith.constant 56 : i32
    %433 = vector.broadcast %c56_i32_104 : i32 to vector<64x64xi32>
    %434 = arith.cmpi sge, %348, %433 : vector<64x64xi32>
    %c64_i32_105 = arith.constant 64 : i32
    %435 = vector.broadcast %c64_i32_105 : i32 to vector<64x64xi32>
    %436 = arith.cmpi slt, %348, %435 : vector<64x64xi32>
    %437 = arith.andi %434, %436 : vector<64x64xi1>
    %c56_i32_106 = arith.constant 56 : i32
    %438 = vector.broadcast %c56_i32_106 : i32 to vector<64x64xi32>
    %439 = arith.cmpi sge, %349, %438 : vector<64x64xi32>
    %440 = arith.andi %437, %439 : vector<64x64xi1>
    %c64_i32_107 = arith.constant 64 : i32
    %441 = vector.broadcast %c64_i32_107 : i32 to vector<64x64xi32>
    %442 = arith.cmpi slt, %349, %441 : vector<64x64xi32>
    %443 = arith.andi %440, %442 : vector<64x64xi1>
    %444 = arith.ori %432, %443 : vector<64x64xi1>
    %cst_108 = arith.constant 0.000000e+00 : f32
    %cst_109 = arith.constant -1.000000e+30 : f32
    %445 = vector.broadcast %cst_108 : f32 to vector<64x64xf32>
    %446 = vector.broadcast %cst_109 : f32 to vector<64x64xf32>
    %447 = arith.select %444, %445, %446 : vector<64x64xi1>, vector<64x64xf32>
    %448 = tpu.iota {dimensions = array<i32: 0>} : vector<16x64xi32>
    %449 = tpu.iota {dimensions = array<i32: 1>} : vector<16x64xi32>
    %c0_i32_110 = arith.constant 0 : i32
    %450 = vector.broadcast %c0_i32_110 : i32 to vector<16x64xi32>
    %451 = arith.addi %448, %450 : vector<16x64xi32>
    %452 = arith.cmpi eq, %449, %451 : vector<16x64xi32>
    %c16_i32_111 = arith.constant 16 : i32
    %453 = vector.broadcast %c16_i32_111 : i32 to vector<16x64xi32>
    %454 = arith.addi %448, %453 : vector<16x64xi32>
    %455 = arith.cmpi eq, %449, %454 : vector<16x64xi32>
    %456 = arith.ori %452, %455 : vector<16x64xi1>
    %c32_i32_112 = arith.constant 32 : i32
    %457 = vector.broadcast %c32_i32_112 : i32 to vector<16x64xi32>
    %458 = arith.addi %448, %457 : vector<16x64xi32>
    %459 = arith.cmpi eq, %449, %458 : vector<16x64xi32>
    %460 = arith.ori %456, %459 : vector<16x64xi1>
    %c48_i32_113 = arith.constant 48 : i32
    %461 = vector.broadcast %c48_i32_113 : i32 to vector<16x64xi32>
    %462 = arith.addi %448, %461 : vector<16x64xi32>
    %463 = arith.cmpi eq, %449, %462 : vector<16x64xi32>
    %464 = arith.ori %460, %463 : vector<16x64xi1>
    %cst_114 = arith.constant 1.000000e+00 : f32
    %cst_115 = arith.constant 0.000000e+00 : f32
    %465 = vector.broadcast %cst_114 : f32 to vector<16x64xf32>
    %466 = vector.broadcast %cst_115 : f32 to vector<16x64xf32>
    %467 = arith.select %464, %465, %466 : vector<16x64xi1>, vector<16x64xf32>
    %c80 = arith.constant 80 : index
    %c0_116 = arith.constant 0 : index
    %468 = vector.load %arg1[%c80, %c0_116] : memref<224x128xf32, #tpu.memory_space<vmem>>, vector<32x96xf32>
    %c112 = arith.constant 112 : index
    %c0_117 = arith.constant 0 : index
    %469 = vector.load %arg1[%c112, %c0_117] : memref<224x128xf32, #tpu.memory_space<vmem>>, vector<32x32xf32>
    %c144 = arith.constant 144 : index
    %c0_118 = arith.constant 0 : index
    %470 = vector.load %arg1[%c144, %c0_118] : memref<224x128xf32, #tpu.memory_space<vmem>>, vector<1x96xf32>
    %c145 = arith.constant 145 : index
    %c0_119 = arith.constant 0 : index
    %471 = vector.load %arg1[%c145, %c0_119] : memref<224x128xf32, #tpu.memory_space<vmem>>, vector<1x32xf32>
    %c146 = arith.constant 146 : index
    %c0_120 = arith.constant 0 : index
    %472 = vector.load %arg1[%c146, %c0_120] : memref<224x128xf32, #tpu.memory_space<vmem>>, vector<1x32xf32>
    %c147 = arith.constant 147 : index
    %c0_121 = arith.constant 0 : index
    %473 = vector.load %arg1[%c147, %c0_121] : memref<224x128xf32, #tpu.memory_space<vmem>>, vector<1x32xf32>
    %cst_122 = arith.constant dense<0.000000e+00> : vector<16x96xf32>
    %474 = tpu.matmul %0, %468, %cst_122 {dimension_numbers = #tpu.dot_dimension_numbers<[1], [0], [0], [1], [0, 0, 1, 1], [], []>} : vector<16x32xf32>, vector<32x96xf32>, vector<16x96xf32> -> vector<16x96xf32>
    %475 = vector.broadcast %470 : vector<1x96xf32> to vector<16x96xf32>
    %476 = arith.addf %474, %475 : vector<16x96xf32>
    %477 = vector.extract_strided_slice %476 {offsets = [0, 0], sizes = [16, 32], strides = [1, 1]} : vector<16x96xf32> to vector<16x32xf32>
    %478 = vector.extract_strided_slice %476 {offsets = [0, 32], sizes = [16, 32], strides = [1, 1]} : vector<16x96xf32> to vector<16x32xf32>
    %479 = vector.extract_strided_slice %476 {offsets = [0, 64], sizes = [16, 32], strides = [1, 1]} : vector<16x96xf32> to vector<16x32xf32>
    %480 = tpu.concatenate %477, %477, %477, %477 in 0 : vector<16x32xf32>, vector<16x32xf32>, vector<16x32xf32>, vector<16x32xf32> -> vector<64x32xf32>
    %481 = arith.mulf %480, %347 : vector<64x32xf32>
    %482 = tpu.concatenate %478, %478, %478, %478 in 0 : vector<16x32xf32>, vector<16x32xf32>, vector<16x32xf32>, vector<16x32xf32> -> vector<64x32xf32>
    %483 = tpu.concatenate %479, %479, %479, %479 in 0 : vector<16x32xf32>, vector<16x32xf32>, vector<16x32xf32>, vector<16x32xf32> -> vector<64x32xf32>
    %484 = arith.mulf %483, %347 : vector<64x32xf32>
    %cst_123 = arith.constant dense<0.000000e+00> : vector<64x64xf32>
    %485 = tpu.matmul %481, %482, %cst_123 {dimension_numbers = #tpu.dot_dimension_numbers<[1], [1], [0], [0], [0, 0, 1, 0], [], []>} : vector<64x32xf32>, vector<64x32xf32>, vector<64x64xf32> -> vector<64x64xf32>
    %cst_124 = arith.constant 0.353553385 : f32
    %486 = vector.broadcast %cst_124 : f32 to vector<64x64xf32>
    %487 = arith.mulf %485, %486 : vector<64x64xf32>
    %488 = arith.addf %487, %447 : vector<64x64xf32>
    %cst_125 = arith.constant dense<0xFF800000> : vector<64xf32>
    %489 = vector.multi_reduction <maximumf>, %488, %cst_125 [1] : vector<64x64xf32> to vector<64xf32>
    %490 = vector.shape_cast %489 : vector<64xf32> to vector<64x1xf32>
    %491 = vector.broadcast %490 : vector<64x1xf32> to vector<64x64xf32>
    %492 = arith.subf %488, %491 : vector<64x64xf32>
    %493 = math.exp %492 : vector<64x64xf32>
    %cst_126 = arith.constant dense<0.000000e+00> : vector<64xf32>
    %494 = vector.multi_reduction <add>, %493, %cst_126 [1] : vector<64x64xf32> to vector<64xf32>
    %495 = vector.shape_cast %494 : vector<64xf32> to vector<64x1xf32>
    %496 = vector.broadcast %495 : vector<64x1xf32> to vector<64x64xf32>
    %497 = arith.divf %493, %496 : vector<64x64xf32>
    %cst_127 = arith.constant dense<0.000000e+00> : vector<64x32xf32>
    %498 = tpu.matmul %497, %484, %cst_127 {dimension_numbers = #tpu.dot_dimension_numbers<[1], [0], [0], [1], [0, 0, 1, 1], [], []>} : vector<64x64xf32>, vector<64x32xf32>, vector<64x32xf32> -> vector<64x32xf32>
    %cst_128 = arith.constant dense<0.000000e+00> : vector<16x32xf32>
    %499 = tpu.matmul %467, %498, %cst_128 {dimension_numbers = #tpu.dot_dimension_numbers<[1], [0], [0], [1], [0, 0, 1, 1], [], []>} : vector<16x64xf32>, vector<64x32xf32>, vector<16x32xf32> -> vector<16x32xf32>
    %cst_129 = arith.constant dense<0.000000e+00> : vector<16x32xf32>
    %500 = tpu.matmul %499, %469, %cst_129 {dimension_numbers = #tpu.dot_dimension_numbers<[1], [0], [0], [1], [0, 0, 1, 1], [], []>} : vector<16x32xf32>, vector<32x32xf32>, vector<16x32xf32> -> vector<16x32xf32>
    %501 = vector.broadcast %471 : vector<1x32xf32> to vector<16x32xf32>
    %502 = arith.addf %500, %501 : vector<16x32xf32>
    %503 = arith.addf %502, %0 : vector<16x32xf32>
    %cst_130 = arith.constant dense<0.000000e+00> : vector<16xf32>
    %504 = vector.multi_reduction <add>, %503, %cst_130 [1] : vector<16x32xf32> to vector<16xf32>
    %505 = vector.shape_cast %504 : vector<16xf32> to vector<16x1xf32>
    %cst_131 = arith.constant 3.200000e+01 : f32
    %506 = vector.broadcast %cst_131 : f32 to vector<16x1xf32>
    %507 = arith.divf %505, %506 : vector<16x1xf32>
    %508 = vector.broadcast %507 : vector<16x1xf32> to vector<16x32xf32>
    %509 = arith.subf %503, %508 : vector<16x32xf32>
    %510 = arith.mulf %509, %509 : vector<16x32xf32>
    %cst_132 = arith.constant dense<0.000000e+00> : vector<16xf32>
    %511 = vector.multi_reduction <add>, %510, %cst_132 [1] : vector<16x32xf32> to vector<16xf32>
    %512 = vector.shape_cast %511 : vector<16xf32> to vector<16x1xf32>
    %cst_133 = arith.constant 3.200000e+01 : f32
    %513 = vector.broadcast %cst_133 : f32 to vector<16x1xf32>
    %514 = arith.divf %512, %513 : vector<16x1xf32>
    %515 = vector.broadcast %507 : vector<16x1xf32> to vector<16x32xf32>
    %516 = arith.subf %503, %515 : vector<16x32xf32>
    %cst_134 = arith.constant 9.99999974E-6 : f32
    %517 = vector.broadcast %cst_134 : f32 to vector<16x1xf32>
    %518 = arith.addf %514, %517 : vector<16x1xf32>
    %519 = math.rsqrt %518 : vector<16x1xf32>
    %520 = vector.broadcast %519 : vector<16x1xf32> to vector<16x32xf32>
    %521 = arith.mulf %516, %520 : vector<16x32xf32>
    %522 = vector.broadcast %472 : vector<1x32xf32> to vector<16x32xf32>
    %523 = arith.mulf %521, %522 : vector<16x32xf32>
    %524 = vector.broadcast %473 : vector<1x32xf32> to vector<16x32xf32>
    %525 = arith.addf %523, %524 : vector<16x32xf32>
    %c152 = arith.constant 152 : index
    %c0_135 = arith.constant 0 : index
    %526 = vector.load %arg1[%c152, %c0_135] : memref<224x128xf32, #tpu.memory_space<vmem>>, vector<32x96xf32>
    %c184 = arith.constant 184 : index
    %c0_136 = arith.constant 0 : index
    %527 = vector.load %arg1[%c184, %c0_136] : memref<224x128xf32, #tpu.memory_space<vmem>>, vector<32x32xf32>
    %c216 = arith.constant 216 : index
    %c0_137 = arith.constant 0 : index
    %528 = vector.load %arg1[%c216, %c0_137] : memref<224x128xf32, #tpu.memory_space<vmem>>, vector<1x96xf32>
    %c217 = arith.constant 217 : index
    %c0_138 = arith.constant 0 : index
    %529 = vector.load %arg1[%c217, %c0_138] : memref<224x128xf32, #tpu.memory_space<vmem>>, vector<1x32xf32>
    %c218 = arith.constant 218 : index
    %c0_139 = arith.constant 0 : index
    %530 = vector.load %arg1[%c218, %c0_139] : memref<224x128xf32, #tpu.memory_space<vmem>>, vector<1x32xf32>
    %c219 = arith.constant 219 : index
    %c0_140 = arith.constant 0 : index
    %531 = vector.load %arg1[%c219, %c0_140] : memref<224x128xf32, #tpu.memory_space<vmem>>, vector<1x32xf32>
    %cst_141 = arith.constant dense<0.000000e+00> : vector<16x96xf32>
    %532 = tpu.matmul %525, %526, %cst_141 {dimension_numbers = #tpu.dot_dimension_numbers<[1], [0], [0], [1], [0, 0, 1, 1], [], []>} : vector<16x32xf32>, vector<32x96xf32>, vector<16x96xf32> -> vector<16x96xf32>
    %533 = vector.broadcast %528 : vector<1x96xf32> to vector<16x96xf32>
    %534 = arith.addf %532, %533 : vector<16x96xf32>
    %535 = vector.extract_strided_slice %534 {offsets = [0, 0], sizes = [16, 32], strides = [1, 1]} : vector<16x96xf32> to vector<16x32xf32>
    %536 = vector.extract_strided_slice %534 {offsets = [0, 32], sizes = [16, 32], strides = [1, 1]} : vector<16x96xf32> to vector<16x32xf32>
    %537 = vector.extract_strided_slice %534 {offsets = [0, 64], sizes = [16, 32], strides = [1, 1]} : vector<16x96xf32> to vector<16x32xf32>
    %538 = arith.mulf %536, %295 : vector<16x32xf32>
    %539 = tpu.concatenate %535, %535, %535, %535 in 0 : vector<16x32xf32>, vector<16x32xf32>, vector<16x32xf32>, vector<16x32xf32> -> vector<64x32xf32>
    %540 = arith.mulf %539, %347 : vector<64x32xf32>
    %541 = tpu.concatenate %538, %538, %538, %538 in 0 : vector<16x32xf32>, vector<16x32xf32>, vector<16x32xf32>, vector<16x32xf32> -> vector<64x32xf32>
    %542 = tpu.concatenate %537, %537, %537, %537 in 0 : vector<16x32xf32>, vector<16x32xf32>, vector<16x32xf32>, vector<16x32xf32> -> vector<64x32xf32>
    %543 = arith.mulf %542, %347 : vector<64x32xf32>
    %cst_142 = arith.constant dense<0.000000e+00> : vector<64x64xf32>
    %544 = tpu.matmul %540, %541, %cst_142 {dimension_numbers = #tpu.dot_dimension_numbers<[1], [1], [0], [0], [0, 0, 1, 0], [], []>} : vector<64x32xf32>, vector<64x32xf32>, vector<64x64xf32> -> vector<64x64xf32>
    %cst_143 = arith.constant 0.353553385 : f32
    %545 = vector.broadcast %cst_143 : f32 to vector<64x64xf32>
    %546 = arith.mulf %544, %545 : vector<64x64xf32>
    %547 = arith.addf %546, %447 : vector<64x64xf32>
    %cst_144 = arith.constant dense<0xFF800000> : vector<64xf32>
    %548 = vector.multi_reduction <maximumf>, %547, %cst_144 [1] : vector<64x64xf32> to vector<64xf32>
    %549 = vector.shape_cast %548 : vector<64xf32> to vector<64x1xf32>
    %550 = vector.broadcast %549 : vector<64x1xf32> to vector<64x64xf32>
    %551 = arith.subf %547, %550 : vector<64x64xf32>
    %552 = math.exp %551 : vector<64x64xf32>
    %cst_145 = arith.constant dense<0.000000e+00> : vector<64xf32>
    %553 = vector.multi_reduction <add>, %552, %cst_145 [1] : vector<64x64xf32> to vector<64xf32>
    %554 = vector.shape_cast %553 : vector<64xf32> to vector<64x1xf32>
    %555 = vector.broadcast %554 : vector<64x1xf32> to vector<64x64xf32>
    %556 = arith.divf %552, %555 : vector<64x64xf32>
    %cst_146 = arith.constant dense<0.000000e+00> : vector<64x32xf32>
    %557 = tpu.matmul %556, %543, %cst_146 {dimension_numbers = #tpu.dot_dimension_numbers<[1], [0], [0], [1], [0, 0, 1, 1], [], []>} : vector<64x64xf32>, vector<64x32xf32>, vector<64x32xf32> -> vector<64x32xf32>
    %cst_147 = arith.constant dense<0.000000e+00> : vector<16x32xf32>
    %558 = tpu.matmul %467, %557, %cst_147 {dimension_numbers = #tpu.dot_dimension_numbers<[1], [0], [0], [1], [0, 0, 1, 1], [], []>} : vector<16x64xf32>, vector<64x32xf32>, vector<16x32xf32> -> vector<16x32xf32>
    %cst_148 = arith.constant dense<0.000000e+00> : vector<16x32xf32>
    %559 = tpu.matmul %558, %527, %cst_148 {dimension_numbers = #tpu.dot_dimension_numbers<[1], [0], [0], [1], [0, 0, 1, 1], [], []>} : vector<16x32xf32>, vector<32x32xf32>, vector<16x32xf32> -> vector<16x32xf32>
    %560 = vector.broadcast %529 : vector<1x32xf32> to vector<16x32xf32>
    %561 = arith.addf %559, %560 : vector<16x32xf32>
    %562 = arith.addf %561, %525 : vector<16x32xf32>
    %cst_149 = arith.constant dense<0.000000e+00> : vector<16xf32>
    %563 = vector.multi_reduction <add>, %562, %cst_149 [1] : vector<16x32xf32> to vector<16xf32>
    %564 = vector.shape_cast %563 : vector<16xf32> to vector<16x1xf32>
    %cst_150 = arith.constant 3.200000e+01 : f32
    %565 = vector.broadcast %cst_150 : f32 to vector<16x1xf32>
    %566 = arith.divf %564, %565 : vector<16x1xf32>
    %567 = vector.broadcast %566 : vector<16x1xf32> to vector<16x32xf32>
    %568 = arith.subf %562, %567 : vector<16x32xf32>
    %569 = arith.mulf %568, %568 : vector<16x32xf32>
    %cst_151 = arith.constant dense<0.000000e+00> : vector<16xf32>
    %570 = vector.multi_reduction <add>, %569, %cst_151 [1] : vector<16x32xf32> to vector<16xf32>
    %571 = vector.shape_cast %570 : vector<16xf32> to vector<16x1xf32>
    %cst_152 = arith.constant 3.200000e+01 : f32
    %572 = vector.broadcast %cst_152 : f32 to vector<16x1xf32>
    %573 = arith.divf %571, %572 : vector<16x1xf32>
    %574 = vector.broadcast %566 : vector<16x1xf32> to vector<16x32xf32>
    %575 = arith.subf %562, %574 : vector<16x32xf32>
    %cst_153 = arith.constant 9.99999974E-6 : f32
    %576 = vector.broadcast %cst_153 : f32 to vector<16x1xf32>
    %577 = arith.addf %573, %576 : vector<16x1xf32>
    %578 = math.rsqrt %577 : vector<16x1xf32>
    %579 = vector.broadcast %578 : vector<16x1xf32> to vector<16x32xf32>
    %580 = arith.mulf %575, %579 : vector<16x32xf32>
    %581 = vector.broadcast %530 : vector<1x32xf32> to vector<16x32xf32>
    %582 = arith.mulf %580, %581 : vector<16x32xf32>
    %583 = vector.broadcast %531 : vector<1x32xf32> to vector<16x32xf32>
    %584 = arith.addf %582, %583 : vector<16x32xf32>
    %585 = arith.addf %525, %584 : vector<16x32xf32>
    %cst_154 = arith.constant 5.000000e-01 : f32
    %586 = vector.broadcast %cst_154 : f32 to vector<16x32xf32>
    %587 = arith.mulf %586, %585 : vector<16x32xf32>
    %cst_155 = arith.constant 0.000000e+00 : f32
    %588 = vector.broadcast %cst_155 : f32 to vector<6x32xf32>
    %589 = tpu.concatenate %193, %44, %588 in 0 : vector<8x32xf32>, vector<2x32xf32>, vector<6x32xf32> -> vector<16x32xf32>
    %cst_156 = arith.constant 0.000000e+00 : f32
    %590 = vector.broadcast %cst_156 : f32 to vector<8x24xf32>
    %591 = tpu.concatenate %167, %590 in 1 : vector<8x8xf32>, vector<8x24xf32> -> vector<8x32xf32>
    %cst_157 = arith.constant 0.000000e+00 : f32
    %592 = vector.broadcast %cst_157 : f32 to vector<8x32xf32>
    %593 = tpu.concatenate %591, %592 in 0 : vector<8x32xf32>, vector<8x32xf32> -> vector<16x32xf32>
    %cst_158 = arith.constant 0.000000e+00 : f32
    %594 = vector.broadcast %cst_158 : f32 to vector<16x32xf32>
    %595 = tpu.concatenate %587, %589, %593, %594 in 1 : vector<16x32xf32>, vector<16x32xf32>, vector<16x32xf32>, vector<16x32xf32> -> vector<16x128xf32>
    %c0_159 = arith.constant 0 : index
    %c0_160 = arith.constant 0 : index
    %596 = vector.load %arg2[%c0_159, %c0_160] : memref<16x128xf32, #tpu.memory_space<vmem>>, vector<16x128xf32>
    tpu.vector_store %arg2[%c0_159, %c0_160], %595 {strides = array<i32>} : memref<16x128xf32, #tpu.memory_space<vmem>>, vector<16x128xf32>,
    return
  }
}

</mosaic_0001>

<llo_original>
// kernel: tpu_custom_call.1
$region0: #{tpu_custom_call.1}
  #allocation0 [shape = 'u32[]', space=smem, size = 0x4, offset = 0x4, fixed_abs, tag = 'smem constant byte address 0x4 - core index']
  #allocation1 [shape = 'u32[144,128]{1,0:T(1,128)}', space=vmem, size = 0x12000, scoped, tag = 'internal scratch']
  %s0 = inlined_call_operand.hbm [shape: f32[16,32], index: 0, kind: input, shape index: {}]
  %s1 = inlined_call_operand.hbm [shape: f32[224,128], index: 1, kind: input, shape index: {}]
  %s2 = inlined_call_operand.hbm [shape: f32[16,128], index: 2, kind: output, shape index: {}]
  %s3 = sld [smem:[#allocation0]]
  $region26: #{tpu_custom_call.1} parent=0
    _
  %s5 = ssub.s32 1, %s3
  %s6 = scalar_select 0, %s5, %s3
  $region1: #{tpu_custom_call.1} parent=0
    #allocation2 [shape = 'u8[8192]{0}', space=vmem, size = 0x2000, scoped, tag = 'input window, operand 0, single buffered']
    #allocation3 [shape = 's32[1]{0}', space=sflag, size = 0x4, scoped, tag = 'scoped memory for tpu_custom_call.1']
    #allocation4 [shape = 's32[1]{0}', space=sflag, size = 0x4, scoped, tag = 'scoped memory for tpu_custom_call.1']
    #allocation5 [shape = 'u8[114688]{0}', space=vmem, size = 0x1c000, scoped, tag = 'input window, operand 1, single buffered']
    #allocation6 [shape = 's32[1]{0}', space=sflag, size = 0x4, scoped, tag = 'scoped memory for tpu_custom_call.1']
    #allocation7 [shape = 'u8[8192]{0}', space=vmem, size = 0x2000, scoped, tag = 'output window, operand 0, single buffered']
    %7 = vsyncpa [#allocation3], 0
    %8 = vsyncpa [#allocation6], 0
    %9 = vsyncpa [#allocation4], 0
    // Predicated region
    $region2: #{tpu_custom_call.1} parent=1 // pred_check
      _
    $region3: #{tpu_custom_call.1} parent=1 // pred_check_branch
      %11 = sbr.rel (0) target = $region5
    $region4: #{tpu_custom_call.1} parent=1 // pred_region
      %s13 = ssub.s32 256, 256
      %14 = vsyncadd [#allocation3], %s13
      %s15 = sshll.u32 [#allocation2], 4
      %s16 = int_to_ptr.vmem [resolvable:$true] %s15
      %21 = dma.hbm_to_vmem [thread:$0]  %s0, 256, %s16, [#allocation3], 128, 128, 8
    $region5: #{tpu_custom_call.1} parent=1 // pred_fallthru
      _
    // Predicated region
    $region6: #{tpu_custom_call.1} parent=1 // pred_check
      _
    $region7: #{tpu_custom_call.1} parent=1 // pred_check_branch
      %23 = sbr.rel (0) target = $region9
    $region8: #{tpu_custom_call.1} parent=1 // pred_region
      %s25 = ssub.s32 3584, 3584
      %26 = vsyncadd [#allocation6], %s25
      %s27 = sshll.u32 [#allocation5], 4
      %s28 = int_to_ptr.vmem [resolvable:$true] %s27
      %33 = dma.hbm_to_vmem [thread:$0]  %s1, 3584, %s28, [#allocation6], 128, 128, 8
    $region9: #{tpu_custom_call.1} parent=1 // pred_fallthru
      _
    // Predicated region
    $region10: #{tpu_custom_call.1} parent=1 // pred_check
      _
    $region11: #{tpu_custom_call.1} parent=1 // pred_check_branch
      %35 = sbr.rel (0) target = $region13
    $region12: #{tpu_custom_call.1} parent=1 // pred_region
      %36 = dma.done [#allocation3], 256
    $region13: #{tpu_custom_call.1} parent=1 // pred_fallthru
      _
    // Predicated region
    $region14: #{tpu_custom_call.1} parent=1 // pred_check
      _
    $region15: #{tpu_custom_call.1} parent=1 // pred_check_branch
      %38 = sbr.rel (0) target = $region17
    $region16: #{tpu_custom_call.1} parent=1 // pred_region
      %39 = dma.done [#allocation6], 3584
    $region17: #{tpu_custom_call.1} parent=1 // pred_fallthru
      _
    %v40 = vld [vmem:[#allocation2] sm:$0xff]
    %v41 = vld [vmem:[#allocation2 + $0x8] sm:$0xff]
    %v42 = vlaneseq
    %v43 = vshrl.u32 %v42, 7
    %v44 = vlaneseq
    %v45 = vand.u32 %v44, 127
    %v46 = vmul.u32 %v43, 8
    %vm47 = vcmp.ge.s32.totalorder %v45, %v46
    %v48 = vadd.s32 %v43, 1
    %v49 = vmul.u32 %v48, 8
    %vm50 = vcmp.lt.s32.totalorder %v45, %v49
    %vm51 = vmand %vm47, %vm50
    %v52 = vsel %vm51, 0.125, 0.0
    %vm53 = vcmask 130048
    %v55 = vsel %vm53, %v52, 0
    %57 = vmatprep.subr.mxu0 0.0
    %58 = vmatpush1.msra.mxu0 0.0
    %59 = vmatprep.subr.mxu0 0.0
    %60 = vmatpush1.msra.mxu0 0.0
    %61 = vmatprep.subr.mxu0 0.0
    %62 = vmatpush1.msra.mxu0 0.0
    %63 = vmatprep.subr.mxu0 0.0
    %64 = vmatpush1.msra.mxu0 0.0
    %65 = vmatprep.subr.mxu0 0.0
    %66 = vmatpush1.msra.mxu0 0.0
    %67 = vmatprep.subr.mxu0 0.0
    %68 = vmatpush1.msra.mxu0 0.0
    %69 = vmatprep.subr.mxu0 0.0
    %70 = vmatpush1.msra.mxu0 0.0
    %71 = vmatprep.subr.mxu0 0.0
    %72 = vmatpush1.msra.mxu0 0.0
    %73 = vmatprep.subr.mxu0 0.0
    %74 = vmatpush1.msra.mxu0 0.0
    %75 = vmatprep.subr.mxu0 0.0
    %76 = vmatpush1.msra.mxu0 0.0
    %77 = vmatprep.subr.mxu0 0.0
    %78 = vmatpush1.msra.mxu0 0.0
    %79 = vmatprep.subr.mxu0 0.0
    %80 = vmatpush1.msra.mxu0 0.0
    %81 = vmatprep.subr.mxu0 0.0
    %82 = vmatpush1.msra.mxu0 0.0
    %83 = vmatprep.subr.mxu0 0.0
    %84 = vmatpush1.msra.mxu0 0.0
    %85 = vmatprep.subr.mxu0 0.0
    %86 = vmatpush1.msra.mxu0 %v41
    %87 = vmatprep.subr.mxu0 0.0
    %88 = vmatpush1.msra.mxu0 %v40
    %89 = vmatprep.subr.mxu0 0.0
    %90 = vmatpush2.msra.mxu0 0.0
    %91 = vmatprep.subr.mxu0 0.0
    %92 = vmatpush2.msra.mxu0 0.0
    %93 = vmatprep.subr.mxu0 0.0
    %94 = vmatpush2.msra.mxu0 0.0
    %95 = vmatprep.subr.mxu0 0.0
    %96 = vmatpush2.msra.mxu0 0.0
    %97 = vmatprep.subr.mxu0 0.0
    %98 = vmatpush2.msra.mxu0 0.0
    %99 = vmatprep.subr.mxu0 0.0
    %100 = vmatpush2.msra.mxu0 0.0
    %101 = vmatprep.subr.mxu0 0.0
    %102 = vmatpush2.msra.mxu0 0.0
    %103 = vmatprep.subr.mxu0 0.0
    %104 = vmatpush2.msra.mxu0 0.0
    %105 = vmatprep.subr.mxu0 0.0
    %106 = vmatpush2.msra.mxu0 0.0
    %107 = vmatprep.subr.mxu0 0.0
    %108 = vmatpush2.msra.mxu0 0.0
    %109 = vmatprep.subr.mxu0 0.0
    %110 = vmatpush2.msra.mxu0 0.0
    %111 = vmatprep.subr.mxu0 0.0
    %112 = vmatpush2.msra.mxu0 0.0
    %113 = vmatprep.subr.mxu0 0.0
    %114 = vmatpush2.msra.mxu0 0.0
    %115 = vmatprep.subr.mxu0 0.0
    %116 = vmatpush2.msra.mxu0 0.0
    %117 = vmatprep.subr.mxu0 0.0
    %118 = vmatpush2.msra.mxu0 0.0
    %119 = vmatprep.subr.mxu0 0.0
    %120 = vmatpush2.msra.mxu0 0.0
    %121 = vmatprep.mubr.f32.mxu0 0.0
    %122 = vmatmul.mubr.f32.gmra.mxu0 %v55
    %v123 = vpop.f32.mrf.mxu0
    %v124 = vadd.f32 0.0, %v123
    %v125 = vpop.f32.mrf.mxu0
    %126 = vdwg.mxu0
    %v127 = vld [vmem:[#allocation5 + $0x20] sm:$0x1]
    %v128 = vld [vmem:[#allocation5 + $0x21] sm:$0x1]
    %vm129 = vcmask 254976
    %v130 = vsel %vm129, %v124, 0.0
    %131 = vadd.xlane.f32.xlu0 %v130
    %v132 = vpop.xlane.xlu0 %131
    %v133 = vrcp.pop 32.0
    %v134 = vmul.f32 %v132, %v133
    %v135 = vsub.f32 %v124, %v134
    %v136 = vmul.f32 %v135, %v135
    %v137 = vsel %vm129, %v136, 0.0
    %138 = vadd.xlane.f32.xlu0 %v137
    %v139 = vpop.xlane.xlu0 %138
    %v140 = vmul.f32 %v139, %v133
    %v141 = vadd.f32 %v140, 1e-05
    %v142 = vrsqrt.pop %v141
    %v143 = vmul.f32 %v135, %v142
    %v144 = vlaneseq
    %v145 = vshrl.u32 %v144, 7
    %v146 = vsub.s32 0, %v145
    %v147 = vrot.slane %v127, %v146
    %v148 = vmul.f32 %v143, %v147
    %v149 = vlaneseq
    %v150 = vshrl.u32 %v149, 7
    %v151 = vsub.s32 0, %v150
    %v152 = vrot.slane %v128, %v151
    %v153 = vadd.f32 %v148, %v152
    %v154 = vld [vmem:[#allocation5] sm:$0xff]
    %v155 = vld [vmem:[#allocation5 + $0x8] sm:$0xff]
    %v156 = vld [vmem:[#allocation5 + $0x10] sm:$0xff]
    %v157 = vld [vmem:[#allocation5 + $0x18] sm:$0xff]
    %v158 = vld [vmem:[#allocation5 + $0x22] sm:$0x1]
    %v159 = vlaneseq
    %v160 = vshrl.u32 %v159, 7
    %v161 = vsub.s32 0, %v160
    %v162 = vrot.slane %v158, %v161
    %vm163 = vcmask 261120
    %v165 = vsel %vm163, %v153, 0
    %167 = vmatprep.subr.mxu0 0.0
    %168 = vmatpush1.msra.mxu0 0.0
    %169 = vmatprep.subr.mxu0 0.0
    %170 = vmatpush1.msra.mxu0 0.0
    %171 = vmatprep.subr.mxu0 0.0
    %172 = vmatpush1.msra.mxu0 0.0
    %173 = vmatprep.subr.mxu0 0.0
    %174 = vmatpush1.msra.mxu0 0.0
    %175 = vmatprep.subr.mxu0 0.0
    %176 = vmatpush1.msra.mxu0 0.0
    %177 = vmatprep.subr.mxu0 0.0
    %178 = vmatpush1.msra.mxu0 0.0
    %179 = vmatprep.subr.mxu0 0.0
    %180 = vmatpush1.msra.mxu0 0.0
    %181 = vmatprep.subr.mxu0 0.0
    %182 = vmatpush1.msra.mxu0 0.0
    %183 = vmatprep.subr.mxu0 0.0
    %184 = vmatpush1.msra.mxu0 0.0
    %185 = vmatprep.subr.mxu0 0.0
    %186 = vmatpush1.msra.mxu0 0.0
    %187 = vmatprep.subr.mxu0 0.0
    %188 = vmatpush1.msra.mxu0 0.0
    %189 = vmatprep.subr.mxu0 0.0
    %190 = vmatpush1.msra.mxu0 0.0
    %191 = vmatprep.subr.mxu0 0.0
    %192 = vmatpush1.msra.mxu0 %v157
    %193 = vmatprep.subr.mxu0 0.0
    %194 = vmatpush1.msra.mxu0 %v156
    %195 = vmatprep.subr.mxu0 0.0
    %196 = vmatpush1.msra.mxu0 %v155
    %197 = vmatprep.subr.mxu0 0.0
    %198 = vmatpush1.msra.mxu0 %v154
    %199 = vmatprep.subr.mxu0 0.0
    %200 = vmatpush2.msra.mxu0 0.0
    %201 = vmatprep.subr.mxu0 0.0
    %202 = vmatpush2.msra.mxu0 0.0
    %203 = vmatprep.subr.mxu0 0.0
    %204 = vmatpush2.msra.mxu0 0.0
    %205 = vmatprep.subr.mxu0 0.0
    %206 = vmatpush2.msra.mxu0 0.0
    %207 = vmatprep.subr.mxu0 0.0
    %208 = vmatpush2.msra.mxu0 0.0
    %209 = vmatprep.subr.mxu0 0.0
    %210 = vmatpush2.msra.mxu0 0.0
    %211 = vmatprep.subr.mxu0 0.0
    %212 = vmatpush2.msra.mxu0 0.0
    %213 = vmatprep.subr.mxu0 0.0
    %214 = vmatpush2.msra.mxu0 0.0
    %215 = vmatprep.subr.mxu0 0.0
    %216 = vmatpush2.msra.mxu0 0.0
    %217 = vmatprep.subr.mxu0 0.0
    %218 = vmatpush2.msra.mxu0 0.0
    %219 = vmatprep.subr.mxu0 0.0
    %220 = vmatpush2.msra.mxu0 0.0
    %221 = vmatprep.subr.mxu0 0.0
    %222 = vmatpush2.msra.mxu0 0.0
    %223 = vmatprep.subr.mxu0 0.0
    %224 = vmatpush2.msra.mxu0 0.0
    %225 = vmatprep.subr.mxu0 0.0
    %226 = vmatpush2.msra.mxu0 0.0
    %227 = vmatprep.subr.mxu0 0.0
    %228 = vmatpush2.msra.mxu0 0.0
    %229 = vmatprep.subr.mxu0 0.0
    %230 = vmatpush2.msra.mxu0 0.0
    %231 = vmatprep.mubr.f32.mxu0 0.0
    %232 = vmatmul.mubr.f32.gmra.mxu0 %v165
    %v233 = vpop.f32.mrf.mxu0
    %v234 = vadd.f32 %v162, %v233
    %v235 = vpop.f32.mrf.mxu0
    %236 = vdwg.mxu0
    %v237 = vld [vmem:[#allocation5 + $0x28] sm:$0xff]
    %v238 = vld [vmem:[#allocation5 + $0x30] sm:$0xff]
    %v239 = vld [vmem:[#allocation5 + $0x38] sm:$0xff]
    %v240 = vld [vmem:[#allocation5 + $0x40] sm:$0xff]
    %v241 = vld [vmem:[#allocation5 + $0x48] sm:$0x1]
    %v242 = vlaneseq
    %v243 = vshrl.u32 %v242, 7
    %v244 = vsub.s32 0, %v243
    %v245 = vrot.slane %v241, %v244
    %v247 = vsel %vm163, %v234, 0
    %249 = vmatprep.subr.mxu0 0.0
    %250 = vmatpush1.msra.mxu0 0.0
    %251 = vmatprep.subr.mxu0 0.0
    %252 = vmatpush1.msra.mxu0 0.0
    %253 = vmatprep.subr.mxu0 0.0
    %254 = vmatpush1.msra.mxu0 0.0
    %255 = vmatprep.subr.mxu0 0.0
    %256 = vmatpush1.msra.mxu0 0.0
    %257 = vmatprep.subr.mxu0 0.0
    %258 = vmatpush1.msra.mxu0 0.0
    %259 = vmatprep.subr.mxu0 0.0
    %260 = vmatpush1.msra.mxu0 0.0
    %261 = vmatprep.subr.mxu0 0.0
    %262 = vmatpush1.msra.mxu0 0.0
    %263 = vmatprep.subr.mxu0 0.0
    %264 = vmatpush1.msra.mxu0 0.0
    %265 = vmatprep.subr.mxu0 0.0
    %266 = vmatpush1.msra.mxu0 0.0
    %267 = vmatprep.subr.mxu0 0.0
    %268 = vmatpush1.msra.mxu0 0.0
    %269 = vmatprep.subr.mxu0 0.0
    %270 = vmatpush1.msra.mxu0 0.0
    %271 = vmatprep.subr.mxu0 0.0
    %272 = vmatpush1.msra.mxu0 0.0
    %273 = vmatprep.subr.mxu0 0.0
    %274 = vmatpush1.msra.mxu0 %v240
    %275 = vmatprep.subr.mxu0 0.0
    %276 = vmatpush1.msra.mxu0 %v239
    %277 = vmatprep.subr.mxu0 0.0
    %278 = vmatpush1.msra.mxu0 %v238
    %279 = vmatprep.subr.mxu0 0.0
    %280 = vmatpush1.msra.mxu0 %v237
    %281 = vmatprep.subr.mxu0 0.0
    %282 = vmatpush2.msra.mxu0 0.0
    %283 = vmatprep.subr.mxu0 0.0
    %284 = vmatpush2.msra.mxu0 0.0
    %285 = vmatprep.subr.mxu0 0.0
    %286 = vmatpush2.msra.mxu0 0.0
    %287 = vmatprep.subr.mxu0 0.0
    %288 = vmatpush2.msra.mxu0 0.0
    %289 = vmatprep.subr.mxu0 0.0
    %290 = vmatpush2.msra.mxu0 0.0
    %291 = vmatprep.subr.mxu0 0.0
    %292 = vmatpush2.msra.mxu0 0.0
    %293 = vmatprep.subr.mxu0 0.0
    %294 = vmatpush2.msra.mxu0 0.0
    %295 = vmatprep.subr.mxu0 0.0
    %296 = vmatpush2.msra.mxu0 0.0
    %297 = vmatprep.subr.mxu0 0.0
    %298 = vmatpush2.msra.mxu0 0.0
    %299 = vmatprep.subr.mxu0 0.0
    %300 = vmatpush2.msra.mxu0 0.0
    %301 = vmatprep.subr.mxu0 0.0
    %302 = vmatpush2.msra.mxu0 0.0
    %303 = vmatprep.subr.mxu0 0.0
    %304 = vmatpush2.msra.mxu0 0.0
    %305 = vmatprep.subr.mxu0 0.0
    %306 = vmatpush2.msra.mxu0 0.0
    %307 = vmatprep.subr.mxu0 0.0
    %308 = vmatpush2.msra.mxu0 0.0
    %309 = vmatprep.subr.mxu0 0.0
    %310 = vmatpush2.msra.mxu0 0.0
    %311 = vmatprep.subr.mxu0 0.0
    %312 = vmatpush2.msra.mxu0 0.0
    %313 = vmatprep.mubr.f32.mxu0 0.0
    %314 = vmatmul.mubr.f32.gmra.mxu0 %v247
    %v315 = vpop.f32.mrf.mxu0
    %v316 = vadd.f32 %v245, %v315
    %v317 = vpop.f32.mrf.mxu0
    %318 = vdwg.mxu0
    %v319 = vxor.u32 %v316, 2147483648
    %v320 = vmul.f32 %v319, 1.442695
    %v321 = vpow.pop %v320
    %v322 = vadd.f32 %v321, 1.0
    %v323 = vrcp.pop %v322
    %v324 = vmul.f32 1.0, %v323
    %vm325 = vcmp.eq.s32.totalorder %v43, 0
    %v326 = vlaneseq
    %v327 = vshrl.u32 %v326, 7
    %v328 = vsub.s32 0, %v327
    %v329 = vrot.slane %v324, %v328
    %v330 = vsel %vm325, %v329, 0.0
    %vm331 = vcmp.eq.s32.totalorder %v43, 1
    %333 = vrot.lane.b32.xlu0 %v330, 1
    %v334 = vpop.permute.xlu0 %333
    %v336 = vsel %vm331, %v329, %v334
    %vm337 = vcmp.eq.s32.totalorder %v43, 2
    %339 = vrot.lane.b32.xlu0 %v336, 1
    %v340 = vpop.permute.xlu0 %339
    %v342 = vsel %vm337, %v329, %v340
    %vm343 = vcmp.eq.s32.totalorder %v43, 3
    %345 = vrot.lane.b32.xlu0 %v342, 1
    %v346 = vpop.permute.xlu0 %345
    %v348 = vsel %vm343, %v329, %v346
    %vm349 = vcmp.eq.s32.totalorder %v43, 4
    %v350 = vlaneseq
    %v351 = vshrl.u32 %v350, 7
    %v352 = vsub.s32 1, %v351
    %v353 = vrot.slane %v324, %v352
    %355 = vrot.lane.b32.xlu0 %v348, 125
    %v356 = vpop.permute.xlu0 %355
    %v358 = vsel %vm349, %v353, %v356
    %vm359 = vcmp.eq.s32.totalorder %v43, 5
    %361 = vrot.lane.b32.xlu0 %v358, 1
    %v362 = vpop.permute.xlu0 %361
    %v364 = vsel %vm359, %v353, %v362
    %vm365 = vcmp.eq.s32.totalorder %v43, 6
    %367 = vrot.lane.b32.xlu0 %v364, 1
    %v368 = vpop.permute.xlu0 %367
    %v370 = vsel %vm365, %v353, %v368
    %vm371 = vcmp.eq.s32.totalorder %v43, 7
    %373 = vrot.lane.b32.xlu0 %v370, 1
    %v374 = vpop.permute.xlu0 %373
    %v376 = vsel %vm371, %v353, %v374
    %v377 = vmax.f32 %v376, 0.01
    %v378 = vrcp.pop 9.0
    %v379 = vmul.f32 %v377, %v378
    %vm380 = vcmp.ge.s32.totalorder %v45, 8
    %v381 = vsub.s32 %v45, 8
    %v382 = vsel %vm380, %v381, %v45
    %v383 = vcvt.s32.f32 %v382
    %v384 = vrcp.pop 7.0
    %v385 = vmul.f32 %v383, %v384
    %387 = vset.pattern.permute.xlu0 3
    %388 = vperm.xlu0 %387, %v376
    %v389 = vpop.permute.xlu0 %388
    %v391 = vsub.f32 %v385, %v389
    %v392 = vmul.f32 %v391, %v391
    %v393 = vsub.f32 0.0, %v392
    %v394 = vmul.f32 %v379, 2.0
    %v395 = vmul.f32 %v394, %v379
    %397 = vset.pattern.permute.xlu0 7
    %398 = vperm.xlu0 %397, %v395
    %v399 = vpop.permute.xlu0 %398
    %v401 = vrcp.pop %v399
    %v402 = vmul.f32 %v393, %v401
    %v403 = vmul.f32 %v402, 1.442695
    %v404 = vpow.pop %v403
    %v405 = vsel %vm53, %v404, -inf
    %406 = vmax.xlane.f32.xlu0 %v405
    %v407 = vpop.xlane.xlu0 %406
    %v408 = vrcp.pop %v407
    %v409 = vmul.f32 %v404, %v408
    %vm410 = vcmp.ge.s32.totalorder %v43, 0
    %vm411 = vcmp.lt.s32.totalorder %v43, 4
    %vm412 = vmand %vm410, %vm411
    %vm413 = vcmp.ge.s32.totalorder %v45, 0
    %vm414 = vmand %vm412, %vm413
    %vm415 = vcmp.lt.s32.totalorder %v45, 8
    %vm416 = vmand %vm414, %vm415
    %vm417 = vcmp.ge.s32.totalorder %v43, 4
    %vm418 = vcmp.lt.s32.totalorder %v43, 8
    %vm419 = vmand %vm417, %vm418
    %vm420 = vmand %vm419, %vm380
    %vm421 = vcmp.lt.s32.totalorder %v45, 16
    %vm422 = vmand %vm420, %vm421
    %vm423 = vmor %vm416, %vm422
    %v424 = vsel %vm423, %v409, 0.0
    %v426 = vsel %vm53, %v424, 0
    %428 = vmatprep.subr.mxu0 0.0
    %429 = vmatpush1.msra.mxu0 0.0
    %430 = vmatprep.subr.mxu0 0.0
    %431 = vmatpush1.msra.mxu0 0.0
    %432 = vmatprep.subr.mxu0 0.0
    %433 = vmatpush1.msra.mxu0 0.0
    %434 = vmatprep.subr.mxu0 0.0
    %435 = vmatpush1.msra.mxu0 0.0
    %436 = vmatprep.subr.mxu0 0.0
    %437 = vmatpush1.msra.mxu0 0.0
    %438 = vmatprep.subr.mxu0 0.0
    %439 = vmatpush1.msra.mxu0 0.0
    %440 = vmatprep.subr.mxu0 0.0
    %441 = vmatpush1.msra.mxu0 0.0
    %442 = vmatprep.subr.mxu0 0.0
    %443 = vmatpush1.msra.mxu0 0.0
    %444 = vmatprep.subr.mxu0 0.0
    %445 = vmatpush1.msra.mxu0 0.0
    %446 = vmatprep.subr.mxu0 0.0
    %447 = vmatpush1.msra.mxu0 0.0
    %448 = vmatprep.subr.mxu0 0.0
    %449 = vmatpush1.msra.mxu0 0.0
    %450 = vmatprep.subr.mxu0 0.0
    %451 = vmatpush1.msra.mxu0 0.0
    %452 = vmatprep.subr.mxu0 0.0
    %453 = vmatpush1.msra.mxu0 0.0
    %454 = vmatprep.subr.mxu0 0.0
    %455 = vmatpush1.msra.mxu0 0.0
    %456 = vmatprep.subr.mxu0 0.0
    %457 = vmatpush1.msra.mxu0 %v41
    %458 = vmatprep.subr.mxu0 0.0
    %459 = vmatpush1.msra.mxu0 %v40
    %460 = vmatprep.subr.mxu0 0.0
    %461 = vmatpush2.msra.mxu0 0.0
    %462 = vmatprep.subr.mxu0 0.0
    %463 = vmatpush2.msra.mxu0 0.0
    %464 = vmatprep.subr.mxu0 0.0
    %465 = vmatpush2.msra.mxu0 0.0
    %466 = vmatprep.subr.mxu0 0.0
    %467 = vmatpush2.msra.mxu0 0.0
    %468 = vmatprep.subr.mxu0 0.0
    %469 = vmatpush2.msra.mxu0 0.0
    %470 = vmatprep.subr.mxu0 0.0
    %471 = vmatpush2.msra.mxu0 0.0
    %472 = vmatprep.subr.mxu0 0.0
    %473 = vmatpush2.msra.mxu0 0.0
    %474 = vmatprep.subr.mxu0 0.0
    %475 = vmatpush2.msra.mxu0 0.0
    %476 = vmatprep.subr.mxu0 0.0
    %477 = vmatpush2.msra.mxu0 0.0
    %478 = vmatprep.subr.mxu0 0.0
    %479 = vmatpush2.msra.mxu0 0.0
    %480 = vmatprep.subr.mxu0 0.0
    %481 = vmatpush2.msra.mxu0 0.0
    %482 = vmatprep.subr.mxu0 0.0
    %483 = vmatpush2.msra.mxu0 0.0
    %484 = vmatprep.subr.mxu0 0.0
    %485 = vmatpush2.msra.mxu0 0.0
    %486 = vmatprep.subr.mxu0 0.0
    %487 = vmatpush2.msra.mxu0 0.0
    %488 = vmatprep.subr.mxu0 0.0
    %489 = vmatpush2.msra.mxu0 0.0
    %490 = vmatprep.subr.mxu0 0.0
    %491 = vmatpush2.msra.mxu0 0.0
    %492 = vmatprep.mubr.f32.mxu0 0.0
    %493 = vmatmul.mubr.f32.gmra.mxu0 %v426
    %v494 = vpop.f32.mrf.mxu0
    %v495 = vadd.f32 0.0, %v494
    %v496 = vpop.f32.mrf.mxu0
    %497 = vdwg.mxu0
    %v498 = vadd.s32 %v43, 8
    %vm499 = vcmp.ge.s32.totalorder %v498, 0
    %vm500 = vcmp.lt.s32.totalorder %v498, 8
    %vm501 = vmand %vm410, %vm418
    %vm502 = vmand %vm499, %vm500
    %v503 = vsel %vm501, 1, 0
    %v504 = vsel %vm502, 1, 0
    %vm505 = vcmp.eq.s32.totalorder %v503, 1
    %vm506 = vcmp.eq.s32.totalorder %v504, 1
    %v507 = vsel %vm505, %v329, 0.0
    %v508 = vsel %vm506, %v329, 0.0
    %vm509 = vcmp.ge.s32.totalorder %v43, 8
    %vm510 = vcmp.ge.s32.totalorder %v498, 8
    %vm511 = vcmp.lt.s32.totalorder %v43, 16
    %vm512 = vcmp.lt.s32.totalorder %v498, 16
    %vm513 = vmand %vm509, %vm511
    %vm514 = vmand %vm510, %vm512
    %v515 = vsel %vm513, 1, 0
    %v516 = vsel %vm514, 1, 0
    %vm517 = vcmp.eq.s32.totalorder %v515, 1
    %vm518 = vcmp.eq.s32.totalorder %v516, 1
    %v519 = vsel %vm517, %v353, %v507
    %v520 = vsel %vm518, %v353, %v508
    %v521 = vsub.s32 %v43, 8
    %v522 = vsel %vm513, %v521, %v43
    %v523 = vsel %vm514, %v43, %v498
    %v524 = vmax.f32 %v519, 0.01
    %v525 = vmax.f32 %v520, 0.01
    %v526 = vmul.f32 %v524, %v378
    %v527 = vmul.f32 %v525, %v378
    %v528 = vcvt.s32.f32 %v522
    %v529 = vcvt.s32.f32 %v523
    %v530 = vmul.f32 %v528, %v384
    %v531 = vmul.f32 %v529, %v384
    %v532 = vsub.f32 %v530, %v519
    %v533 = vsub.f32 %v531, %v520
    %v534 = vmul.f32 %v532, %v532
    %v535 = vmul.f32 %v533, %v533
    %v536 = vsub.f32 0.0, %v534
    %v537 = vsub.f32 0.0, %v535
    %v538 = vmul.f32 %v526, 2.0
    %v539 = vmul.f32 %v527, 2.0
    %v540 = vmul.f32 %v538, %v526
    %v541 = vmul.f32 %v539, %v527
    %544 = vrot.lane.b32.xlu0 %v540, 124
    %v545 = vpop.permute.xlu0 %544
    %546 = vrot.lane.b32.xlu0 %v541, 124
    %v547 = vpop.permute.xlu0 %546
    %v550 = vrcp.pop %v545
    %v551 = vmul.f32 %v536, %v550
    %v552 = vrcp.pop %v547
    %v553 = vmul.f32 %v537, %v552
    %v554 = vmul.f32 %v551, 1.442695
    %v555 = vpow.pop %v554
    %v556 = vmul.f32 %v553, 1.442695
    %v557 = vpow.pop %v556
    %vm558 = vcmask 31744
    %v559 = vsel %vm558, %v555, -inf
    %v560 = vrot.slane %v559, 4
    %v561 = vmax.f32 %v559, %v560
    %v562 = vrot.slane %v561, 2
    %v563 = vmax.f32 %v561, %v562
    %v564 = vrot.slane %v563, 1
    %v565 = vmax.f32 %v563, %v564
    %v566 = vsel %vm505, %v565, 1.0
    %v567 = vsel %vm506, %v565, 1.0
    %v568 = vsel %vm558, %v557, -inf
    %v569 = vrot.slane %v568, 4
    %v570 = vmax.f32 %v568, %v569
    %v571 = vrot.slane %v570, 2
    %v572 = vmax.f32 %v570, %v571
    %v573 = vrot.slane %v572, 1
    %v574 = vmax.f32 %v572, %v573
    %v575 = vsel %vm517, %v574, %v566
    %v576 = vsel %vm518, %v574, %v567
    %v577 = vrcp.pop %v575
    %v578 = vmul.f32 %v555, %v577
    %v579 = vrcp.pop %v576
    %v580 = vmul.f32 %v557, %v579
    %v581 = vsel %vm51, 1.0, 0.0
    %v583 = vsel %vm558, %v578, 0
    %v586 = vsel %vm558, %v580, 0
    %vm588 = vcmask 1043456
    %v590 = vsel %vm588, %v581, 0
    %592 = vmatprep.subr.mxu0 0.0
    %593 = vmatpush1.msra.mxu0 0.0
    %594 = vmatprep.subr.mxu0 0.0
    %595 = vmatpush1.msra.mxu0 0.0
    %596 = vmatprep.subr.mxu0 0.0
    %597 = vmatpush1.msra.mxu0 0.0
    %598 = vmatprep.subr.mxu0 0.0
    %599 = vmatpush1.msra.mxu0 0.0
    %600 = vmatprep.subr.mxu0 0.0
    %601 = vmatpush1.msra.mxu0 0.0
    %602 = vmatprep.subr.mxu0 0.0
    %603 = vmatpush1.msra.mxu0 0.0
    %604 = vmatprep.subr.mxu0 0.0
    %605 = vmatpush1.msra.mxu0 0.0
    %606 = vmatprep.subr.mxu0 0.0
    %607 = vmatpush1.msra.mxu0 0.0
    %608 = vmatprep.subr.mxu0 0.0
    %609 = vmatpush1.msra.mxu0 0.0
    %610 = vmatprep.subr.mxu0 0.0
    %611 = vmatpush1.msra.mxu0 0.0
    %612 = vmatprep.subr.mxu0 0.0
    %613 = vmatpush1.msra.mxu0 0.0
    %614 = vmatprep.subr.mxu0 0.0
    %615 = vmatpush1.msra.mxu0 0.0
    %616 = vmatprep.subr.mxu0 0.0
    %617 = vmatpush1.msra.mxu0 0.0
    %618 = vmatprep.subr.mxu0 0.0
    %619 = vmatpush1.msra.mxu0 0.0
    %620 = vmatprep.subr.mxu0 0.0
    %621 = vmatpush1.msra.mxu0 0.0
    %622 = vmatprep.subr.mxu0 0.0
    %623 = vmatpush1.msra.mxu0 %v590
    %624 = vmatprep.subr.mxu0 0.0
    %625 = vmatpush2.msra.mxu0 0.0
    %626 = vmatprep.subr.mxu0 0.0
    %627 = vmatpush2.msra.mxu0 0.0
    %628 = vmatprep.subr.mxu0 0.0
    %629 = vmatpush2.msra.mxu0 0.0
    %630 = vmatprep.subr.mxu0 0.0
    %631 = vmatpush2.msra.mxu0 0.0
    %632 = vmatprep.subr.mxu0 0.0
    %633 = vmatpush2.msra.mxu0 0.0
    %634 = vmatprep.subr.mxu0 0.0
    %635 = vmatpush2.msra.mxu0 0.0
    %636 = vmatprep.subr.mxu0 0.0
    %637 = vmatpush2.msra.mxu0 0.0
    %638 = vmatprep.subr.mxu0 0.0
    %639 = vmatpush2.msra.mxu0 0.0
    %640 = vmatprep.subr.mxu0 0.0
    %641 = vmatpush2.msra.mxu0 0.0
    %642 = vmatprep.subr.mxu0 0.0
    %643 = vmatpush2.msra.mxu0 0.0
    %644 = vmatprep.subr.mxu0 0.0
    %645 = vmatpush2.msra.mxu0 0.0
    %646 = vmatprep.subr.mxu0 0.0
    %647 = vmatpush2.msra.mxu0 0.0
    %648 = vmatprep.subr.mxu0 0.0
    %649 = vmatpush2.msra.mxu0 0.0
    %650 = vmatprep.subr.mxu0 0.0
    %651 = vmatpush2.msra.mxu0 0.0
    %652 = vmatprep.subr.mxu0 0.0
    %653 = vmatpush2.msra.mxu0 0.0
    %654 = vmatprep.subr.mxu0 0.0
    %655 = vmatpush2.msra.mxu0 0.0
    %656 = vmatprep.mubr.f32.mxu0 0.0
    %657 = vmatmul.mubr.f32.gmra.mxu0 %v583
    %v658 = vpop.f32.mrf.mxu0
    %v659 = vadd.f32 0.0, %v658
    %v660 = vpop.f32.mrf.mxu0
    %661 = vmatprep.mubr.f32.mxu0 0.0
    %662 = vmatmul.mubr.f32.gmra.mxu0 %v586
    %v663 = vpop.f32.mrf.mxu0
    %v664 = vadd.f32 0.0, %v663
    %v665 = vpop.f32.mrf.mxu0
    %666 = vdwg.mxu0
    %v667 = vadd.s32 %v43, 16
    %v668 = vadd.s32 %v43, 24
    %v669 = vadd.s32 %v43, 32
    %v670 = vadd.s32 %v43, 40
    %v671 = vadd.s32 %v43, 48
    %v672 = vadd.s32 %v43, 56
    %vm673 = vcmp.ge.s32.totalorder %v667, 0
    %vm674 = vcmp.ge.s32.totalorder %v668, 0
    %vm675 = vcmp.ge.s32.totalorder %v669, 0
    %vm676 = vcmp.ge.s32.totalorder %v670, 0
    %vm677 = vcmp.ge.s32.totalorder %v671, 0
    %vm678 = vcmp.ge.s32.totalorder %v672, 0
    %vm679 = vcmp.lt.s32.totalorder %v667, 16
    %vm680 = vcmp.lt.s32.totalorder %v668, 16
    %vm681 = vcmp.lt.s32.totalorder %v669, 16
    %vm682 = vcmp.lt.s32.totalorder %v670, 16
    %vm683 = vcmp.lt.s32.totalorder %v671, 16
    %vm684 = vcmp.lt.s32.totalorder %v672, 16
    %vm685 = vmand %vm410, %vm511
    %vm686 = vmand %vm499, %vm512
    %vm687 = vmand %vm673, %vm679
    %vm688 = vmand %vm674, %vm680
    %vm689 = vmand %vm675, %vm681
    %vm690 = vmand %vm676, %vm682
    %vm691 = vmand %vm677, %vm683
    %vm692 = vmand %vm678, %vm684
    %vm693 = vmand %vm685, %vm413
    %vm694 = vmand %vm686, %vm413
    %vm695 = vmand %vm687, %vm413
    %vm696 = vmand %vm688, %vm413
    %vm697 = vmand %vm689, %vm413
    %vm698 = vmand %vm690, %vm413
    %vm699 = vmand %vm691, %vm413
    %vm700 = vmand %vm692, %vm413
    %vm701 = vmand %vm693, %vm415
    %vm702 = vmand %vm694, %vm415
    %vm703 = vmand %vm695, %vm415
    %vm704 = vmand %vm696, %vm415
    %vm705 = vmand %vm697, %vm415
    %vm706 = vmand %vm698, %vm415
    %vm707 = vmand %vm699, %vm415
    %vm708 = vmand %vm700, %vm415
    %vm709 = vcmp.ge.s32.totalorder %v43, 16
    %vm710 = vcmp.ge.s32.totalorder %v498, 16
    %vm711 = vcmp.ge.s32.totalorder %v667, 16
    %vm712 = vcmp.ge.s32.totalorder %v668, 16
    %vm713 = vcmp.ge.s32.totalorder %v669, 16
    %vm714 = vcmp.ge.s32.totalorder %v670, 16
    %vm715 = vcmp.ge.s32.totalorder %v671, 16
    %vm716 = vcmp.ge.s32.totalorder %v672, 16
    %vm717 = vcmp.lt.s32.totalorder %v43, 32
    %vm718 = vcmp.lt.s32.totalorder %v498, 32
    %vm719 = vcmp.lt.s32.totalorder %v667, 32
    %vm720 = vcmp.lt.s32.totalorder %v668, 32
    %vm721 = vcmp.lt.s32.totalorder %v669, 32
    %vm722 = vcmp.lt.s32.totalorder %v670, 32
    %vm723 = vcmp.lt.s32.totalorder %v671, 32
    %vm724 = vcmp.lt.s32.totalorder %v672, 32
    %vm725 = vmand %vm709, %vm717
    %vm726 = vmand %vm710, %vm718
    %vm727 = vmand %vm711, %vm719
    %vm728 = vmand %vm712, %vm720
    %vm729 = vmand %vm713, %vm721
    %vm730 = vmand %vm714, %vm722
    %vm731 = vmand %vm715, %vm723
    %vm732 = vmand %vm716, %vm724
    %vm733 = vmand %vm725, %vm380
    %vm734 = vmand %vm726, %vm380
    %vm735 = vmand %vm727, %vm380
    %vm736 = vmand %vm728, %vm380
    %vm737 = vmand %vm729, %vm380
    %vm738 = vmand %vm730, %vm380
    %vm739 = vmand %vm731, %vm380
    %vm740 = vmand %vm732, %vm380
    %vm741 = vmand %vm733, %vm421
    %vm742 = vmand %vm734, %vm421
    %vm743 = vmand %vm735, %vm421
    %vm744 = vmand %vm736, %vm421
    %vm745 = vmand %vm737, %vm421
    %vm746 = vmand %vm738, %vm421
    %vm747 = vmand %vm739, %vm421
    %vm748 = vmand %vm740, %vm421
    %vm749 = vmor %vm701, %vm741
    %vm750 = vmor %vm702, %vm742
    %vm751 = vmor %vm703, %vm743
    %vm752 = vmor %vm704, %vm744
    %vm753 = vmor %vm705, %vm745
    %vm754 = vmor %vm706, %vm746
    %vm755 = vmor %vm707, %vm747
    %vm756 = vmor %vm708, %vm748
    %vm757 = vcmp.ge.s32.totalorder %v43, 32
    %vm758 = vcmp.ge.s32.totalorder %v498, 32
    %vm759 = vcmp.ge.s32.totalorder %v667, 32
    %vm760 = vcmp.ge.s32.totalorder %v668, 32
    %vm761 = vcmp.ge.s32.totalorder %v669, 32
    %vm762 = vcmp.ge.s32.totalorder %v670, 32
    %vm763 = vcmp.ge.s32.totalorder %v671, 32
    %vm764 = vcmp.ge.s32.totalorder %v672, 32
    %vm765 = vcmp.lt.s32.totalorder %v43, 48
    %vm766 = vcmp.lt.s32.totalorder %v498, 48
    %vm767 = vcmp.lt.s32.totalorder %v667, 48
    %vm768 = vcmp.lt.s32.totalorder %v668, 48
    %vm769 = vcmp.lt.s32.totalorder %v669, 48
    %vm770 = vcmp.lt.s32.totalorder %v670, 48
    %vm771 = vcmp.lt.s32.totalorder %v671, 48
    %vm772 = vcmp.lt.s32.totalorder %v672, 48
    %vm773 = vmand %vm757, %vm765
    %vm774 = vmand %vm758, %vm766
    %vm775 = vmand %vm759, %vm767
    %vm776 = vmand %vm760, %vm768
    %vm777 = vmand %vm761, %vm769
    %vm778 = vmand %vm762, %vm770
    %vm779 = vmand %vm763, %vm771
    %vm780 = vmand %vm764, %vm772
    %vm781 = vcmp.ge.s32.totalorder %v45, 16
    %vm782 = vmand %vm773, %vm781
    %vm783 = vmand %vm774, %vm781
    %vm784 = vmand %vm775, %vm781
    %vm785 = vmand %vm776, %vm781
    %vm786 = vmand %vm777, %vm781
    %vm787 = vmand %vm778, %vm781
    %vm788 = vmand %vm779, %vm781
    %vm789 = vmand %vm780, %vm781
    %vm790 = vcmp.lt.s32.totalorder %v45, 24
    %vm791 = vmand %vm782, %vm790
    %vm792 = vmand %vm783, %vm790
    %vm793 = vmand %vm784, %vm790
    %vm794 = vmand %vm785, %vm790
    %vm795 = vmand %vm786, %vm790
    %vm796 = vmand %vm787, %vm790
    %vm797 = vmand %vm788, %vm790
    %vm798 = vmand %vm789, %vm790
    %vm799 = vmor %vm749, %vm791
    %vm800 = vmor %vm750, %vm792
    %vm801 = vmor %vm751, %vm793
    %vm802 = vmor %vm752, %vm794
    %vm803 = vmor %vm753, %vm795
    %vm804 = vmor %vm754, %vm796
    %vm805 = vmor %vm755, %vm797
    %vm806 = vmor %vm756, %vm798
    %vm807 = vcmp.ge.s32.totalorder %v43, 48
    %vm808 = vcmp.ge.s32.totalorder %v498, 48
    %vm809 = vcmp.ge.s32.totalorder %v667, 48
    %vm810 = vcmp.ge.s32.totalorder %v668, 48
    %vm811 = vcmp.ge.s32.totalorder %v669, 48
    %vm812 = vcmp.ge.s32.totalorder %v670, 48
    %vm813 = vcmp.ge.s32.totalorder %v671, 48
    %vm814 = vcmp.ge.s32.totalorder %v672, 48
    %vm815 = vcmp.lt.s32.totalorder %v43, 64
    %vm816 = vcmp.lt.s32.totalorder %v498, 64
    %vm817 = vcmp.lt.s32.totalorder %v667, 64
    %vm818 = vcmp.lt.s32.totalorder %v668, 64
    %vm819 = vcmp.lt.s32.totalorder %v669, 64
    %vm820 = vcmp.lt.s32.totalorder %v670, 64
    %vm821 = vcmp.lt.s32.totalorder %v671, 64
    %vm822 = vcmp.lt.s32.totalorder %v672, 64
    %vm823 = vmand %vm807, %vm815
    %vm824 = vmand %vm808, %vm816
    %vm825 = vmand %vm809, %vm817
    %vm826 = vmand %vm810, %vm818
    %vm827 = vmand %vm811, %vm819
    %vm828 = vmand %vm812, %vm820
    %vm829 = vmand %vm813, %vm821
    %vm830 = vmand %vm814, %vm822
    %vm831 = vcmp.ge.s32.totalorder %v45, 24
    %vm832 = vmand %vm823, %vm831
    %vm833 = vmand %vm824, %vm831
    %vm834 = vmand %vm825, %vm831
    %vm835 = vmand %vm826, %vm831
    %vm836 = vmand %vm827, %vm831
    %vm837 = vmand %vm828, %vm831
    %vm838 = vmand %vm829, %vm831
    %vm839 = vmand %vm830, %vm831
    %vm840 = vcmp.lt.s32.totalorder %v45, 32
    %vm841 = vmand %vm832, %vm840
    %vm842 = vmand %vm833, %vm840
    %vm843 = vmand %vm834, %vm840
    %vm844 = vmand %vm835, %vm840
    %vm845 = vmand %vm836, %vm840
    %vm846 = vmand %vm837, %vm840
    %vm847 = vmand %vm838, %vm840
    %vm848 = vmand %vm839, %vm840
    %vm849 = vmor %vm799, %vm841
    %vm850 = vmor %vm800, %vm842
    %vm851 = vmor %vm801, %vm843
    %vm852 = vmor %vm802, %vm844
    %vm853 = vmor %vm803, %vm845
    %vm854 = vmor %vm804, %vm846
    %vm855 = vmor %vm805, %vm847
    %vm856 = vmor %vm806, %vm848
    %v857 = vsel %vm849, 1.0, 0.0
    %v858 = vsel %vm850, 1.0, 0.0
    %v859 = vsel %vm851, 1.0, 0.0
    %v860 = vsel %vm852, 1.0, 0.0
    %v861 = vsel %vm853, 1.0, 0.0
    %v862 = vsel %vm854, 1.0, 0.0
    %v863 = vsel %vm855, 1.0, 0.0
    %v864 = vsel %vm856, 1.0, 0.0
    %vm865 = vcmp.lt.s32.totalorder %v667, 8
    %vm866 = vcmp.lt.s32.totalorder %v668, 8
    %vm867 = vcmp.lt.s32.totalorder %v669, 8
    %vm868 = vcmp.lt.s32.totalorder %v670, 8
    %vm869 = vcmp.lt.s32.totalorder %v671, 8
    %vm870 = vcmp.lt.s32.totalorder %v672, 8
    %vm871 = vmand %vm673, %vm865
    %vm872 = vmand %vm674, %vm866
    %vm873 = vmand %vm675, %vm867
    %vm874 = vmand %vm676, %vm868
    %vm875 = vmand %vm677, %vm869
    %vm876 = vmand %vm678, %vm870
    %vm877 = vmand %vm501, %vm413
    %vm878 = vmand %vm502, %vm413
    %vm879 = vmand %vm871, %vm413
    %vm880 = vmand %vm872, %vm413
    %vm881 = vmand %vm873, %vm413
    %vm882 = vmand %vm874, %vm413
    %vm883 = vmand %vm875, %vm413
    %vm884 = vmand %vm876, %vm413
    %vm885 = vmand %vm877, %vm415
    %vm886 = vmand %vm878, %vm415
    %vm887 = vmand %vm879, %vm415
    %vm888 = vmand %vm880, %vm415
    %vm889 = vmand %vm881, %vm415
    %vm890 = vmand %vm882, %vm415
    %vm891 = vmand %vm883, %vm415
    %vm892 = vmand %vm884, %vm415
    %vm893 = vcmp.ge.s32.totalorder %v667, 8
    %vm894 = vcmp.ge.s32.totalorder %v668, 8
    %vm895 = vcmp.ge.s32.totalorder %v669, 8
    %vm896 = vcmp.ge.s32.totalorder %v670, 8
    %vm897 = vcmp.ge.s32.totalorder %v671, 8
    %vm898 = vcmp.ge.s32.totalorder %v672, 8
    %vm899 = vmand %vm893, %vm679
    %vm900 = vmand %vm894, %vm680
    %vm901 = vmand %vm895, %vm681
    %vm902 = vmand %vm896, %vm682
    %vm903 = vmand %vm897, %vm683
    %vm904 = vmand %vm898, %vm684
    %vm905 = vmand %vm513, %vm380
    %vm906 = vmand %vm514, %vm380
    %vm907 = vmand %vm899, %vm380
    %vm908 = vmand %vm900, %vm380
    %vm909 = vmand %vm901, %vm380
    %vm910 = vmand %vm902, %vm380
    %vm911 = vmand %vm903, %vm380
    %vm912 = vmand %vm904, %vm380
    %vm913 = vmand %vm905, %vm421
    %vm914 = vmand %vm906, %vm421
    %vm915 = vmand %vm907, %vm421
    %vm916 = vmand %vm908, %vm421
    %vm917 = vmand %vm909, %vm421
    %vm918 = vmand %vm910, %vm421
    %vm919 = vmand %vm911, %vm421
    %vm920 = vmand %vm912, %vm421
    %vm921 = vmor %vm885, %vm913
    %vm922 = vmor %vm886, %vm914
    %vm923 = vmor %vm887, %vm915
    %vm924 = vmor %vm888, %vm916
    %vm925 = vmor %vm889, %vm917
    %vm926 = vmor %vm890, %vm918
    %vm927 = vmor %vm891, %vm919
    %vm928 = vmor %vm892, %vm920
    %vm929 = vcmp.lt.s32.totalorder %v43, 24
    %vm930 = vcmp.lt.s32.totalorder %v498, 24
    %vm931 = vcmp.lt.s32.totalorder %v667, 24
    %vm932 = vcmp.lt.s32.totalorder %v668, 24
    %vm933 = vcmp.lt.s32.totalorder %v669, 24
    %vm934 = vcmp.lt.s32.totalorder %v670, 24
    %vm935 = vcmp.lt.s32.totalorder %v671, 24
    %vm936 = vcmp.lt.s32.totalorder %v672, 24
    %vm937 = vmand %vm709, %vm929
    %vm938 = vmand %vm710, %vm930
    %vm939 = vmand %vm711, %vm931
    %vm940 = vmand %vm712, %vm932
    %vm941 = vmand %vm713, %vm933
    %vm942 = vmand %vm714, %vm934
    %vm943 = vmand %vm715, %vm935
    %vm944 = vmand %vm716, %vm936
    %vm945 = vmand %vm937, %vm781
    %vm946 = vmand %vm938, %vm781
    %vm947 = vmand %vm939, %vm781
    %vm948 = vmand %vm940, %vm781
    %vm949 = vmand %vm941, %vm781
    %vm950 = vmand %vm942, %vm781
    %vm951 = vmand %vm943, %vm781
    %vm952 = vmand %vm944, %vm781
    %vm953 = vmand %vm945, %vm790
    %vm954 = vmand %vm946, %vm790
    %vm955 = vmand %vm947, %vm790
    %vm956 = vmand %vm948, %vm790
    %vm957 = vmand %vm949, %vm790
    %vm958 = vmand %vm950, %vm790
    %vm959 = vmand %vm951, %vm790
    %vm960 = vmand %vm952, %vm790
    %vm961 = vmor %vm921, %vm953
    %vm962 = vmor %vm922, %vm954
    %vm963 = vmor %vm923, %vm955
    %vm964 = vmor %vm924, %vm956
    %vm965 = vmor %vm925, %vm957
    %vm966 = vmor %vm926, %vm958
    %vm967 = vmor %vm927, %vm959
    %vm968 = vmor %vm928, %vm960
    %vm969 = vcmp.ge.s32.totalorder %v43, 24
    %vm970 = vcmp.ge.s32.totalorder %v498, 24
    %vm971 = vcmp.ge.s32.totalorder %v667, 24
    %vm972 = vcmp.ge.s32.totalorder %v668, 24
    %vm973 = vcmp.ge.s32.totalorder %v669, 24
    %vm974 = vcmp.ge.s32.totalorder %v670, 24
    %vm975 = vcmp.ge.s32.totalorder %v671, 24
    %vm976 = vcmp.ge.s32.totalorder %v672, 24
    %vm977 = vmand %vm969, %vm717
    %vm978 = vmand %vm970, %vm718
    %vm979 = vmand %vm971, %vm719
    %vm980 = vmand %vm972, %vm720
    %vm981 = vmand %vm973, %vm721
    %vm982 = vmand %vm974, %vm722
    %vm983 = vmand %vm975, %vm723
    %vm984 = vmand %vm976, %vm724
    %vm985 = vmand %vm977, %vm831
    %vm986 = vmand %vm978, %vm831
    %vm987 = vmand %vm979, %vm831
    %vm988 = vmand %vm980, %vm831
    %vm989 = vmand %vm981, %vm831
    %vm990 = vmand %vm982, %vm831
    %vm991 = vmand %vm983, %vm831
    %vm992 = vmand %vm984, %vm831
    %vm993 = vmand %vm985, %vm840
    %vm994 = vmand %vm986, %vm840
    %vm995 = vmand %vm987, %vm840
    %vm996 = vmand %vm988, %vm840
    %vm997 = vmand %vm989, %vm840
    %vm998 = vmand %vm990, %vm840
    %vm999 = vmand %vm991, %vm840
    %vm1000 = vmand %vm992, %vm840
    %vm1001 = vmor %vm961, %vm993
    %vm1002 = vmor %vm962, %vm994
    %vm1003 = vmor %vm963, %vm995
    %vm1004 = vmor %vm964, %vm996
    %vm1005 = vmor %vm965, %vm997
    %vm1006 = vmor %vm966, %vm998
    %vm1007 = vmor %vm967, %vm999
    %vm1008 = vmor %vm968, %vm1000
    %vm1009 = vcmp.lt.s32.totalorder %v43, 40
    %vm1010 = vcmp.lt.s32.totalorder %v498, 40
    %vm1011 = vcmp.lt.s32.totalorder %v667, 40
    %vm1012 = vcmp.lt.s32.totalorder %v668, 40
    %vm1013 = vcmp.lt.s32.totalorder %v669, 40
    %vm1014 = vcmp.lt.s32.totalorder %v670, 40
    %vm1015 = vcmp.lt.s32.totalorder %v671, 40
    %vm1016 = vcmp.lt.s32.totalorder %v672, 40
    %vm1017 = vmand %vm757, %vm1009
    %vm1018 = vmand %vm758, %vm1010
    %vm1019 = vmand %vm759, %vm1011
    %vm1020 = vmand %vm760, %vm1012
    %vm1021 = vmand %vm761, %vm1013
    %vm1022 = vmand %vm762, %vm1014
    %vm1023 = vmand %vm763, %vm1015
    %vm1024 = vmand %vm764, %vm1016
    %vm1025 = vcmp.ge.s32.totalorder %v45, 32
    %vm1026 = vmand %vm1017, %vm1025
    %vm1027 = vmand %vm1018, %vm1025
    %vm1028 = vmand %vm1019, %vm1025
    %vm1029 = vmand %vm1020, %vm1025
    %vm1030 = vmand %vm1021, %vm1025
    %vm1031 = vmand %vm1022, %vm1025
    %vm1032 = vmand %vm1023, %vm1025
    %vm1033 = vmand %vm1024, %vm1025
    %vm1034 = vcmp.lt.s32.totalorder %v45, 40
    %vm1035 = vmand %vm1026, %vm1034
    %vm1036 = vmand %vm1027, %vm1034
    %vm1037 = vmand %vm1028, %vm1034
    %vm1038 = vmand %vm1029, %vm1034
    %vm1039 = vmand %vm1030, %vm1034
    %vm1040 = vmand %vm1031, %vm1034
    %vm1041 = vmand %vm1032, %vm1034
    %vm1042 = vmand %vm1033, %vm1034
    %vm1043 = vmor %vm1001, %vm1035
    %vm1044 = vmor %vm1002, %vm1036
    %vm1045 = vmor %vm1003, %vm1037
    %vm1046 = vmor %vm1004, %vm1038
    %vm1047 = vmor %vm1005, %vm1039
    %vm1048 = vmor %vm1006, %vm1040
    %vm1049 = vmor %vm1007, %vm1041
    %vm1050 = vmor %vm1008, %vm1042
    %vm1051 = vcmp.ge.s32.totalorder %v43, 40
    %vm1052 = vcmp.ge.s32.totalorder %v498, 40
    %vm1053 = vcmp.ge.s32.totalorder %v667, 40
    %vm1054 = vcmp.ge.s32.totalorder %v668, 40
    %vm1055 = vcmp.ge.s32.totalorder %v669, 40
    %vm1056 = vcmp.ge.s32.totalorder %v670, 40
    %vm1057 = vcmp.ge.s32.totalorder %v671, 40
    %vm1058 = vcmp.ge.s32.totalorder %v672, 40
    %vm1059 = vmand %vm1051, %vm765
    %vm1060 = vmand %vm1052, %vm766
    %vm1061 = vmand %vm1053, %vm767
    %vm1062 = vmand %vm1054, %vm768
    %vm1063 = vmand %vm1055, %vm769
    %vm1064 = vmand %vm1056, %vm770
    %vm1065 = vmand %vm1057, %vm771
    %vm1066 = vmand %vm1058, %vm772
    %vm1067 = vcmp.ge.s32.totalorder %v45, 40
    %vm1068 = vmand %vm1059, %vm1067
    %vm1069 = vmand %vm1060, %vm1067
    %vm1070 = vmand %vm1061, %vm1067
    %vm1071 = vmand %vm1062, %vm1067
    %vm1072 = vmand %vm1063, %vm1067
    %vm1073 = vmand %vm1064, %vm1067
    %vm1074 = vmand %vm1065, %vm1067
    %vm1075 = vmand %vm1066, %vm1067
    %vm1076 = vcmp.lt.s32.totalorder %v45, 48
    %vm1077 = vmand %vm1068, %vm1076
    %vm1078 = vmand %vm1069, %vm1076
    %vm1079 = vmand %vm1070, %vm1076
    %vm1080 = vmand %vm1071, %vm1076
    %vm1081 = vmand %vm1072, %vm1076
    %vm1082 = vmand %vm1073, %vm1076
    %vm1083 = vmand %vm1074, %vm1076
    %vm1084 = vmand %vm1075, %vm1076
    %vm1085 = vmor %vm1043, %vm1077
    %vm1086 = vmor %vm1044, %vm1078
    %vm1087 = vmor %vm1045, %vm1079
    %vm1088 = vmor %vm1046, %vm1080
    %vm1089 = vmor %vm1047, %vm1081
    %vm1090 = vmor %vm1048, %vm1082
    %vm1091 = vmor %vm1049, %vm1083
    %vm1092 = vmor %vm1050, %vm1084
    %vm1093 = vcmp.lt.s32.totalorder %v43, 56
    %vm1094 = vcmp.lt.s32.totalorder %v498, 56
    %vm1095 = vcmp.lt.s32.totalorder %v667, 56
    %vm1096 = vcmp.lt.s32.totalorder %v668, 56
    %vm1097 = vcmp.lt.s32.totalorder %v669, 56
    %vm1098 = vcmp.lt.s32.totalorder %v670, 56
    %vm1099 = vcmp.lt.s32.totalorder %v671, 56
    %vm1100 = vcmp.lt.s32.totalorder %v672, 56
    %vm1101 = vmand %vm807, %vm1093
    %vm1102 = vmand %vm808, %vm1094
    %vm1103 = vmand %vm809, %vm1095
    %vm1104 = vmand %vm810, %vm1096
    %vm1105 = vmand %vm811, %vm1097
    %vm1106 = vmand %vm812, %vm1098
    %vm1107 = vmand %vm813, %vm1099
    %vm1108 = vmand %vm814, %vm1100
    %vm1109 = vcmp.ge.s32.totalorder %v45, 48
    %vm1110 = vmand %vm1101, %vm1109
    %vm1111 = vmand %vm1102, %vm1109
    %vm1112 = vmand %vm1103, %vm1109
    %vm1113 = vmand %vm1104, %vm1109
    %vm1114 = vmand %vm1105, %vm1109
    %vm1115 = vmand %vm1106, %vm1109
    %vm1116 = vmand %vm1107, %vm1109
    %vm1117 = vmand %vm1108, %vm1109
    %vm1118 = vcmp.lt.s32.totalorder %v45, 56
    %vm1119 = vmand %vm1110, %vm1118
    %vm1120 = vmand %vm1111, %vm1118
    %vm1121 = vmand %vm1112, %vm1118
    %vm1122 = vmand %vm1113, %vm1118
    %vm1123 = vmand %vm1114, %vm1118
    %vm1124 = vmand %vm1115, %vm1118
    %vm1125 = vmand %vm1116, %vm1118
    %vm1126 = vmand %vm1117, %vm1118
    %vm1127 = vmor %vm1085, %vm1119
    %vm1128 = vmor %vm1086, %vm1120
    %vm1129 = vmor %vm1087, %vm1121
    %vm1130 = vmor %vm1088, %vm1122
    %vm1131 = vmor %vm1089, %vm1123
    %vm1132 = vmor %vm1090, %vm1124
    %vm1133 = vmor %vm1091, %vm1125
    %vm1134 = vmor %vm1092, %vm1126
    %vm1135 = vcmp.ge.s32.totalorder %v43, 56
    %vm1136 = vcmp.ge.s32.totalorder %v498, 56
    %vm1137 = vcmp.ge.s32.totalorder %v667, 56
    %vm1138 = vcmp.ge.s32.totalorder %v668, 56
    %vm1139 = vcmp.ge.s32.totalorder %v669, 56
    %vm1140 = vcmp.ge.s32.totalorder %v670, 56
    %vm1141 = vcmp.ge.s32.totalorder %v671, 56
    %vm1142 = vcmp.ge.s32.totalorder %v672, 56
    %vm1143 = vmand %vm1135, %vm815
    %vm1144 = vmand %vm1136, %vm816
    %vm1145 = vmand %vm1137, %vm817
    %vm1146 = vmand %vm1138, %vm818
    %vm1147 = vmand %vm1139, %vm819
    %vm1148 = vmand %vm1140, %vm820
    %vm1149 = vmand %vm1141, %vm821
    %vm1150 = vmand %vm1142, %vm822
    %vm1151 = vcmp.ge.s32.totalorder %v45, 56
    %vm1152 = vmand %vm1143, %vm1151
    %vm1153 = vmand %vm1144, %vm1151
    %vm1154 = vmand %vm1145, %vm1151
    %vm1155 = vmand %vm1146, %vm1151
    %vm1156 = vmand %vm1147, %vm1151
    %vm1157 = vmand %vm1148, %vm1151
    %vm1158 = vmand %vm1149, %vm1151
    %vm1159 = vmand %vm1150, %vm1151
    %vm1160 = vcmp.lt.s32.totalorder %v45, 64
    %vm1161 = vmand %vm1152, %vm1160
    %vm1162 = vmand %vm1153, %vm1160
    %vm1163 = vmand %vm1154, %vm1160
    %vm1164 = vmand %vm1155, %vm1160
    %vm1165 = vmand %vm1156, %vm1160
    %vm1166 = vmand %vm1157, %vm1160
    %vm1167 = vmand %vm1158, %vm1160
    %vm1168 = vmand %vm1159, %vm1160
    %vm1169 = vmor %vm1127, %vm1161
    %vm1170 = vmor %vm1128, %vm1162
    %vm1171 = vmor %vm1129, %vm1163
    %vm1172 = vmor %vm1130, %vm1164
    %vm1173 = vmor %vm1131, %vm1165
    %vm1174 = vmor %vm1132, %vm1166
    %vm1175 = vmor %vm1133, %vm1167
    %vm1176 = vmor %vm1134, %vm1168
    %v1177 = vsel %vm1169, 0.0, -1e+30
    %v1178 = vsel %vm1170, 0.0, -1e+30
    %v1179 = vsel %vm1171, 0.0, -1e+30
    %v1180 = vsel %vm1172, 0.0, -1e+30
    %v1181 = vsel %vm1173, 0.0, -1e+30
    %v1182 = vsel %vm1174, 0.0, -1e+30
    %v1183 = vsel %vm1175, 0.0, -1e+30
    %v1184 = vsel %vm1176, 0.0, -1e+30
    %vm1185 = vcmp.eq.s32.totalorder %v45, %v43
    %vm1186 = vcmp.eq.s32.totalorder %v45, %v498
    %v1187 = vadd.s32 %v498, 16
    %vm1188 = vcmp.eq.s32.totalorder %v45, %v667
    %vm1189 = vcmp.eq.s32.totalorder %v45, %v1187
    %vm1190 = vmor %vm1185, %vm1188
    %vm1191 = vmor %vm1186, %vm1189
    %v1192 = vadd.s32 %v498, 32
    %vm1193 = vcmp.eq.s32.totalorder %v45, %v669
    %vm1194 = vcmp.eq.s32.totalorder %v45, %v1192
    %vm1195 = vmor %vm1190, %vm1193
    %vm1196 = vmor %vm1191, %vm1194
    %v1197 = vadd.s32 %v498, 48
    %vm1198 = vcmp.eq.s32.totalorder %v45, %v671
    %vm1199 = vcmp.eq.s32.totalorder %v45, %v1197
    %vm1200 = vmor %vm1195, %vm1198
    %vm1201 = vmor %vm1196, %vm1199
    %v1202 = vsel %vm1200, 1.0, 0.0
    %v1203 = vsel %vm1201, 1.0, 0.0
    %v1204 = vld [vmem:[#allocation5 + $0x50] sm:$0xff]
    %v1205 = vld [vmem:[#allocation5 + $0x58] sm:$0xff]
    %v1206 = vld [vmem:[#allocation5 + $0x60] sm:$0xff]
    %v1207 = vld [vmem:[#allocation5 + $0x68] sm:$0xff]
    %v1208 = vld [vmem:[#allocation5 + $0x70] sm:$0xff]
    %v1209 = vld [vmem:[#allocation5 + $0x78] sm:$0xff]
    %v1210 = vld [vmem:[#allocation5 + $0x80] sm:$0xff]
    %v1211 = vld [vmem:[#allocation5 + $0x88] sm:$0xff]
    %v1212 = vld [vmem:[#allocation5 + $0x90] sm:$0x1]
    %v1213 = vld [vmem:[#allocation5 + $0x91] sm:$0x1]
    %v1214 = vld [vmem:[#allocation5 + $0x92] sm:$0x1]
    %v1215 = vld [vmem:[#allocation5 + $0x93] sm:$0x1]
    %v1216 = vlaneseq
    %v1217 = vshrl.u32 %v1216, 7
    %v1218 = vsub.s32 0, %v1217
    %v1219 = vrot.slane %v1212, %v1218
    %v1221 = vsel %vm163, %v40, 0
    %v1224 = vsel %vm163, %v41, 0
    %1226 = vmatprep.subr.mxu0 0.0
    %1227 = vmatpush1.msra.mxu0 0.0
    %1228 = vmatprep.subr.mxu0 0.0
    %1229 = vmatpush1.msra.mxu0 0.0
    %1230 = vmatprep.subr.mxu0 0.0
    %1231 = vmatpush1.msra.mxu0 0.0
    %1232 = vmatprep.subr.mxu0 0.0
    %1233 = vmatpush1.msra.mxu0 0.0
    %1234 = vmatprep.subr.mxu0 0.0
    %1235 = vmatpush1.msra.mxu0 0.0
    %1236 = vmatprep.subr.mxu0 0.0
    %1237 = vmatpush1.msra.mxu0 0.0
    %1238 = vmatprep.subr.mxu0 0.0
    %1239 = vmatpush1.msra.mxu0 0.0
    %1240 = vmatprep.subr.mxu0 0.0
    %1241 = vmatpush1.msra.mxu0 0.0
    %1242 = vmatprep.subr.mxu0 0.0
    %1243 = vmatpush1.msra.mxu0 0.0
    %1244 = vmatprep.subr.mxu0 0.0
    %1245 = vmatpush1.msra.mxu0 0.0
    %1246 = vmatprep.subr.mxu0 0.0
    %1247 = vmatpush1.msra.mxu0 0.0
    %1248 = vmatprep.subr.mxu0 0.0
    %1249 = vmatpush1.msra.mxu0 0.0
    %1250 = vmatprep.subr.mxu0 0.0
    %1251 = vmatpush1.msra.mxu0 %v1207
    %1252 = vmatprep.subr.mxu0 0.0
    %1253 = vmatpush1.msra.mxu0 %v1206
    %1254 = vmatprep.subr.mxu0 0.0
    %1255 = vmatpush1.msra.mxu0 %v1205
    %1256 = vmatprep.subr.mxu0 0.0
    %1257 = vmatpush1.msra.mxu0 %v1204
    %1258 = vmatprep.subr.mxu0 0.0
    %1259 = vmatpush2.msra.mxu0 0.0
    %1260 = vmatprep.subr.mxu0 0.0
    %1261 = vmatpush2.msra.mxu0 0.0
    %1262 = vmatprep.subr.mxu0 0.0
    %1263 = vmatpush2.msra.mxu0 0.0
    %1264 = vmatprep.subr.mxu0 0.0
    %1265 = vmatpush2.msra.mxu0 0.0
    %1266 = vmatprep.subr.mxu0 0.0
    %1267 = vmatpush2.msra.mxu0 0.0
    %1268 = vmatprep.subr.mxu0 0.0
    %1269 = vmatpush2.msra.mxu0 0.0
    %1270 = vmatprep.subr.mxu0 0.0
    %1271 = vmatpush2.msra.mxu0 0.0
    %1272 = vmatprep.subr.mxu0 0.0
    %1273 = vmatpush2.msra.mxu0 0.0
    %1274 = vmatprep.subr.mxu0 0.0
    %1275 = vmatpush2.msra.mxu0 0.0
    %1276 = vmatprep.subr.mxu0 0.0
    %1277 = vmatpush2.msra.mxu0 0.0
    %1278 = vmatprep.subr.mxu0 0.0
    %1279 = vmatpush2.msra.mxu0 0.0
    %1280 = vmatprep.subr.mxu0 0.0
    %1281 = vmatpush2.msra.mxu0 0.0
    %1282 = vmatprep.subr.mxu0 0.0
    %1283 = vmatpush2.msra.mxu0 0.0
    %1284 = vmatprep.subr.mxu0 0.0
    %1285 = vmatpush2.msra.mxu0 0.0
    %1286 = vmatprep.subr.mxu0 0.0
    %1287 = vmatpush2.msra.mxu0 0.0
    %1288 = vmatprep.subr.mxu0 0.0
    %1289 = vmatpush2.msra.mxu0 0.0
    %1290 = vmatprep.mubr.f32.mxu0 0.0
    %1291 = vmatmul.mubr.f32.gmra.mxu0 %v1221
    %v1292 = vpop.f32.mrf.mxu0
    %v1293 = vadd.f32 %v1219, %v1292
    %v1294 = vpop.f32.mrf.mxu0
    %1295 = vmatprep.mubr.f32.mxu0 0.0
    %1296 = vmatmul.mubr.f32.gmra.mxu0 %v1224
    %v1297 = vpop.f32.mrf.mxu0
    %v1298 = vadd.f32 %v1219, %v1297
    %v1299 = vpop.f32.mrf.mxu0
    %1300 = vdwg.mxu0
    %v1301 = vmul.f32 %v1293, %v857
    %v1302 = vmul.f32 %v1298, %v858
    %v1303 = vmul.f32 %v1293, %v859
    %v1304 = vmul.f32 %v1298, %v860
    %v1305 = vmul.f32 %v1293, %v861
    %v1306 = vmul.f32 %v1298, %v862
    %v1307 = vmul.f32 %v1293, %v863
    %v1308 = vmul.f32 %v1298, %v864
    %1317 = vrot.lane.b32.xlu0 %v857, 64
    %v1318 = vpop.permute.xlu0 %1317
    %1319 = vrot.lane.b32.xlu0 %v858, 64
    %v1320 = vpop.permute.xlu0 %1319
    %1321 = vrot.lane.b32.xlu0 %v859, 64
    %v1322 = vpop.permute.xlu0 %1321
    %1323 = vrot.lane.b32.xlu0 %v860, 64
    %v1324 = vpop.permute.xlu0 %1323
    %1325 = vrot.lane.b32.xlu0 %v861, 64
    %v1326 = vpop.permute.xlu0 %1325
    %1327 = vrot.lane.b32.xlu0 %v862, 64
    %v1328 = vpop.permute.xlu0 %1327
    %1329 = vrot.lane.b32.xlu0 %v863, 64
    %v1330 = vpop.permute.xlu0 %1329
    %1331 = vrot.lane.b32.xlu0 %v864, 64
    %v1332 = vpop.permute.xlu0 %1331
    %v1341 = vmul.f32 %v1293, %v1318
    %v1342 = vmul.f32 %v1298, %v1320
    %v1343 = vmul.f32 %v1293, %v1322
    %v1344 = vmul.f32 %v1298, %v1324
    %v1345 = vmul.f32 %v1293, %v1326
    %v1346 = vmul.f32 %v1298, %v1328
    %v1347 = vmul.f32 %v1293, %v1330
    %v1348 = vmul.f32 %v1298, %v1332
    %1351 = vrot.lane.b32.xlu0 %v1293, 96
    %v1352 = vpop.permute.xlu0 %1351
    %1353 = vrot.lane.b32.xlu0 %v1298, 96
    %v1354 = vpop.permute.xlu0 %1353
    %v1356 = vsel %vm163, %v1301, 0
    %v1359 = vsel %vm163, %v1302, 0
    %v1362 = vsel %vm163, %v1303, 0
    %v1365 = vsel %vm163, %v1304, 0
    %v1368 = vsel %vm163, %v1305, 0
    %v1371 = vsel %vm163, %v1306, 0
    %v1374 = vsel %vm163, %v1307, 0
    %v1377 = vsel %vm163, %v1308, 0
    %v1379 = vsel %vm163, %v1352, 0
    %v1381 = vsel %vm163, %v1354, 0
    %1383 = vmatprep.subr.mxu0 0.0
    %1384 = vmatpush1.xpose.msra.mxu0 0.0
    %1385 = vmatprep.subr.mxu0 0.0
    %1386 = vmatpush1.xpose.msra.mxu0 0.0
    %1387 = vmatprep.subr.mxu0 0.0
    %1388 = vmatpush1.xpose.msra.mxu0 0.0
    %1389 = vmatprep.subr.mxu0 0.0
    %1390 = vmatpush1.xpose.msra.mxu0 0.0
    %1391 = vmatprep.subr.mxu0 0.0
    %1392 = vmatpush1.xpose.msra.mxu0 0.0
    %1393 = vmatprep.subr.mxu0 0.0
    %1394 = vmatpush1.xpose.msra.mxu0 0.0
    %1395 = vmatprep.subr.mxu0 0.0
    %1396 = vmatpush1.xpose.msra.mxu0 0.0
    %1397 = vmatprep.subr.mxu0 0.0
    %1398 = vmatpush1.xpose.msra.mxu0 0.0
    %1399 = vmatprep.subr.mxu0 0.0
    %1400 = vmatpush1.xpose.msra.mxu0 %v1381
    %1401 = vmatprep.subr.mxu0 0.0
    %1402 = vmatpush1.xpose.msra.mxu0 %v1379
    %1403 = vmatprep.subr.mxu0 0.0
    %1404 = vmatpush1.xpose.msra.mxu0 %v1381
    %1405 = vmatprep.subr.mxu0 0.0
    %1406 = vmatpush1.xpose.msra.mxu0 %v1379
    %1407 = vmatprep.subr.mxu0 0.0
    %1408 = vmatpush1.xpose.msra.mxu0 %v1381
    %1409 = vmatprep.subr.mxu0 0.0
    %1410 = vmatpush1.xpose.msra.mxu0 %v1379
    %1411 = vmatprep.subr.mxu0 0.0
    %1412 = vmatpush1.xpose.msra.mxu0 %v1381
    %1413 = vmatprep.subr.mxu0 0.0
    %1414 = vmatpush1.xpose.msra.mxu0 %v1379
    %1415 = vmatprep.subr.mxu0 0.0
    %1416 = vmatpush2.xpose.msra.mxu0 0.0
    %1417 = vmatprep.subr.mxu0 0.0
    %1418 = vmatpush2.xpose.msra.mxu0 0.0
    %1419 = vmatprep.subr.mxu0 0.0
    %1420 = vmatpush2.xpose.msra.mxu0 0.0
    %1421 = vmatprep.subr.mxu0 0.0
    %1422 = vmatpush2.xpose.msra.mxu0 0.0
    %1423 = vmatprep.subr.mxu0 0.0
    %1424 = vmatpush2.xpose.msra.mxu0 0.0
    %1425 = vmatprep.subr.mxu0 0.0
    %1426 = vmatpush2.xpose.msra.mxu0 0.0
    %1427 = vmatprep.subr.mxu0 0.0
    %1428 = vmatpush2.xpose.msra.mxu0 0.0
    %1429 = vmatprep.subr.mxu0 0.0
    %1430 = vmatpush2.xpose.msra.mxu0 0.0
    %1431 = vmatprep.subr.mxu0 0.0
    %1432 = vmatpush2.xpose.msra.mxu0 0.0
    %1433 = vmatprep.subr.mxu0 0.0
    %1434 = vmatpush2.xpose.msra.mxu0 0.0
    %1435 = vmatprep.subr.mxu0 0.0
    %1436 = vmatpush2.xpose.msra.mxu0 0.0
    %1437 = vmatprep.subr.mxu0 0.0
    %1438 = vmatpush2.xpose.msra.mxu0 0.0
    %1439 = vmatprep.subr.mxu0 0.0
    %1440 = vmatpush2.xpose.msra.mxu0 0.0
    %1441 = vmatprep.subr.mxu0 0.0
    %1442 = vmatpush2.xpose.msra.mxu0 0.0
    %1443 = vmatprep.subr.mxu0 0.0
    %1444 = vmatpush2.xpose.msra.mxu0 0.0
    %1445 = vmatprep.subr.mxu0 0.0
    %1446 = vmatpush2.xpose.msra.mxu0 0.0
    %1447 = vmatprep.mubr.f32.mxu0 0.0
    %1448 = vmatmul.mubr.f32.gmra.mxu0 %v1356
    %v1449 = vpop.f32.mrf.mxu0
    %v1450 = vadd.f32 0.0, %v1449
    %v1451 = vpop.f32.mrf.mxu0
    %1452 = vmatprep.mubr.f32.mxu0 0.0
    %1453 = vmatmul.mubr.f32.gmra.mxu0 %v1359
    %v1454 = vpop.f32.mrf.mxu0
    %v1455 = vadd.f32 0.0, %v1454
    %v1456 = vpop.f32.mrf.mxu0
    %1457 = vmatprep.mubr.f32.mxu0 0.0
    %1458 = vmatmul.mubr.f32.gmra.mxu0 %v1362
    %v1459 = vpop.f32.mrf.mxu0
    %v1460 = vadd.f32 0.0, %v1459
    %v1461 = vpop.f32.mrf.mxu0
    %1462 = vmatprep.mubr.f32.mxu0 0.0
    %1463 = vmatmul.mubr.f32.gmra.mxu0 %v1365
    %v1464 = vpop.f32.mrf.mxu0
    %v1465 = vadd.f32 0.0, %v1464
    %v1466 = vpop.f32.mrf.mxu0
    %1467 = vmatprep.mubr.f32.mxu0 0.0
    %1468 = vmatmul.mubr.f32.gmra.mxu0 %v1368
    %v1469 = vpop.f32.mrf.mxu0
    %v1470 = vadd.f32 0.0, %v1469
    %v1471 = vpop.f32.mrf.mxu0
    %1472 = vmatprep.mubr.f32.mxu0 0.0
    %1473 = vmatmul.mubr.f32.gmra.mxu0 %v1371
    %v1474 = vpop.f32.mrf.mxu0
    %v1475 = vadd.f32 0.0, %v1474
    %v1476 = vpop.f32.mrf.mxu0
    %1477 = vmatprep.mubr.f32.mxu0 0.0
    %1478 = vmatmul.mubr.f32.gmra.mxu0 %v1374
    %v1479 = vpop.f32.mrf.mxu0
    %v1480 = vadd.f32 0.0, %v1479
    %v1481 = vpop.f32.mrf.mxu0
    %1482 = vmatprep.mubr.f32.mxu0 0.0
    %1483 = vmatmul.mubr.f32.gmra.mxu0 %v1377
    %v1484 = vpop.f32.mrf.mxu0
    %v1485 = vadd.f32 0.0, %v1484
    %v1486 = vpop.f32.mrf.mxu0
    %1487 = vdwg.mxu0
    %v1488 = vmul.f32 %v1450, 0.35355338
    %v1489 = vmul.f32 %v1455, 0.35355338
    %v1490 = vmul.f32 %v1460, 0.35355338
    %v1491 = vmul.f32 %v1465, 0.35355338
    %v1492 = vmul.f32 %v1470, 0.35355338
    %v1493 = vmul.f32 %v1475, 0.35355338
    %v1494 = vmul.f32 %v1480, 0.35355338
    %v1495 = vmul.f32 %v1485, 0.35355338
    %v1496 = vadd.f32 %v1488, %v1177
    %v1497 = vadd.f32 %v1489, %v1178
    %v1498 = vadd.f32 %v1490, %v1179
    %v1499 = vadd.f32 %v1491, %v1180
    %v1500 = vadd.f32 %v1492, %v1181
    %v1501 = vadd.f32 %v1493, %v1182
    %v1502 = vadd.f32 %v1494, %v1183
    %v1503 = vadd.f32 %v1495, %v1184
    %vm1504 = vcmask 523264
    %v1505 = vsel %vm1504, %v1496, -inf
    %1506 = vmax.xlane.f32.xlu0 %v1505
    %v1507 = vpop.xlane.xlu0 %1506
    %v1508 = vsel %vm1504, %v1497, -inf
    %1509 = vmax.xlane.f32.xlu0 %v1508
    %v1510 = vpop.xlane.xlu0 %1509
    %v1511 = vsel %vm1504, %v1498, -inf
    %1512 = vmax.xlane.f32.xlu0 %v1511
    %v1513 = vpop.xlane.xlu0 %1512
    %v1514 = vsel %vm1504, %v1499, -inf
    %1515 = vmax.xlane.f32.xlu0 %v1514
    %v1516 = vpop.xlane.xlu0 %1515
    %v1517 = vsel %vm1504, %v1500, -inf
    %1518 = vmax.xlane.f32.xlu0 %v1517
    %v1519 = vpop.xlane.xlu0 %1518
    %v1520 = vsel %vm1504, %v1501, -inf
    %1521 = vmax.xlane.f32.xlu0 %v1520
    %v1522 = vpop.xlane.xlu0 %1521
    %v1523 = vsel %vm1504, %v1502, -inf
    %1524 = vmax.xlane.f32.xlu0 %v1523
    %v1525 = vpop.xlane.xlu0 %1524
    %v1526 = vsel %vm1504, %v1503, -inf
    %1527 = vmax.xlane.f32.xlu0 %v1526
    %v1528 = vpop.xlane.xlu0 %1527
    %v1529 = vsub.f32 %v1496, %v1507
    %v1530 = vsub.f32 %v1497, %v1510
    %v1531 = vsub.f32 %v1498, %v1513
    %v1532 = vsub.f32 %v1499, %v1516
    %v1533 = vsub.f32 %v1500, %v1519
    %v1534 = vsub.f32 %v1501, %v1522
    %v1535 = vsub.f32 %v1502, %v1525
    %v1536 = vsub.f32 %v1503, %v1528
    %v1537 = vmul.f32 %v1529, 1.442695
    %v1538 = vpow.pop %v1537
    %v1539 = vmul.f32 %v1530, 1.442695
    %v1540 = vpow.pop %v1539
    %v1541 = vmul.f32 %v1531, 1.442695
    %v1542 = vpow.pop %v1541
    %v1543 = vmul.f32 %v1532, 1.442695
    %v1544 = vpow.pop %v1543
    %v1545 = vmul.f32 %v1533, 1.442695
    %v1546 = vpow.pop %v1545
    %v1547 = vmul.f32 %v1534, 1.442695
    %v1548 = vpow.pop %v1547
    %v1549 = vmul.f32 %v1535, 1.442695
    %v1550 = vpow.pop %v1549
    %v1551 = vmul.f32 %v1536, 1.442695
    %v1552 = vpow.pop %v1551
    %v1553 = vsel %vm1504, %v1538, 0.0
    %1554 = vadd.xlane.f32.xlu0 %v1553
    %v1555 = vpop.xlane.xlu0 %1554
    %v1556 = vsel %vm1504, %v1540, 0.0
    %1557 = vadd.xlane.f32.xlu0 %v1556
    %v1558 = vpop.xlane.xlu0 %1557
    %v1559 = vsel %vm1504, %v1542, 0.0
    %1560 = vadd.xlane.f32.xlu0 %v1559
    %v1561 = vpop.xlane.xlu0 %1560
    %v1562 = vsel %vm1504, %v1544, 0.0
    %1563 = vadd.xlane.f32.xlu0 %v1562
    %v1564 = vpop.xlane.xlu0 %1563
    %v1565 = vsel %vm1504, %v1546, 0.0
    %1566 = vadd.xlane.f32.xlu0 %v1565
    %v1567 = vpop.xlane.xlu0 %1566
    %v1568 = vsel %vm1504, %v1548, 0.0
    %1569 = vadd.xlane.f32.xlu0 %v1568
    %v1570 = vpop.xlane.xlu0 %1569
    %v1571 = vsel %vm1504, %v1550, 0.0
    %1572 = vadd.xlane.f32.xlu0 %v1571
    %v1573 = vpop.xlane.xlu0 %1572
    %v1574 = vsel %vm1504, %v1552, 0.0
    %1575 = vadd.xlane.f32.xlu0 %v1574
    %v1576 = vpop.xlane.xlu0 %1575
    %v1577 = vrcp.pop %v1555
    %v1578 = vmul.f32 %v1538, %v1577
    %v1579 = vrcp.pop %v1558
    %v1580 = vmul.f32 %v1540, %v1579
    %v1581 = vrcp.pop %v1561
    %v1582 = vmul.f32 %v1542, %v1581
    %v1583 = vrcp.pop %v1564
    %v1584 = vmul.f32 %v1544, %v1583
    %v1585 = vrcp.pop %v1567
    %v1586 = vmul.f32 %v1546, %v1585
    %v1587 = vrcp.pop %v1570
    %v1588 = vmul.f32 %v1548, %v1587
    %v1589 = vrcp.pop %v1573
    %v1590 = vmul.f32 %v1550, %v1589
    %v1591 = vrcp.pop %v1576
    %v1592 = vmul.f32 %v1552, %v1591
    %1601 = vrot.lane.b32.xlu0 %v1341, 64
    %v1602 = vpop.permute.xlu0 %1601
    %1603 = vrot.lane.b32.xlu0 %v1342, 64
    %v1604 = vpop.permute.xlu0 %1603
    %1605 = vrot.lane.b32.xlu0 %v1343, 64
    %v1606 = vpop.permute.xlu0 %1605
    %1607 = vrot.lane.b32.xlu0 %v1344, 64
    %v1608 = vpop.permute.xlu0 %1607
    %1609 = vrot.lane.b32.xlu0 %v1345, 64
    %v1610 = vpop.permute.xlu0 %1609
    %1611 = vrot.lane.b32.xlu0 %v1346, 64
    %v1612 = vpop.permute.xlu0 %1611
    %1613 = vrot.lane.b32.xlu0 %v1347, 64
    %v1614 = vpop.permute.xlu0 %1613
    %1615 = vrot.lane.b32.xlu0 %v1348, 64
    %v1616 = vpop.permute.xlu0 %1615
    %v1626 = vsel %vm1504, %v1578, 0
    %v1629 = vsel %vm1504, %v1580, 0
    %v1632 = vsel %vm1504, %v1582, 0
    %v1635 = vsel %vm1504, %v1584, 0
    %v1638 = vsel %vm1504, %v1586, 0
    %v1641 = vsel %vm1504, %v1588, 0
    %v1644 = vsel %vm1504, %v1590, 0
    %v1647 = vsel %vm1504, %v1592, 0
    %1649 = vmatprep.subr.mxu0 0.0
    %1650 = vmatpush1.msra.mxu0 0.0
    %1651 = vmatprep.subr.mxu0 0.0
    %1652 = vmatpush1.msra.mxu0 0.0
    %1653 = vmatprep.subr.mxu0 0.0
    %1654 = vmatpush1.msra.mxu0 0.0
    %1655 = vmatprep.subr.mxu0 0.0
    %1656 = vmatpush1.msra.mxu0 0.0
    %1657 = vmatprep.subr.mxu0 0.0
    %1658 = vmatpush1.msra.mxu0 0.0
    %1659 = vmatprep.subr.mxu0 0.0
    %1660 = vmatpush1.msra.mxu0 0.0
    %1661 = vmatprep.subr.mxu0 0.0
    %1662 = vmatpush1.msra.mxu0 0.0
    %1663 = vmatprep.subr.mxu0 0.0
    %1664 = vmatpush1.msra.mxu0 0.0
    %1665 = vmatprep.subr.mxu0 0.0
    %1666 = vmatpush1.msra.mxu0 %v1616
    %1667 = vmatprep.subr.mxu0 0.0
    %1668 = vmatpush1.msra.mxu0 %v1614
    %1669 = vmatprep.subr.mxu0 0.0
    %1670 = vmatpush1.msra.mxu0 %v1612
    %1671 = vmatprep.subr.mxu0 0.0
    %1672 = vmatpush1.msra.mxu0 %v1610
    %1673 = vmatprep.subr.mxu0 0.0
    %1674 = vmatpush1.msra.mxu0 %v1608
    %1675 = vmatprep.subr.mxu0 0.0
    %1676 = vmatpush1.msra.mxu0 %v1606
    %1677 = vmatprep.subr.mxu0 0.0
    %1678 = vmatpush1.msra.mxu0 %v1604
    %1679 = vmatprep.subr.mxu0 0.0
    %1680 = vmatpush1.msra.mxu0 %v1602
    %1681 = vmatprep.subr.mxu0 0.0
    %1682 = vmatpush2.msra.mxu0 0.0
    %1683 = vmatprep.subr.mxu0 0.0
    %1684 = vmatpush2.msra.mxu0 0.0
    %1685 = vmatprep.subr.mxu0 0.0
    %1686 = vmatpush2.msra.mxu0 0.0
    %1687 = vmatprep.subr.mxu0 0.0
    %1688 = vmatpush2.msra.mxu0 0.0
    %1689 = vmatprep.subr.mxu0 0.0
    %1690 = vmatpush2.msra.mxu0 0.0
    %1691 = vmatprep.subr.mxu0 0.0
    %1692 = vmatpush2.msra.mxu0 0.0
    %1693 = vmatprep.subr.mxu0 0.0
    %1694 = vmatpush2.msra.mxu0 0.0
    %1695 = vmatprep.subr.mxu0 0.0
    %1696 = vmatpush2.msra.mxu0 0.0
    %1697 = vmatprep.subr.mxu0 0.0
    %1698 = vmatpush2.msra.mxu0 0.0
    %1699 = vmatprep.subr.mxu0 0.0
    %1700 = vmatpush2.msra.mxu0 0.0
    %1701 = vmatprep.subr.mxu0 0.0
    %1702 = vmatpush2.msra.mxu0 0.0
    %1703 = vmatprep.subr.mxu0 0.0
    %1704 = vmatpush2.msra.mxu0 0.0
    %1705 = vmatprep.subr.mxu0 0.0
    %1706 = vmatpush2.msra.mxu0 0.0
    %1707 = vmatprep.subr.mxu0 0.0
    %1708 = vmatpush2.msra.mxu0 0.0
    %1709 = vmatprep.subr.mxu0 0.0
    %1710 = vmatpush2.msra.mxu0 0.0
    %1711 = vmatprep.subr.mxu0 0.0
    %1712 = vmatpush2.msra.mxu0 0.0
    %1713 = vmatprep.mubr.f32.mxu0 0.0
    %1714 = vmatmul.mubr.f32.gmra.mxu0 %v1626
    %v1715 = vpop.f32.mrf.mxu0
    %v1716 = vadd.f32 0.0, %v1715
    %v1717 = vpop.f32.mrf.mxu0
    %1718 = vmatprep.mubr.f32.mxu0 0.0
    %1719 = vmatmul.mubr.f32.gmra.mxu0 %v1629
    %v1720 = vpop.f32.mrf.mxu0
    %v1721 = vadd.f32 0.0, %v1720
    %v1722 = vpop.f32.mrf.mxu0
    %1723 = vmatprep.mubr.f32.mxu0 0.0
    %1724 = vmatmul.mubr.f32.gmra.mxu0 %v1632
    %v1725 = vpop.f32.mrf.mxu0
    %v1726 = vadd.f32 0.0, %v1725
    %v1727 = vpop.f32.mrf.mxu0
    %1728 = vmatprep.mubr.f32.mxu0 0.0
    %1729 = vmatmul.mubr.f32.gmra.mxu0 %v1635
    %v1730 = vpop.f32.mrf.mxu0
    %v1731 = vadd.f32 0.0, %v1730
    %v1732 = vpop.f32.mrf.mxu0
    %1733 = vmatprep.mubr.f32.mxu0 0.0
    %1734 = vmatmul.mubr.f32.gmra.mxu0 %v1638
    %v1735 = vpop.f32.mrf.mxu0
    %v1736 = vadd.f32 0.0, %v1735
    %v1737 = vpop.f32.mrf.mxu0
    %1738 = vmatprep.mubr.f32.mxu0 0.0
    %1739 = vmatmul.mubr.f32.gmra.mxu0 %v1641
    %v1740 = vpop.f32.mrf.mxu0
    %v1741 = vadd.f32 0.0, %v1740
    %v1742 = vpop.f32.mrf.mxu0
    %1743 = vmatprep.mubr.f32.mxu0 0.0
    %1744 = vmatmul.mubr.f32.gmra.mxu0 %v1644
    %v1745 = vpop.f32.mrf.mxu0
    %v1746 = vadd.f32 0.0, %v1745
    %v1747 = vpop.f32.mrf.mxu0
    %1748 = vmatprep.mubr.f32.mxu0 0.0
    %1749 = vmatmul.mubr.f32.gmra.mxu0 %v1647
    %v1750 = vpop.f32.mrf.mxu0
    %v1751 = vadd.f32 0.0, %v1750
    %v1752 = vpop.f32.mrf.mxu0
    %1753 = vdwg.mxu0
    %v1755 = vsel %vm1504, %v1202, 0
    %v1758 = vsel %vm1504, %v1203, 0
    %1760 = vmatprep.subr.mxu0 0.0
    %1761 = vmatpush1.msra.mxu0 0.0
    %1762 = vmatprep.subr.mxu0 0.0
    %1763 = vmatpush1.msra.mxu0 0.0
    %1764 = vmatprep.subr.mxu0 0.0
    %1765 = vmatpush1.msra.mxu0 0.0
    %1766 = vmatprep.subr.mxu0 0.0
    %1767 = vmatpush1.msra.mxu0 0.0
    %1768 = vmatprep.subr.mxu0 0.0
    %1769 = vmatpush1.msra.mxu0 0.0
    %1770 = vmatprep.subr.mxu0 0.0
    %1771 = vmatpush1.msra.mxu0 0.0
    %1772 = vmatprep.subr.mxu0 0.0
    %1773 = vmatpush1.msra.mxu0 0.0
    %1774 = vmatprep.subr.mxu0 0.0
    %1775 = vmatpush1.msra.mxu0 0.0
    %1776 = vmatprep.subr.mxu0 0.0
    %1777 = vmatpush1.msra.mxu0 %v1751
    %1778 = vmatprep.subr.mxu0 0.0
    %1779 = vmatpush1.msra.mxu0 %v1746
    %1780 = vmatprep.subr.mxu0 0.0
    %1781 = vmatpush1.msra.mxu0 %v1741
    %1782 = vmatprep.subr.mxu0 0.0
    %1783 = vmatpush1.msra.mxu0 %v1736
    %1784 = vmatprep.subr.mxu0 0.0
    %1785 = vmatpush1.msra.mxu0 %v1731
    %1786 = vmatprep.subr.mxu0 0.0
    %1787 = vmatpush1.msra.mxu0 %v1726
    %1788 = vmatprep.subr.mxu0 0.0
    %1789 = vmatpush1.msra.mxu0 %v1721
    %1790 = vmatprep.subr.mxu0 0.0
    %1791 = vmatpush1.msra.mxu0 %v1716
    %1792 = vmatprep.subr.mxu0 0.0
    %1793 = vmatpush2.msra.mxu0 0.0
    %1794 = vmatprep.subr.mxu0 0.0
    %1795 = vmatpush2.msra.mxu0 0.0
    %1796 = vmatprep.subr.mxu0 0.0
    %1797 = vmatpush2.msra.mxu0 0.0
    %1798 = vmatprep.subr.mxu0 0.0
    %1799 = vmatpush2.msra.mxu0 0.0
    %1800 = vmatprep.subr.mxu0 0.0
    %1801 = vmatpush2.msra.mxu0 0.0
    %1802 = vmatprep.subr.mxu0 0.0
    %1803 = vmatpush2.msra.mxu0 0.0
    %1804 = vmatprep.subr.mxu0 0.0
    %1805 = vmatpush2.msra.mxu0 0.0
    %1806 = vmatprep.subr.mxu0 0.0
    %1807 = vmatpush2.msra.mxu0 0.0
    %1808 = vmatprep.subr.mxu0 0.0
    %1809 = vmatpush2.msra.mxu0 0.0
    %1810 = vmatprep.subr.mxu0 0.0
    %1811 = vmatpush2.msra.mxu0 0.0
    %1812 = vmatprep.subr.mxu0 0.0
    %1813 = vmatpush2.msra.mxu0 0.0
    %1814 = vmatprep.subr.mxu0 0.0
    %1815 = vmatpush2.msra.mxu0 0.0
    %1816 = vmatprep.subr.mxu0 0.0
    %1817 = vmatpush2.msra.mxu0 0.0
    %1818 = vmatprep.subr.mxu0 0.0
    %1819 = vmatpush2.msra.mxu0 0.0
    %1820 = vmatprep.subr.mxu0 0.0
    %1821 = vmatpush2.msra.mxu0 0.0
    %1822 = vmatprep.subr.mxu0 0.0
    %1823 = vmatpush2.msra.mxu0 0.0
    %1824 = vmatprep.mubr.f32.mxu0 0.0
    %1825 = vmatmul.mubr.f32.gmra.mxu0 %v1755
    %v1826 = vpop.f32.mrf.mxu0
    %v1827 = vadd.f32 0.0, %v1826
    %v1828 = vpop.f32.mrf.mxu0
    %1829 = vmatprep.mubr.f32.mxu0 0.0
    %1830 = vmatmul.mubr.f32.gmra.mxu0 %v1758
    %v1831 = vpop.f32.mrf.mxu0
    %v1832 = vadd.f32 0.0, %v1831
    %v1833 = vpop.f32.mrf.mxu0
    %1834 = vdwg.mxu0
    %v1835 = vlaneseq
    %v1836 = vshrl.u32 %v1835, 7
    %v1837 = vsub.s32 0, %v1836
    %v1838 = vrot.slane %v1213, %v1837
    %v1840 = vsel %vm163, %v1827, 0
    %v1843 = vsel %vm163, %v1832, 0
    %1845 = vmatprep.subr.mxu0 0.0
    %1846 = vmatpush1.msra.mxu0 0.0
    %1847 = vmatprep.subr.mxu0 0.0
    %1848 = vmatpush1.msra.mxu0 0.0
    %1849 = vmatprep.subr.mxu0 0.0
    %1850 = vmatpush1.msra.mxu0 0.0
    %1851 = vmatprep.subr.mxu0 0.0
    %1852 = vmatpush1.msra.mxu0 0.0
    %1853 = vmatprep.subr.mxu0 0.0
    %1854 = vmatpush1.msra.mxu0 0.0
    %1855 = vmatprep.subr.mxu0 0.0
    %1856 = vmatpush1.msra.mxu0 0.0
    %1857 = vmatprep.subr.mxu0 0.0
    %1858 = vmatpush1.msra.mxu0 0.0
    %1859 = vmatprep.subr.mxu0 0.0
    %1860 = vmatpush1.msra.mxu0 0.0
    %1861 = vmatprep.subr.mxu0 0.0
    %1862 = vmatpush1.msra.mxu0 0.0
    %1863 = vmatprep.subr.mxu0 0.0
    %1864 = vmatpush1.msra.mxu0 0.0
    %1865 = vmatprep.subr.mxu0 0.0
    %1866 = vmatpush1.msra.mxu0 0.0
    %1867 = vmatprep.subr.mxu0 0.0
    %1868 = vmatpush1.msra.mxu0 0.0
    %1869 = vmatprep.subr.mxu0 0.0
    %1870 = vmatpush1.msra.mxu0 %v1211
    %1871 = vmatprep.subr.mxu0 0.0
    %1872 = vmatpush1.msra.mxu0 %v1210
    %1873 = vmatprep.subr.mxu0 0.0
    %1874 = vmatpush1.msra.mxu0 %v1209
    %1875 = vmatprep.subr.mxu0 0.0
    %1876 = vmatpush1.msra.mxu0 %v1208
    %1877 = vmatprep.subr.mxu0 0.0
    %1878 = vmatpush2.msra.mxu0 0.0
    %1879 = vmatprep.subr.mxu0 0.0
    %1880 = vmatpush2.msra.mxu0 0.0
    %1881 = vmatprep.subr.mxu0 0.0
    %1882 = vmatpush2.msra.mxu0 0.0
    %1883 = vmatprep.subr.mxu0 0.0
    %1884 = vmatpush2.msra.mxu0 0.0
    %1885 = vmatprep.subr.mxu0 0.0
    %1886 = vmatpush2.msra.mxu0 0.0
    %1887 = vmatprep.subr.mxu0 0.0
    %1888 = vmatpush2.msra.mxu0 0.0
    %1889 = vmatprep.subr.mxu0 0.0
    %1890 = vmatpush2.msra.mxu0 0.0
    %1891 = vmatprep.subr.mxu0 0.0
    %1892 = vmatpush2.msra.mxu0 0.0
    %1893 = vmatprep.subr.mxu0 0.0
    %1894 = vmatpush2.msra.mxu0 0.0
    %1895 = vmatprep.subr.mxu0 0.0
    %1896 = vmatpush2.msra.mxu0 0.0
    %1897 = vmatprep.subr.mxu0 0.0
    %1898 = vmatpush2.msra.mxu0 0.0
    %1899 = vmatprep.subr.mxu0 0.0
    %1900 = vmatpush2.msra.mxu0 0.0
    %1901 = vmatprep.subr.mxu0 0.0
    %1902 = vmatpush2.msra.mxu0 0.0
    %1903 = vmatprep.subr.mxu0 0.0
    %1904 = vmatpush2.msra.mxu0 0.0
    %1905 = vmatprep.subr.mxu0 0.0
    %1906 = vmatpush2.msra.mxu0 0.0
    %1907 = vmatprep.subr.mxu0 0.0
    %1908 = vmatpush2.msra.mxu0 0.0
    %1909 = vmatprep.mubr.f32.mxu0 0.0
    %1910 = vmatmul.mubr.f32.gmra.mxu0 %v1840
    %v1911 = vpop.f32.mrf.mxu0
    %v1912 = vadd.f32 %v1838, %v1911
    %v1913 = vpop.f32.mrf.mxu0
    %1914 = vmatprep.mubr.f32.mxu0 0.0
    %1915 = vmatmul.mubr.f32.gmra.mxu0 %v1843
    %v1916 = vpop.f32.mrf.mxu0
    %v1917 = vadd.f32 %v1838, %v1916
    %v1918 = vpop.f32.mrf.mxu0
    %1919 = vdwg.mxu0
    %v1920 = vadd.f32 %v1912, %v40
    %v1921 = vadd.f32 %v1917, %v41
    %v1922 = vsel %vm163, %v1920, 0.0
    %1923 = vadd.xlane.f32.xlu0 %v1922
    %v1924 = vpop.xlane.xlu0 %1923
    %v1925 = vsel %vm163, %v1921, 0.0
    %1926 = vadd.xlane.f32.xlu0 %v1925
    %v1927 = vpop.xlane.xlu0 %1926
    %v1928 = vmul.f32 %v1924, %v133
    %v1929 = vmul.f32 %v1927, %v133
    %v1930 = vsub.f32 %v1920, %v1928
    %v1931 = vsub.f32 %v1921, %v1929
    %v1932 = vmul.f32 %v1930, %v1930
    %v1933 = vmul.f32 %v1931, %v1931
    %v1934 = vsel %vm163, %v1932, 0.0
    %1935 = vadd.xlane.f32.xlu0 %v1934
    %v1936 = vpop.xlane.xlu0 %1935
    %v1937 = vsel %vm163, %v1933, 0.0
    %1938 = vadd.xlane.f32.xlu0 %v1937
    %v1939 = vpop.xlane.xlu0 %1938
    %v1940 = vmul.f32 %v1936, %v133
    %v1941 = vmul.f32 %v1939, %v133
    %v1942 = vadd.f32 %v1940, 1e-05
    %v1943 = vadd.f32 %v1941, 1e-05
    %v1944 = vrsqrt.pop %v1942
    %v1945 = vrsqrt.pop %v1943
    %v1946 = vmul.f32 %v1930, %v1944
    %v1947 = vmul.f32 %v1931, %v1945
    %v1948 = vlaneseq
    %v1949 = vshrl.u32 %v1948, 7
    %v1950 = vsub.s32 0, %v1949
    %v1951 = vrot.slane %v1214, %v1950
    %v1952 = vmul.f32 %v1946, %v1951
    %v1953 = vmul.f32 %v1947, %v1951
    %v1954 = vlaneseq
    %v1955 = vshrl.u32 %v1954, 7
    %v1956 = vsub.s32 0, %v1955
    %v1957 = vrot.slane %v1215, %v1956
    %v1958 = vadd.f32 %v1952, %v1957
    %v1959 = vadd.f32 %v1953, %v1957
    %v1960 = vld [vmem:[#allocation5 + $0x98] sm:$0xff]
    %v1961 = vld [vmem:[#allocation5 + $0xa0] sm:$0xff]
    %v1962 = vld [vmem:[#allocation5 + $0xa8] sm:$0xff]
    %v1963 = vld [vmem:[#allocation5 + $0xb0] sm:$0xff]
    %v1964 = vld [vmem:[#allocation5 + $0xb8] sm:$0xff]
    %v1965 = vld [vmem:[#allocation5 + $0xc0] sm:$0xff]
    %v1966 = vld [vmem:[#allocation5 + $0xc8] sm:$0xff]
    %v1967 = vld [vmem:[#allocation5 + $0xd0] sm:$0xff]
    %v1968 = vld [vmem:[#allocation5 + $0xd8] sm:$0x1]
    %v1969 = vld [vmem:[#allocation5 + $0xd9] sm:$0x1]
    %v1970 = vld [vmem:[#allocation5 + $0xda] sm:$0x1]
    %v1971 = vld [vmem:[#allocation5 + $0xdb] sm:$0x1]
    %v1972 = vlaneseq
    %v1973 = vshrl.u32 %v1972, 7
    %v1974 = vsub.s32 0, %v1973
    %v1975 = vrot.slane %v1968, %v1974
    %v1977 = vsel %vm163, %v1958, 0
    %v1980 = vsel %vm163, %v1959, 0
    %1982 = vmatprep.subr.mxu0 0.0
    %1983 = vmatpush1.msra.mxu0 0.0
    %1984 = vmatprep.subr.mxu0 0.0
    %1985 = vmatpush1.msra.mxu0 0.0
    %1986 = vmatprep.subr.mxu0 0.0
    %1987 = vmatpush1.msra.mxu0 0.0
    %1988 = vmatprep.subr.mxu0 0.0
    %1989 = vmatpush1.msra.mxu0 0.0
    %1990 = vmatprep.subr.mxu0 0.0
    %1991 = vmatpush1.msra.mxu0 0.0
    %1992 = vmatprep.subr.mxu0 0.0
    %1993 = vmatpush1.msra.mxu0 0.0
    %1994 = vmatprep.subr.mxu0 0.0
    %1995 = vmatpush1.msra.mxu0 0.0
    %1996 = vmatprep.subr.mxu0 0.0
    %1997 = vmatpush1.msra.mxu0 0.0
    %1998 = vmatprep.subr.mxu0 0.0
    %1999 = vmatpush1.msra.mxu0 0.0
    %2000 = vmatprep.subr.mxu0 0.0
    %2001 = vmatpush1.msra.mxu0 0.0
    %2002 = vmatprep.subr.mxu0 0.0
    %2003 = vmatpush1.msra.mxu0 0.0
    %2004 = vmatprep.subr.mxu0 0.0
    %2005 = vmatpush1.msra.mxu0 0.0
    %2006 = vmatprep.subr.mxu0 0.0
    %2007 = vmatpush1.msra.mxu0 %v1963
    %2008 = vmatprep.subr.mxu0 0.0
    %2009 = vmatpush1.msra.mxu0 %v1962
    %2010 = vmatprep.subr.mxu0 0.0
    %2011 = vmatpush1.msra.mxu0 %v1961
    %2012 = vmatprep.subr.mxu0 0.0
    %2013 = vmatpush1.msra.mxu0 %v1960
    %2014 = vmatprep.subr.mxu0 0.0
    %2015 = vmatpush2.msra.mxu0 0.0
    %2016 = vmatprep.subr.mxu0 0.0
    %2017 = vmatpush2.msra.mxu0 0.0
    %2018 = vmatprep.subr.mxu0 0.0
    %2019 = vmatpush2.msra.mxu0 0.0
    %2020 = vmatprep.subr.mxu0 0.0
    %2021 = vmatpush2.msra.mxu0 0.0
    %2022 = vmatprep.subr.mxu0 0.0
    %2023 = vmatpush2.msra.mxu0 0.0
    %2024 = vmatprep.subr.mxu0 0.0
    %2025 = vmatpush2.msra.mxu0 0.0
    %2026 = vmatprep.subr.mxu0 0.0
    %2027 = vmatpush2.msra.mxu0 0.0
    %2028 = vmatprep.subr.mxu0 0.0
    %2029 = vmatpush2.msra.mxu0 0.0
    %2030 = vmatprep.subr.mxu0 0.0
    %2031 = vmatpush2.msra.mxu0 0.0
    %2032 = vmatprep.subr.mxu0 0.0
    %2033 = vmatpush2.msra.mxu0 0.0
    %2034 = vmatprep.subr.mxu0 0.0
    %2035 = vmatpush2.msra.mxu0 0.0
    %2036 = vmatprep.subr.mxu0 0.0
    %2037 = vmatpush2.msra.mxu0 0.0
    %2038 = vmatprep.subr.mxu0 0.0
    %2039 = vmatpush2.msra.mxu0 0.0
    %2040 = vmatprep.subr.mxu0 0.0
    %2041 = vmatpush2.msra.mxu0 0.0
    %2042 = vmatprep.subr.mxu0 0.0
    %2043 = vmatpush2.msra.mxu0 0.0
    %2044 = vmatprep.subr.mxu0 0.0
    %2045 = vmatpush2.msra.mxu0 0.0
    %2046 = vmatprep.mubr.f32.mxu0 0.0
    %2047 = vmatmul.mubr.f32.gmra.mxu0 %v1977
    %v2048 = vpop.f32.mrf.mxu0
    %v2049 = vadd.f32 %v1975, %v2048
    %v2050 = vpop.f32.mrf.mxu0
    %2051 = vmatprep.mubr.f32.mxu0 0.0
    %2052 = vmatmul.mubr.f32.gmra.mxu0 %v1980
    %v2053 = vpop.f32.mrf.mxu0
    %v2054 = vadd.f32 %v1975, %v2053
    %v2055 = vpop.f32.mrf.mxu0
    %2056 = vdwg.mxu0
    %2059 = vrot.lane.b32.xlu0 %v659, 32
    %v2060 = vpop.permute.xlu0 %2059
    %2061 = vrot.lane.b32.xlu0 %v664, 32
    %v2062 = vpop.permute.xlu0 %2061
    %v2065 = vmul.f32 %v2049, %v2060
    %v2066 = vmul.f32 %v2054, %v2062
    %v2067 = vmul.f32 %v2049, %v857
    %v2068 = vmul.f32 %v2054, %v858
    %v2069 = vmul.f32 %v2049, %v859
    %v2070 = vmul.f32 %v2054, %v860
    %v2071 = vmul.f32 %v2049, %v861
    %v2072 = vmul.f32 %v2054, %v862
    %v2073 = vmul.f32 %v2049, %v863
    %v2074 = vmul.f32 %v2054, %v864
    %v2075 = vmul.f32 %v2049, %v1318
    %v2076 = vmul.f32 %v2054, %v1320
    %v2077 = vmul.f32 %v2049, %v1322
    %v2078 = vmul.f32 %v2054, %v1324
    %v2079 = vmul.f32 %v2049, %v1326
    %v2080 = vmul.f32 %v2054, %v1328
    %v2081 = vmul.f32 %v2049, %v1330
    %v2082 = vmul.f32 %v2054, %v1332
    %2085 = vrot.lane.b32.xlu0 %v2065, 96
    %v2086 = vpop.permute.xlu0 %2085
    %2087 = vrot.lane.b32.xlu0 %v2066, 96
    %v2088 = vpop.permute.xlu0 %2087
    %v2090 = vsel %vm163, %v2067, 0
    %v2093 = vsel %vm163, %v2068, 0
    %v2096 = vsel %vm163, %v2069, 0
    %v2099 = vsel %vm163, %v2070, 0
    %v2102 = vsel %vm163, %v2071, 0
    %v2105 = vsel %vm163, %v2072, 0
    %v2108 = vsel %vm163, %v2073, 0
    %v2111 = vsel %vm163, %v2074, 0
    %v2113 = vsel %vm163, %v2086, 0
    %v2115 = vsel %vm163, %v2088, 0
    %2117 = vmatprep.subr.mxu0 0.0
    %2118 = vmatpush1.xpose.msra.mxu0 0.0
    %2119 = vmatprep.subr.mxu0 0.0
    %2120 = vmatpush1.xpose.msra.mxu0 0.0
    %2121 = vmatprep.subr.mxu0 0.0
    %2122 = vmatpush1.xpose.msra.mxu0 0.0
    %2123 = vmatprep.subr.mxu0 0.0
    %2124 = vmatpush1.xpose.msra.mxu0 0.0
    %2125 = vmatprep.subr.mxu0 0.0
    %2126 = vmatpush1.xpose.msra.mxu0 0.0
    %2127 = vmatprep.subr.mxu0 0.0
    %2128 = vmatpush1.xpose.msra.mxu0 0.0
    %2129 = vmatprep.subr.mxu0 0.0
    %2130 = vmatpush1.xpose.msra.mxu0 0.0
    %2131 = vmatprep.subr.mxu0 0.0
    %2132 = vmatpush1.xpose.msra.mxu0 0.0
    %2133 = vmatprep.subr.mxu0 0.0
    %2134 = vmatpush1.xpose.msra.mxu0 %v2115
    %2135 = vmatprep.subr.mxu0 0.0
    %2136 = vmatpush1.xpose.msra.mxu0 %v2113
    %2137 = vmatprep.subr.mxu0 0.0
    %2138 = vmatpush1.xpose.msra.mxu0 %v2115
    %2139 = vmatprep.subr.mxu0 0.0
    %2140 = vmatpush1.xpose.msra.mxu0 %v2113
    %2141 = vmatprep.subr.mxu0 0.0
    %2142 = vmatpush1.xpose.msra.mxu0 %v2115
    %2143 = vmatprep.subr.mxu0 0.0
    %2144 = vmatpush1.xpose.msra.mxu0 %v2113
    %2145 = vmatprep.subr.mxu0 0.0
    %2146 = vmatpush1.xpose.msra.mxu0 %v2115
    %2147 = vmatprep.subr.mxu0 0.0
    %2148 = vmatpush1.xpose.msra.mxu0 %v2113
    %2149 = vmatprep.subr.mxu0 0.0
    %2150 = vmatpush2.xpose.msra.mxu0 0.0
    %2151 = vmatprep.subr.mxu0 0.0
    %2152 = vmatpush2.xpose.msra.mxu0 0.0
    %2153 = vmatprep.subr.mxu0 0.0
    %2154 = vmatpush2.xpose.msra.mxu0 0.0
    %2155 = vmatprep.subr.mxu0 0.0
    %2156 = vmatpush2.xpose.msra.mxu0 0.0
    %2157 = vmatprep.subr.mxu0 0.0
    %2158 = vmatpush2.xpose.msra.mxu0 0.0
    %2159 = vmatprep.subr.mxu0 0.0
    %2160 = vmatpush2.xpose.msra.mxu0 0.0
    %2161 = vmatprep.subr.mxu0 0.0
    %2162 = vmatpush2.xpose.msra.mxu0 0.0
    %2163 = vmatprep.subr.mxu0 0.0
    %2164 = vmatpush2.xpose.msra.mxu0 0.0
    %2165 = vmatprep.subr.mxu0 0.0
    %2166 = vmatpush2.xpose.msra.mxu0 0.0
    %2167 = vmatprep.subr.mxu0 0.0
    %2168 = vmatpush2.xpose.msra.mxu0 0.0
    %2169 = vmatprep.subr.mxu0 0.0
    %2170 = vmatpush2.xpose.msra.mxu0 0.0
    %2171 = vmatprep.subr.mxu0 0.0
    %2172 = vmatpush2.xpose.msra.mxu0 0.0
    %2173 = vmatprep.subr.mxu0 0.0
    %2174 = vmatpush2.xpose.msra.mxu0 0.0
    %2175 = vmatprep.subr.mxu0 0.0
    %2176 = vmatpush2.xpose.msra.mxu0 0.0
    %2177 = vmatprep.subr.mxu0 0.0
    %2178 = vmatpush2.xpose.msra.mxu0 0.0
    %2179 = vmatprep.subr.mxu0 0.0
    %2180 = vmatpush2.xpose.msra.mxu0 0.0
    %2181 = vmatprep.mubr.f32.mxu0 0.0
    %2182 = vmatmul.mubr.f32.gmra.mxu0 %v2090
    %v2183 = vpop.f32.mrf.mxu0
    %v2184 = vadd.f32 0.0, %v2183
    %v2185 = vpop.f32.mrf.mxu0
    %2186 = vmatprep.mubr.f32.mxu0 0.0
    %2187 = vmatmul.mubr.f32.gmra.mxu0 %v2093
    %v2188 = vpop.f32.mrf.mxu0
    %v2189 = vadd.f32 0.0, %v2188
    %v2190 = vpop.f32.mrf.mxu0
    %2191 = vmatprep.mubr.f32.mxu0 0.0
    %2192 = vmatmul.mubr.f32.gmra.mxu0 %v2096
    %v2193 = vpop.f32.mrf.mxu0
    %v2194 = vadd.f32 0.0, %v2193
    %v2195 = vpop.f32.mrf.mxu0
    %2196 = vmatprep.mubr.f32.mxu0 0.0
    %2197 = vmatmul.mubr.f32.gmra.mxu0 %v2099
    %v2198 = vpop.f32.mrf.mxu0
    %v2199 = vadd.f32 0.0, %v2198
    %v2200 = vpop.f32.mrf.mxu0
    %2201 = vmatprep.mubr.f32.mxu0 0.0
    %2202 = vmatmul.mubr.f32.gmra.mxu0 %v2102
    %v2203 = vpop.f32.mrf.mxu0
    %v2204 = vadd.f32 0.0, %v2203
    %v2205 = vpop.f32.mrf.mxu0
    %2206 = vmatprep.mubr.f32.mxu0 0.0
    %2207 = vmatmul.mubr.f32.gmra.mxu0 %v2105
    %v2208 = vpop.f32.mrf.mxu0
    %v2209 = vadd.f32 0.0, %v2208
    %v2210 = vpop.f32.mrf.mxu0
    %2211 = vmatprep.mubr.f32.mxu0 0.0
    %2212 = vmatmul.mubr.f32.gmra.mxu0 %v2108
    %v2213 = vpop.f32.mrf.mxu0
    %v2214 = vadd.f32 0.0, %v2213
    %v2215 = vpop.f32.mrf.mxu0
    %2216 = vmatprep.mubr.f32.mxu0 0.0
    %2217 = vmatmul.mubr.f32.gmra.mxu0 %v2111
    %v2218 = vpop.f32.mrf.mxu0
    %v2219 = vadd.f32 0.0, %v2218
    %v2220 = vpop.f32.mrf.mxu0
    %2221 = vdwg.mxu0
    %v2222 = vmul.f32 %v2184, 0.35355338
    %v2223 = vmul.f32 %v2189, 0.35355338
    %v2224 = vmul.f32 %v2194, 0.35355338
    %v2225 = vmul.f32 %v2199, 0.35355338
    %v2226 = vmul.f32 %v2204, 0.35355338
    %v2227 = vmul.f32 %v2209, 0.35355338
    %v2228 = vmul.f32 %v2214, 0.35355338
    %v2229 = vmul.f32 %v2219, 0.35355338
    %v2230 = vadd.f32 %v2222, %v1177
    %v2231 = vadd.f32 %v2223, %v1178
    %v2232 = vadd.f32 %v2224, %v1179
    %v2233 = vadd.f32 %v2225, %v1180
    %v2234 = vadd.f32 %v2226, %v1181
    %v2235 = vadd.f32 %v2227, %v1182
    %v2236 = vadd.f32 %v2228, %v1183
    %v2237 = vadd.f32 %v2229, %v1184
    %v2238 = vsel %vm1504, %v2230, -inf
    %2239 = vmax.xlane.f32.xlu0 %v2238
    %v2240 = vpop.xlane.xlu0 %2239
    %v2241 = vsel %vm1504, %v2231, -inf
    %2242 = vmax.xlane.f32.xlu0 %v2241
    %v2243 = vpop.xlane.xlu0 %2242
    %v2244 = vsel %vm1504, %v2232, -inf
    %2245 = vmax.xlane.f32.xlu0 %v2244
    %v2246 = vpop.xlane.xlu0 %2245
    %v2247 = vsel %vm1504, %v2233, -inf
    %2248 = vmax.xlane.f32.xlu0 %v2247
    %v2249 = vpop.xlane.xlu0 %2248
    %v2250 = vsel %vm1504, %v2234, -inf
    %2251 = vmax.xlane.f32.xlu0 %v2250
    %v2252 = vpop.xlane.xlu0 %2251
    %v2253 = vsel %vm1504, %v2235, -inf
    %2254 = vmax.xlane.f32.xlu0 %v2253
    %v2255 = vpop.xlane.xlu0 %2254
    %v2256 = vsel %vm1504, %v2236, -inf
    %2257 = vmax.xlane.f32.xlu0 %v2256
    %v2258 = vpop.xlane.xlu0 %2257
    %v2259 = vsel %vm1504, %v2237, -inf
    %2260 = vmax.xlane.f32.xlu0 %v2259
    %v2261 = vpop.xlane.xlu0 %2260
    %v2262 = vsub.f32 %v2230, %v2240
    %v2263 = vsub.f32 %v2231, %v2243
    %v2264 = vsub.f32 %v2232, %v2246
    %v2265 = vsub.f32 %v2233, %v2249
    %v2266 = vsub.f32 %v2234, %v2252
    %v2267 = vsub.f32 %v2235, %v2255
    %v2268 = vsub.f32 %v2236, %v2258
    %v2269 = vsub.f32 %v2237, %v2261
    %v2270 = vmul.f32 %v2262, 1.442695
    %v2271 = vpow.pop %v2270
    %v2272 = vmul.f32 %v2263, 1.442695
    %v2273 = vpow.pop %v2272
    %v2274 = vmul.f32 %v2264, 1.442695
    %v2275 = vpow.pop %v2274
    %v2276 = vmul.f32 %v2265, 1.442695
    %v2277 = vpow.pop %v2276
    %v2278 = vmul.f32 %v2266, 1.442695
    %v2279 = vpow.pop %v2278
    %v2280 = vmul.f32 %v2267, 1.442695
    %v2281 = vpow.pop %v2280
    %v2282 = vmul.f32 %v2268, 1.442695
    %v2283 = vpow.pop %v2282
    %v2284 = vmul.f32 %v2269, 1.442695
    %v2285 = vpow.pop %v2284
    %v2286 = vsel %vm1504, %v2271, 0.0
    %2287 = vadd.xlane.f32.xlu0 %v2286
    %v2288 = vpop.xlane.xlu0 %2287
    %v2289 = vsel %vm1504, %v2273, 0.0
    %2290 = vadd.xlane.f32.xlu0 %v2289
    %v2291 = vpop.xlane.xlu0 %2290
    %v2292 = vsel %vm1504, %v2275, 0.0
    %2293 = vadd.xlane.f32.xlu0 %v2292
    %v2294 = vpop.xlane.xlu0 %2293
    %v2295 = vsel %vm1504, %v2277, 0.0
    %2296 = vadd.xlane.f32.xlu0 %v2295
    %v2297 = vpop.xlane.xlu0 %2296
    %v2298 = vsel %vm1504, %v2279, 0.0
    %2299 = vadd.xlane.f32.xlu0 %v2298
    %v2300 = vpop.xlane.xlu0 %2299
    %v2301 = vsel %vm1504, %v2281, 0.0
    %2302 = vadd.xlane.f32.xlu0 %v2301
    %v2303 = vpop.xlane.xlu0 %2302
    %v2304 = vsel %vm1504, %v2283, 0.0
    %2305 = vadd.xlane.f32.xlu0 %v2304
    %v2306 = vpop.xlane.xlu0 %2305
    %v2307 = vsel %vm1504, %v2285, 0.0
    %2308 = vadd.xlane.f32.xlu0 %v2307
    %v2309 = vpop.xlane.xlu0 %2308
    %v2310 = vrcp.pop %v2288
    %v2311 = vmul.f32 %v2271, %v2310
    %v2312 = vrcp.pop %v2291
    %v2313 = vmul.f32 %v2273, %v2312
    %v2314 = vrcp.pop %v2294
    %v2315 = vmul.f32 %v2275, %v2314
    %v2316 = vrcp.pop %v2297
    %v2317 = vmul.f32 %v2277, %v2316
    %v2318 = vrcp.pop %v2300
    %v2319 = vmul.f32 %v2279, %v2318
    %v2320 = vrcp.pop %v2303
    %v2321 = vmul.f32 %v2281, %v2320
    %v2322 = vrcp.pop %v2306
    %v2323 = vmul.f32 %v2283, %v2322
    %v2324 = vrcp.pop %v2309
    %v2325 = vmul.f32 %v2285, %v2324
    %2334 = vrot.lane.b32.xlu0 %v2075, 64
    %v2335 = vpop.permute.xlu0 %2334
    %2336 = vrot.lane.b32.xlu0 %v2076, 64
    %v2337 = vpop.permute.xlu0 %2336
    %2338 = vrot.lane.b32.xlu0 %v2077, 64
    %v2339 = vpop.permute.xlu0 %2338
    %2340 = vrot.lane.b32.xlu0 %v2078, 64
    %v2341 = vpop.permute.xlu0 %2340
    %2342 = vrot.lane.b32.xlu0 %v2079, 64
    %v2343 = vpop.permute.xlu0 %2342
    %2344 = vrot.lane.b32.xlu0 %v2080, 64
    %v2345 = vpop.permute.xlu0 %2344
    %2346 = vrot.lane.b32.xlu0 %v2081, 64
    %v2347 = vpop.permute.xlu0 %2346
    %2348 = vrot.lane.b32.xlu0 %v2082, 64
    %v2349 = vpop.permute.xlu0 %2348
    %v2359 = vsel %vm1504, %v2311, 0
    %v2362 = vsel %vm1504, %v2313, 0
    %v2365 = vsel %vm1504, %v2315, 0
    %v2368 = vsel %vm1504, %v2317, 0
    %v2371 = vsel %vm1504, %v2319, 0
    %v2374 = vsel %vm1504, %v2321, 0
    %v2377 = vsel %vm1504, %v2323, 0
    %v2380 = vsel %vm1504, %v2325, 0
    %2382 = vmatprep.subr.mxu0 0.0
    %2383 = vmatpush1.msra.mxu0 0.0
    %2384 = vmatprep.subr.mxu0 0.0
    %2385 = vmatpush1.msra.mxu0 0.0
    %2386 = vmatprep.subr.mxu0 0.0
    %2387 = vmatpush1.msra.mxu0 0.0
    %2388 = vmatprep.subr.mxu0 0.0
    %2389 = vmatpush1.msra.mxu0 0.0
    %2390 = vmatprep.subr.mxu0 0.0
    %2391 = vmatpush1.msra.mxu0 0.0
    %2392 = vmatprep.subr.mxu0 0.0
    %2393 = vmatpush1.msra.mxu0 0.0
    %2394 = vmatprep.subr.mxu0 0.0
    %2395 = vmatpush1.msra.mxu0 0.0
    %2396 = vmatprep.subr.mxu0 0.0
    %2397 = vmatpush1.msra.mxu0 0.0
    %2398 = vmatprep.subr.mxu0 0.0
    %2399 = vmatpush1.msra.mxu0 %v2349
    %2400 = vmatprep.subr.mxu0 0.0
    %2401 = vmatpush1.msra.mxu0 %v2347
    %2402 = vmatprep.subr.mxu0 0.0
    %2403 = vmatpush1.msra.mxu0 %v2345
    %2404 = vmatprep.subr.mxu0 0.0
    %2405 = vmatpush1.msra.mxu0 %v2343
    %2406 = vmatprep.subr.mxu0 0.0
    %2407 = vmatpush1.msra.mxu0 %v2341
    %2408 = vmatprep.subr.mxu0 0.0
    %2409 = vmatpush1.msra.mxu0 %v2339
    %2410 = vmatprep.subr.mxu0 0.0
    %2411 = vmatpush1.msra.mxu0 %v2337
    %2412 = vmatprep.subr.mxu0 0.0
    %2413 = vmatpush1.msra.mxu0 %v2335
    %2414 = vmatprep.subr.mxu0 0.0
    %2415 = vmatpush2.msra.mxu0 0.0
    %2416 = vmatprep.subr.mxu0 0.0
    %2417 = vmatpush2.msra.mxu0 0.0
    %2418 = vmatprep.subr.mxu0 0.0
    %2419 = vmatpush2.msra.mxu0 0.0
    %2420 = vmatprep.subr.mxu0 0.0
    %2421 = vmatpush2.msra.mxu0 0.0
    %2422 = vmatprep.subr.mxu0 0.0
    %2423 = vmatpush2.msra.mxu0 0.0
    %2424 = vmatprep.subr.mxu0 0.0
    %2425 = vmatpush2.msra.mxu0 0.0
    %2426 = vmatprep.subr.mxu0 0.0
    %2427 = vmatpush2.msra.mxu0 0.0
    %2428 = vmatprep.subr.mxu0 0.0
    %2429 = vmatpush2.msra.mxu0 0.0
    %2430 = vmatprep.subr.mxu0 0.0
    %2431 = vmatpush2.msra.mxu0 0.0
    %2432 = vmatprep.subr.mxu0 0.0
    %2433 = vmatpush2.msra.mxu0 0.0
    %2434 = vmatprep.subr.mxu0 0.0
    %2435 = vmatpush2.msra.mxu0 0.0
    %2436 = vmatprep.subr.mxu0 0.0
    %2437 = vmatpush2.msra.mxu0 0.0
    %2438 = vmatprep.subr.mxu0 0.0
    %2439 = vmatpush2.msra.mxu0 0.0
    %2440 = vmatprep.subr.mxu0 0.0
    %2441 = vmatpush2.msra.mxu0 0.0
    %2442 = vmatprep.subr.mxu0 0.0
    %2443 = vmatpush2.msra.mxu0 0.0
    %2444 = vmatprep.subr.mxu0 0.0
    %2445 = vmatpush2.msra.mxu0 0.0
    %2446 = vmatprep.mubr.f32.mxu0 0.0
    %2447 = vmatmul.mubr.f32.gmra.mxu0 %v2359
    %v2448 = vpop.f32.mrf.mxu0
    %v2449 = vadd.f32 0.0, %v2448
    %v2450 = vpop.f32.mrf.mxu0
    %2451 = vmatprep.mubr.f32.mxu0 0.0
    %2452 = vmatmul.mubr.f32.gmra.mxu0 %v2362
    %v2453 = vpop.f32.mrf.mxu0
    %v2454 = vadd.f32 0.0, %v2453
    %v2455 = vpop.f32.mrf.mxu0
    %2456 = vmatprep.mubr.f32.mxu0 0.0
    %2457 = vmatmul.mubr.f32.gmra.mxu0 %v2365
    %v2458 = vpop.f32.mrf.mxu0
    %v2459 = vadd.f32 0.0, %v2458
    %v2460 = vpop.f32.mrf.mxu0
    %2461 = vmatprep.mubr.f32.mxu0 0.0
    %2462 = vmatmul.mubr.f32.gmra.mxu0 %v2368
    %v2463 = vpop.f32.mrf.mxu0
    %v2464 = vadd.f32 0.0, %v2463
    %v2465 = vpop.f32.mrf.mxu0
    %2466 = vmatprep.mubr.f32.mxu0 0.0
    %2467 = vmatmul.mubr.f32.gmra.mxu0 %v2371
    %v2468 = vpop.f32.mrf.mxu0
    %v2469 = vadd.f32 0.0, %v2468
    %v2470 = vpop.f32.mrf.mxu0
    %2471 = vmatprep.mubr.f32.mxu0 0.0
    %2472 = vmatmul.mubr.f32.gmra.mxu0 %v2374
    %v2473 = vpop.f32.mrf.mxu0
    %v2474 = vadd.f32 0.0, %v2473
    %v2475 = vpop.f32.mrf.mxu0
    %2476 = vmatprep.mubr.f32.mxu0 0.0
    %2477 = vmatmul.mubr.f32.gmra.mxu0 %v2377
    %v2478 = vpop.f32.mrf.mxu0
    %v2479 = vadd.f32 0.0, %v2478
    %v2480 = vpop.f32.mrf.mxu0
    %2481 = vmatprep.mubr.f32.mxu0 0.0
    %2482 = vmatmul.mubr.f32.gmra.mxu0 %v2380
    %v2483 = vpop.f32.mrf.mxu0
    %v2484 = vadd.f32 0.0, %v2483
    %v2485 = vpop.f32.mrf.mxu0
    %2486 = vdwg.mxu0
    %2487 = vmatprep.subr.mxu0 0.0
    %2488 = vmatpush1.msra.mxu0 0.0
    %2489 = vmatprep.subr.mxu0 0.0
    %2490 = vmatpush1.msra.mxu0 0.0
    %2491 = vmatprep.subr.mxu0 0.0
    %2492 = vmatpush1.msra.mxu0 0.0
    %2493 = vmatprep.subr.mxu0 0.0
    %2494 = vmatpush1.msra.mxu0 0.0
    %2495 = vmatprep.subr.mxu0 0.0
    %2496 = vmatpush1.msra.mxu0 0.0
    %2497 = vmatprep.subr.mxu0 0.0
    %2498 = vmatpush1.msra.mxu0 0.0
    %2499 = vmatprep.subr.mxu0 0.0
    %2500 = vmatpush1.msra.mxu0 0.0
    %2501 = vmatprep.subr.mxu0 0.0
    %2502 = vmatpush1.msra.mxu0 0.0
    %2503 = vmatprep.subr.mxu0 0.0
    %2504 = vmatpush1.msra.mxu0 %v2484
    %2505 = vmatprep.subr.mxu0 0.0
    %2506 = vmatpush1.msra.mxu0 %v2479
    %2507 = vmatprep.subr.mxu0 0.0
    %2508 = vmatpush1.msra.mxu0 %v2474
    %2509 = vmatprep.subr.mxu0 0.0
    %2510 = vmatpush1.msra.mxu0 %v2469
    %2511 = vmatprep.subr.mxu0 0.0
    %2512 = vmatpush1.msra.mxu0 %v2464
    %2513 = vmatprep.subr.mxu0 0.0
    %2514 = vmatpush1.msra.mxu0 %v2459
    %2515 = vmatprep.subr.mxu0 0.0
    %2516 = vmatpush1.msra.mxu0 %v2454
    %2517 = vmatprep.subr.mxu0 0.0
    %2518 = vmatpush1.msra.mxu0 %v2449
    %2519 = vmatprep.subr.mxu0 0.0
    %2520 = vmatpush2.msra.mxu0 0.0
    %2521 = vmatprep.subr.mxu0 0.0
    %2522 = vmatpush2.msra.mxu0 0.0
    %2523 = vmatprep.subr.mxu0 0.0
    %2524 = vmatpush2.msra.mxu0 0.0
    %2525 = vmatprep.subr.mxu0 0.0
    %2526 = vmatpush2.msra.mxu0 0.0
    %2527 = vmatprep.subr.mxu0 0.0
    %2528 = vmatpush2.msra.mxu0 0.0
    %2529 = vmatprep.subr.mxu0 0.0
    %2530 = vmatpush2.msra.mxu0 0.0
    %2531 = vmatprep.subr.mxu0 0.0
    %2532 = vmatpush2.msra.mxu0 0.0
    %2533 = vmatprep.subr.mxu0 0.0
    %2534 = vmatpush2.msra.mxu0 0.0
    %2535 = vmatprep.subr.mxu0 0.0
    %2536 = vmatpush2.msra.mxu0 0.0
    %2537 = vmatprep.subr.mxu0 0.0
    %2538 = vmatpush2.msra.mxu0 0.0
    %2539 = vmatprep.subr.mxu0 0.0
    %2540 = vmatpush2.msra.mxu0 0.0
    %2541 = vmatprep.subr.mxu0 0.0
    %2542 = vmatpush2.msra.mxu0 0.0
    %2543 = vmatprep.subr.mxu0 0.0
    %2544 = vmatpush2.msra.mxu0 0.0
    %2545 = vmatprep.subr.mxu0 0.0
    %2546 = vmatpush2.msra.mxu0 0.0
    %2547 = vmatprep.subr.mxu0 0.0
    %2548 = vmatpush2.msra.mxu0 0.0
    %2549 = vmatprep.subr.mxu0 0.0
    %2550 = vmatpush2.msra.mxu0 0.0
    %2551 = vmatprep.mubr.f32.mxu0 0.0
    %2552 = vmatmul.mubr.f32.gmra.mxu0 %v1755
    %v2553 = vpop.f32.mrf.mxu0
    %v2554 = vadd.f32 0.0, %v2553
    %v2555 = vpop.f32.mrf.mxu0
    %2556 = vmatprep.mubr.f32.mxu0 0.0
    %2557 = vmatmul.mubr.f32.gmra.mxu0 %v1758
    %v2558 = vpop.f32.mrf.mxu0
    %v2559 = vadd.f32 0.0, %v2558
    %v2560 = vpop.f32.mrf.mxu0
    %2561 = vdwg.mxu0
    %v2562 = vlaneseq
    %v2563 = vshrl.u32 %v2562, 7
    %v2564 = vsub.s32 0, %v2563
    %v2565 = vrot.slane %v1969, %v2564
    %v2567 = vsel %vm163, %v2554, 0
    %v2570 = vsel %vm163, %v2559, 0
    %2572 = vmatprep.subr.mxu0 0.0
    %2573 = vmatpush1.msra.mxu0 0.0
    %2574 = vmatprep.subr.mxu0 0.0
    %2575 = vmatpush1.msra.mxu0 0.0
    %2576 = vmatprep.subr.mxu0 0.0
    %2577 = vmatpush1.msra.mxu0 0.0
    %2578 = vmatprep.subr.mxu0 0.0
    %2579 = vmatpush1.msra.mxu0 0.0
    %2580 = vmatprep.subr.mxu0 0.0
    %2581 = vmatpush1.msra.mxu0 0.0
    %2582 = vmatprep.subr.mxu0 0.0
    %2583 = vmatpush1.msra.mxu0 0.0
    %2584 = vmatprep.subr.mxu0 0.0
    %2585 = vmatpush1.msra.mxu0 0.0
    %2586 = vmatprep.subr.mxu0 0.0
    %2587 = vmatpush1.msra.mxu0 0.0
    %2588 = vmatprep.subr.mxu0 0.0
    %2589 = vmatpush1.msra.mxu0 0.0
    %2590 = vmatprep.subr.mxu0 0.0
    %2591 = vmatpush1.msra.mxu0 0.0
    %2592 = vmatprep.subr.mxu0 0.0
    %2593 = vmatpush1.msra.mxu0 0.0
    %2594 = vmatprep.subr.mxu0 0.0
    %2595 = vmatpush1.msra.mxu0 0.0
    %2596 = vmatprep.subr.mxu0 0.0
    %2597 = vmatpush1.msra.mxu0 %v1967
    %2598 = vmatprep.subr.mxu0 0.0
    %2599 = vmatpush1.msra.mxu0 %v1966
    %2600 = vmatprep.subr.mxu0 0.0
    %2601 = vmatpush1.msra.mxu0 %v1965
    %2602 = vmatprep.subr.mxu0 0.0
    %2603 = vmatpush1.msra.mxu0 %v1964
    %2604 = vmatprep.subr.mxu0 0.0
    %2605 = vmatpush2.msra.mxu0 0.0
    %2606 = vmatprep.subr.mxu0 0.0
    %2607 = vmatpush2.msra.mxu0 0.0
    %2608 = vmatprep.subr.mxu0 0.0
    %2609 = vmatpush2.msra.mxu0 0.0
    %2610 = vmatprep.subr.mxu0 0.0
    %2611 = vmatpush2.msra.mxu0 0.0
    %2612 = vmatprep.subr.mxu0 0.0
    %2613 = vmatpush2.msra.mxu0 0.0
    %2614 = vmatprep.subr.mxu0 0.0
    %2615 = vmatpush2.msra.mxu0 0.0
    %2616 = vmatprep.subr.mxu0 0.0
    %2617 = vmatpush2.msra.mxu0 0.0
    %2618 = vmatprep.subr.mxu0 0.0
    %2619 = vmatpush2.msra.mxu0 0.0
    %2620 = vmatprep.subr.mxu0 0.0
    %2621 = vmatpush2.msra.mxu0 0.0
    %2622 = vmatprep.subr.mxu0 0.0
    %2623 = vmatpush2.msra.mxu0 0.0
    %2624 = vmatprep.subr.mxu0 0.0
    %2625 = vmatpush2.msra.mxu0 0.0
    %2626 = vmatprep.subr.mxu0 0.0
    %2627 = vmatpush2.msra.mxu0 0.0
    %2628 = vmatprep.subr.mxu0 0.0
    %2629 = vmatpush2.msra.mxu0 0.0
    %2630 = vmatprep.subr.mxu0 0.0
    %2631 = vmatpush2.msra.mxu0 0.0
    %2632 = vmatprep.subr.mxu0 0.0
    %2633 = vmatpush2.msra.mxu0 0.0
    %2634 = vmatprep.subr.mxu0 0.0
    %2635 = vmatpush2.msra.mxu0 0.0
    %2636 = vmatprep.mubr.f32.mxu0 0.0
    %2637 = vmatmul.mubr.f32.gmra.mxu0 %v2567
    %v2638 = vpop.f32.mrf.mxu0
    %v2639 = vadd.f32 %v2565, %v2638
    %v2640 = vpop.f32.mrf.mxu0
    %2641 = vmatprep.mubr.f32.mxu0 0.0
    %2642 = vmatmul.mubr.f32.gmra.mxu0 %v2570
    %v2643 = vpop.f32.mrf.mxu0
    %v2644 = vadd.f32 %v2565, %v2643
    %v2645 = vpop.f32.mrf.mxu0
    %2646 = vdwg.mxu0
    %v2647 = vadd.f32 %v2639, %v1958
    %v2648 = vadd.f32 %v2644, %v1959
    %v2649 = vsel %vm163, %v2647, 0.0
    %2650 = vadd.xlane.f32.xlu0 %v2649
    %v2651 = vpop.xlane.xlu0 %2650
    %v2652 = vsel %vm163, %v2648, 0.0
    %2653 = vadd.xlane.f32.xlu0 %v2652
    %v2654 = vpop.xlane.xlu0 %2653
    %v2655 = vmul.f32 %v2651, %v133
    %v2656 = vmul.f32 %v2654, %v133
    %v2657 = vsub.f32 %v2647, %v2655
    %v2658 = vsub.f32 %v2648, %v2656
    %v2659 = vmul.f32 %v2657, %v2657
    %v2660 = vmul.f32 %v2658, %v2658
    %v2661 = vsel %vm163, %v2659, 0.0
    %2662 = vadd.xlane.f32.xlu0 %v2661
    %v2663 = vpop.xlane.xlu0 %2662
    %v2664 = vsel %vm163, %v2660, 0.0
    %2665 = vadd.xlane.f32.xlu0 %v2664
    %v2666 = vpop.xlane.xlu0 %2665
    %v2667 = vmul.f32 %v2663, %v133
    %v2668 = vmul.f32 %v2666, %v133
    %v2669 = vadd.f32 %v2667, 1e-05
    %v2670 = vadd.f32 %v2668, 1e-05
    %v2671 = vrsqrt.pop %v2669
    %v2672 = vrsqrt.pop %v2670
    %v2673 = vmul.f32 %v2657, %v2671
    %v2674 = vmul.f32 %v2658, %v2672
    %v2675 = vlaneseq
    %v2676 = vshrl.u32 %v2675, 7
    %v2677 = vsub.s32 0, %v2676
    %v2678 = vrot.slane %v1970, %v2677
    %v2679 = vmul.f32 %v2673, %v2678
    %v2680 = vmul.f32 %v2674, %v2678
    %v2681 = vlaneseq
    %v2682 = vshrl.u32 %v2681, 7
    %v2683 = vsub.s32 0, %v2682
    %v2684 = vrot.slane %v1971, %v2683
    %v2685 = vadd.f32 %v2679, %v2684
    %v2686 = vadd.f32 %v2680, %v2684
    %v2687 = vadd.f32 %v1958, %v2685
    %v2688 = vadd.f32 %v1959, %v2686
    %v2689 = vmul.f32 %v2687, 0.5
    %v2690 = vmul.f32 %v2688, 0.5
    %vm2691 = vcmask 1041408
    %v2692 = vsel %vm2691, %v234, 0.0
    %vm2693 = vcmask 64512
    %v2694 = vsel %vm2693, %v409, 0.0
    %2697 = vrot.lane.b32.xlu0 %v495, 32
    %v2698 = vpop.permute.xlu0 %2697
    %2699 = vrot.lane.b32.xlu0 %v2692, 32
    %v2700 = vpop.permute.xlu0 %2699
    %2705 = vrot.lane.b32.xlu0 %v2694, 64
    %v2706 = vpop.permute.xlu0 %2705
    %2707 = vrot.lane.b32.xlu0 0.0, 64
    %v2708 = vpop.permute.xlu0 %2707
    %v2711 = vsel %vm163, %v2689, %v2698
    %v2712 = vsel %vm163, %v2690, %v2700
    %v2713 = vsel %vm1504, %v2711, %v2706
    %v2714 = vsel %vm1504, %v2712, %v2708
    %vm2715 = vcmask 785408
    %v2716 = vsel %vm2715, %v2713, 0.0
    %v2717 = vsel %vm2715, %v2714, 0.0
    %2718 = vst [vmem:[#allocation7] sm:$0xff] %v2716
    %2719 = vst [vmem:[#allocation7 + $0x8] sm:$0xff] %v2717
    // Predicated region
    $region18: #{tpu_custom_call.1} parent=1 // pred_check
      _
    $region19: #{tpu_custom_call.1} parent=1 // pred_check_branch
      %2721 = sbr.rel (0) target = $region21
    $region20: #{tpu_custom_call.1} parent=1 // pred_region
      %s2723 = ssub.s32 256, 256
      %2724 = vsyncadd [#allocation4], %s2723
      %s2725 = sshll.u32 [#allocation7], 4
      %s2726 = int_to_ptr.vmem [resolvable:$true] %s2725
      %2731 = dma.vmem_to_hbm [thread:$0]  %s2726, 256, %s2, [#allocation4], 128, 128, 8
    $region21: #{tpu_custom_call.1} parent=1 // pred_fallthru
      _
    // Predicated region
    $region22: #{tpu_custom_call.1} parent=1 // pred_check
      _
    $region23: #{tpu_custom_call.1} parent=1 // pred_check_branch
      %2733 = sbr.rel (0) target = $region25
    $region24: #{tpu_custom_call.1} parent=1 // pred_region
      %2734 = dma.done [#allocation4], 256
    $region25: #{tpu_custom_call.1} parent=1 // pred_fallthru
      _
    %2735 = vsyncpa [#allocation3], 1
    %2736 = vsyncpa [#allocation6], 1
    %2737 = vsyncpa [#allocation4], 1

</llo_original>
